<compile_context>
chip_gen: v6e
topology: v6e:2x2x1
jax: 0.10.0
libtpu: 0.0.40
codegen_flags: <defaults>
</compile_context>

<pallas_src>
import functools

import jax
import jax.numpy as jnp
from jax import lax
from jax.experimental import pallas as pl
from jax.experimental.pallas import tpu as pltpu

EPS = 1e-5  # PyTorch InstanceNorm2d default eps


def _full(shape):
    nd = len(shape)
    return pl.BlockSpec(shape, lambda b, _nd=nd: (0,) * _nd)


# ---------------------------------------------------------------------------
# Fused MappingDecoder kernel (one batch element per grid step)
# ---------------------------------------------------------------------------
def mapping_decoder_kernel(x_ref, dw_ref, daff_ref, sw_ref, sb_ref,
                           haff_ref, hw_ref, hb_ref, o_ref, skip_ref,
                           *, T, F, C, depth, cout):
    CALL = depth * C            # channel capacity of the skip concat (4C)
    TPAD = 2 ** (depth - 1)     # max causal T padding (= largest dilation)

    # ---------------- DenseBlockV2: 4 dilated causal (2,3) convs + IN + PReLU --------
    # skip_ref holds the growing channel-concat skip tensor with the causal T padding
    # (TPAD rows) and symmetric F padding (1 col each side) built in; the zero fill
    # provides all ConstantPad2d zeros and the not-yet-written channels.
    skip_ref[...] = jnp.zeros_like(skip_ref)
    skip_ref[TPAD:TPAD + T, 1:F + 1, CALL - C:CALL] = x_ref[0]

    y = None
    for i in range(depth):
        dil = 2 ** i
        taps = []
        for kt in range(2):                         # dilated taps along T (causal)
            t0 = TPAD - dil * (1 - kt)
            rows = skip_ref[t0:t0 + T]              # (T, F+2, 4C)
            for kf in range(3):                     # taps along F
                taps.append(rows[:, kf:kf + F, :])
        # im2col: one (T*F, 6*4C) patch -> a single big-K bf16 MXU matmul per layer
        patch = jnp.concatenate(taps, axis=-1).reshape(T * F, 6 * CALL)
        acc = jnp.dot(patch.astype(jnp.bfloat16), dw_ref[i],
                      preferred_element_type=jnp.float32)
        par = daff_ref[i]                           # (4, C): bias, gamma, beta, alpha
        acc = acc + par[0:1]
        mean = jnp.mean(acc, axis=0, keepdims=True)
        cen = acc - mean
        var = jnp.mean(cen * cen, axis=0, keepdims=True)
        y = cen * lax.rsqrt(var + EPS)
        y = y * par[1:2] + par[2:3]
        y = jnp.where(y >= 0.0, y, par[3:4] * y)    # PReLU, (T*F, C)
        if i < depth - 1:                           # prepend to the skip concat
            ch0 = (depth - 2 - i) * C
            skip_ref[TPAD:TPAD + T, 1:F + 1, ch0:ch0 + C] = y.reshape(T, F, C)

    # -------- SubPixelConvTranspose2d.conv1: (1,3) conv, F padded (1,1) in VMEM ------
    x3 = y.reshape(T, F, C)
    zc = jnp.zeros((T, 1, C), jnp.float32)
    xp = jnp.concatenate([zc, x3, zc], axis=1)                       # (T, F+2, C)
    patch = jnp.concatenate([xp[:, k:k + F, :] for k in range(3)], axis=-1)
    patch = patch.reshape(T * F, 3 * C).astype(jnp.bfloat16)
    h = jnp.dot(patch, sw_ref[...], preferred_element_type=jnp.float32)
    h = h + sb_ref[...]                                              # (T*F, 2C)
    # Columns are ordered s*C + c (host-permuted): block [0:C] is the even (s=0)
    # shuffled frequency 2f, block [C:2C] the odd (s=1) frequency 2f+1 -> the pixel
    # shuffle itself never has to be materialized.

    # ------------- InstanceNorm2d(affine) + PReLU of the shuffled tensor -------------
    # Per-channel stats over (T, 2F) == union of the two equal-size column groups.
    mc = jnp.mean(h, axis=0, keepdims=True)                          # (1, 2C)
    m = 0.5 * (mc[:, :C] + mc[:, C:])
    mt = jnp.concatenate([m, m], axis=1)
    d = h - mt
    vc = jnp.mean(d * d, axis=0, keepdims=True)
    v = 0.5 * (vc[:, :C] + vc[:, C:])
    vt = jnp.concatenate([v, v], axis=1)
    h = d * lax.rsqrt(vt + EPS)
    h = h * haff_ref[0:1] + haff_ref[1:2]                            # affine (tiled 2C)
    h = jnp.where(h >= 0.0, h, haff_ref[2:3] * h)                    # PReLU

    # ------------- final Conv2d(C, cout, (1,2)) + ReLU as even/odd frequencies -------
    hb16 = h.astype(jnp.bfloat16)
    ze = jnp.dot(hb16, hw_ref[0], preferred_element_type=jnp.float32)  # even freq 2f
    za = jnp.dot(hb16, hw_ref[1], preferred_element_type=jnp.float32)  # odd, tap at 2f+1
    zb = jnp.dot(hb16, hw_ref[2], preferred_element_type=jnp.float32)  # odd, tap at 2f+2
    ze3 = ze.reshape(T, F, cout)
    za3 = za.reshape(T, F, cout)
    zb3 = zb.reshape(T, F, cout)
    zb3 = jnp.concatenate([zb3[:, 1:, :], jnp.zeros((T, 1, cout), jnp.float32)], axis=1)
    bias = hb_ref[...]                                               # (1, cout)
    even = jnp.maximum(ze3 + bias, 0.0)                              # out freq 2f
    odd = jnp.maximum(za3 + zb3 + bias, 0.0)                         # out freq 2f+1
    # Store both parities; the wrapper interleaves along F and drops the last odd slot.
    o_ref[0] = jnp.concatenate([even, odd], axis=-1)                 # (T, F, 2*cout)


# ---------------------------------------------------------------------------
# Wrapper (PyTorch NCHW in / out)
# ---------------------------------------------------------------------------
def mapping_decoder_forward(kp, x_nchw):
    B, C, T, F = x_nchw.shape
    depth = kp["dense_w"].shape[0]
    cout = kp["head_b"].shape[-1]
    CALL = depth * C
    TPAD = 2 ** (depth - 1)

    x = jnp.transpose(x_nchw, (0, 2, 3, 1)).astype(jnp.float32)      # NCHW -> (B,T,F,C)

    kernel = functools.partial(mapping_decoder_kernel, T=T, F=F, C=C,
                               depth=depth, cout=cout)
    out = pl.pallas_call(
        kernel,
        out_shape=jax.ShapeDtypeStruct((B, T, F, 2 * cout), jnp.float32),
        grid=(B,),
        in_specs=[
            pl.BlockSpec((1, T, F, C), lambda b: (b, 0, 0, 0)),
            _full(kp["dense_w"].shape),
            _full(kp["dense_aff"].shape),
            _full(kp["sub_w"].shape),
            _full(kp["sub_b"].shape),
            _full(kp["head_aff"].shape),
            _full(kp["head_w"].shape),
            _full(kp["head_b"].shape),
        ],
        out_specs=pl.BlockSpec((1, T, F, 2 * cout), lambda b: (b, 0, 0, 0)),
        scratch_shapes=[pltpu.VMEM((T + TPAD, F + 2, CALL), jnp.float32)],
        compiler_params=pltpu.CompilerParams(
            dimension_semantics=("parallel",),
            vmem_limit_bytes=64 * 1024 * 1024),
    )(x, kp["dense_w"], kp["dense_aff"], kp["sub_w"], kp["sub_b"],
      kp["head_aff"], kp["head_w"], kp["head_b"])

    # Interleave even/odd output frequencies (tiny tensor: metadata reshape + one small
    # XLA transpose) and return PyTorch NCHW (B, cout, T, 2F-1).
    z = out.reshape(B, T, F, 2, cout)
    z = jnp.transpose(z, (0, 4, 1, 2, 3)).reshape(B, cout, T, 2 * F)
    return z[:, :, :, : 2 * F - 1]


# ---------------------------------------------------------------------------
# Parameters: init in PyTorch layouts, convert ONCE to kernel layouts.
# ---------------------------------------------------------------------------
def init_params(key, C, out_channel=1, depth=4):
    p = {"dense": []}
    for i in range(depth):
        cin = C * (i + 1)
        key, kw, kb = jax.random.split(key, 3)
        scale = 1.0 / float(cin * 2 * 3) ** 0.5
        p["dense"].append(dict(
            w=jax.random.normal(kw, (C, cin, 2, 3), jnp.float32) * scale,  # (Cout,Cin,kt,kf)
            b=jax.random.normal(kb, (C,), jnp.float32) * scale,
            gamma=jnp.ones((C,), jnp.float32),
            beta=jnp.zeros((C,), jnp.float32),
            alpha=jnp.full((C,), 0.25, jnp.float32),
        ))
    key, k1, k2, k3, k4 = jax.random.split(key, 5)
    s1 = 1.0 / float(C * 3) ** 0.5
    p["sub_w"] = jax.random.normal(k1, (2 * C, C, 1, 3), jnp.float32) * s1   # (Cout,Cin,kh,kw)
    p["sub_b"] = jax.random.normal(k2, (2 * C,), jnp.float32) * s1
    p["head_gamma"] = jnp.ones((C,), jnp.float32)
    p["head_beta"] = jnp.zeros((C,), jnp.float32)
    p["head_alpha"] = jnp.full((C,), 0.25, jnp.float32)
    s2 = 1.0 / float(C * 2) ** 0.5
    p["head_w"] = jax.random.normal(k3, (out_channel, C, 1, 2), jnp.float32) * s2
    p["head_b"] = jax.random.normal(k4, (out_channel,), jnp.float32) * s2
    return p, key


def prepare_params(p, C, out_channel=1):
    """Convert PyTorch-layout params to the fused-kernel layouts (done once)."""
    depth = len(p["dense"])
    CALL = depth * C
    dws, daffs = [], []
    for i, lp in enumerate(p["dense"]):
        w = jnp.transpose(lp["w"], (2, 3, 1, 0))          # -> (kt, kf, Cin_i, C)
        # front-zero-pad Cin so every layer uses the full 4C skip channels
        w = jnp.pad(w, ((0, 0), (0, 0), (CALL - (i + 1) * C, 0), (0, 0)))
        dws.append(w.reshape(6 * CALL, C))                # rows ordered (kt, kf, cin)
        daffs.append(jnp.stack([lp["b"], lp["gamma"], lp["beta"], lp["alpha"]]))
    kp = {
        "dense_w": jnp.stack(dws).astype(jnp.bfloat16),   # (depth, 6*4C, C)
        "dense_aff": jnp.stack(daffs).astype(jnp.float32),  # (depth, 4, C)
    }
    # SubPixel conv1: PyTorch out channel order is c*2+s; permute to s*C+c ("s-major")
    # so the frequency pixel-shuffle becomes a contiguous reinterpretation.
    sw = jnp.transpose(p["sub_w"], (2, 3, 1, 0)).reshape(3 * C, 2 * C)   # rows (kf, cin)
    sw = sw.reshape(3 * C, C, 2).transpose(0, 2, 1).reshape(3 * C, 2 * C)
    kp["sub_w"] = sw.astype(jnp.bfloat16)
    kp["sub_b"] = p["sub_b"].reshape(C, 2).T.reshape(1, 2 * C).astype(jnp.float32)
    # Head InstanceNorm/PReLU params tiled to the s-major 2C column layout.
    kp["head_aff"] = jnp.stack([
        jnp.concatenate([p["head_gamma"], p["head_gamma"]]),
        jnp.concatenate([p["head_beta"], p["head_beta"]]),
        jnp.concatenate([p["head_alpha"], p["head_alpha"]]),
    ]).astype(jnp.float32)                                # (3, 2C)
    # Final Conv2d(C, cout, (1,2)) as 3 matrices for the even/odd formulation.
    hw = jnp.transpose(p["head_w"], (2, 3, 1, 0)).reshape(2 * C, out_channel)
    w0, w1 = hw[:C], hw[C:]
    zero = jnp.zeros_like(w0)
    kp["head_w"] = jnp.stack([
        jnp.concatenate([w0, w1], axis=0),    # even output freq 2f
        jnp.concatenate([zero, w0], axis=0),  # odd: tap at shuffled freq 2f+1
        jnp.concatenate([w1, zero], axis=0),  # odd: tap at shuffled freq 2f+2
    ]).astype(jnp.bfloat16)                               # (3, 2C, cout)
    kp["head_b"] = p["head_b"].reshape(1, out_channel).astype(jnp.float32)
    return kp


if __name__ == "__main__":
    class H:  # minimal config object (h.dense_channel)
        dense_channel = 8

    h = H()
    B, T, F = 2, 8, 16
    C = h.dense_channel
    out_channel = 1

    key = jax.random.PRNGKey(0)
    params, key = init_params(key, C, out_channel)
    kparams = prepare_params(params, C, out_channel)
    key, kx = jax.random.split(key)
    x_nchw = jax.random.normal(kx, (B, C, T, F), jnp.float32)   # PyTorch NCHW input

    fwd = jax.jit(mapping_decoder_forward)
    out = jax.block_until_ready(fwd(kparams, x_nchw))

    assert out.shape == (B, out_channel, T, 2 * F - 1), out.shape
    assert bool(jnp.all(jnp.isfinite(out)))
    assert bool(jnp.all(out >= 0.0))  # final ReLU
    print("KERNEL_OK")
</pallas_src>

<mosaic_0001>
module attributes {stable_mosaic.version = 11 : i64} {
  func.func @mapping_decoder_kernel(%arg0: i32, %arg1: memref<1x8x16x8xf32, #tpu.memory_space<vmem>>, %arg2: memref<4x192x8xbf16, #tpu.memory_space<vmem>>, %arg3: memref<4x4x8xf32, #tpu.memory_space<vmem>>, %arg4: memref<24x16xbf16, #tpu.memory_space<vmem>>, %arg5: memref<1x16xf32, #tpu.memory_space<vmem>>, %arg6: memref<3x16xf32, #tpu.memory_space<vmem>>, %arg7: memref<3x16x1xbf16, #tpu.memory_space<vmem>>, %arg8: memref<1x1xf32, #tpu.memory_space<vmem>>, %arg9: memref<1x8x16x2xf32, #tpu.memory_space<vmem>>, %arg10: memref<16x18x32xf32, #tpu.memory_space<vmem>>) attributes {dimension_semantics = [#tpu.dimension_semantics<parallel>], iteration_bounds = array<i64: 2>, scalar_prefetch = 0 : i64, scratch_operands = 1 : i64, tpu.core_type = #tpu.core_type<tc>, window_params = [{transform_indices = @transform_0, window_bounds = array<i64: 1, 8, 16, 8>}, {pipeline_mode = #tpu.pipeline_mode<synchronous>, transform_indices = @transform_1, window_bounds = array<i64: 4, 192, 8>}, {pipeline_mode = #tpu.pipeline_mode<synchronous>, transform_indices = @transform_2, window_bounds = array<i64: 4, 4, 8>}, {pipeline_mode = #tpu.pipeline_mode<synchronous>, transform_indices = @transform_3, window_bounds = array<i64: 24, 16>}, {pipeline_mode = #tpu.pipeline_mode<synchronous>, transform_indices = @transform_4, window_bounds = array<i64: 1, 16>}, {pipeline_mode = #tpu.pipeline_mode<synchronous>, transform_indices = @transform_5, window_bounds = array<i64: 3, 16>}, {pipeline_mode = #tpu.pipeline_mode<synchronous>, transform_indices = @transform_6, window_bounds = array<i64: 3, 16, 1>}, {pipeline_mode = #tpu.pipeline_mode<synchronous>, transform_indices = @transform_7, window_bounds = array<i64: 1, 1>}, {transform_indices = @transform_8, window_bounds = array<i64: 1, 8, 16, 2>}]} {
    %cst = arith.constant 0.000000e+00 : f32
    %0 = vector.broadcast %cst : f32 to vector<16x18x32xf32>
    %c0 = arith.constant 0 : index
    %c0_0 = arith.constant 0 : index
    %c0_1 = arith.constant 0 : index
    %1 = vector.load %arg10[%c0, %c0_0, %c0_1] : memref<16x18x32xf32, #tpu.memory_space<vmem>>, vector<16x18x32xf32>
    tpu.vector_store %arg10[%c0, %c0_0, %c0_1], %0 {strides = array<i32>} : memref<16x18x32xf32, #tpu.memory_space<vmem>>, vector<16x18x32xf32>,
    %c0_2 = arith.constant 0 : index
    %c0_3 = arith.constant 0 : index
    %c0_4 = arith.constant 0 : index
    %c0_5 = arith.constant 0 : index
    %2 = vector.load %arg1[%c0_2, %c0_3, %c0_4, %c0_5] : memref<1x8x16x8xf32, #tpu.memory_space<vmem>>, vector<1x8x16x8xf32>
    %3 = vector.shape_cast %2 : vector<1x8x16x8xf32> to vector<8x16x8xf32>
    %c8 = arith.constant 8 : index
    %c1 = arith.constant 1 : index
    %c24 = arith.constant 24 : index
    %4 = vector.load %arg10[%c8, %c1, %c24] : memref<16x18x32xf32, #tpu.memory_space<vmem>>, vector<8x16x8xf32>
    tpu.vector_store %arg10[%c8, %c1, %c24], %3 {strides = array<i32>} : memref<16x18x32xf32, #tpu.memory_space<vmem>>, vector<8x16x8xf32>,
    %c7 = arith.constant 7 : index
    %c0_6 = arith.constant 0 : index
    %c0_7 = arith.constant 0 : index
    %5 = vector.load %arg10[%c7, %c0_6, %c0_7] : memref<16x18x32xf32, #tpu.memory_space<vmem>>, vector<8x18x32xf32>
    %6 = vector.extract_strided_slice %5 {offsets = [0, 0, 0], sizes = [8, 16, 32], strides = [1, 1, 1]} : vector<8x18x32xf32> to vector<8x16x32xf32>
    %7 = vector.extract_strided_slice %5 {offsets = [0, 1, 0], sizes = [8, 16, 32], strides = [1, 1, 1]} : vector<8x18x32xf32> to vector<8x16x32xf32>
    %8 = vector.extract_strided_slice %5 {offsets = [0, 2, 0], sizes = [8, 16, 32], strides = [1, 1, 1]} : vector<8x18x32xf32> to vector<8x16x32xf32>
    %c8_8 = arith.constant 8 : index
    %c0_9 = arith.constant 0 : index
    %c0_10 = arith.constant 0 : index
    %9 = vector.load %arg10[%c8_8, %c0_9, %c0_10] : memref<16x18x32xf32, #tpu.memory_space<vmem>>, vector<8x18x32xf32>
    %10 = vector.extract_strided_slice %9 {offsets = [0, 0, 0], sizes = [8, 16, 32], strides = [1, 1, 1]} : vector<8x18x32xf32> to vector<8x16x32xf32>
    %11 = vector.extract_strided_slice %9 {offsets = [0, 1, 0], sizes = [8, 16, 32], strides = [1, 1, 1]} : vector<8x18x32xf32> to vector<8x16x32xf32>
    %12 = vector.extract_strided_slice %9 {offsets = [0, 2, 0], sizes = [8, 16, 32], strides = [1, 1, 1]} : vector<8x18x32xf32> to vector<8x16x32xf32>
    %13 = tpu.concatenate %6, %7, %8, %10, %11, %12 in 2 : vector<8x16x32xf32>, vector<8x16x32xf32>, vector<8x16x32xf32>, vector<8x16x32xf32>, vector<8x16x32xf32>, vector<8x16x32xf32> -> vector<8x16x192xf32>
    %14 = vector.shape_cast %13 : vector<8x16x192xf32> to vector<128x192xf32>
    %15 = arith.truncf %14 : vector<128x192xf32> to vector<128x192xbf16>
    %c0_11 = arith.constant 0 : index
    %c0_12 = arith.constant 0 : index
    %c0_13 = arith.constant 0 : index
    %16 = vector.load %arg2[%c0_11, %c0_12, %c0_13] : memref<4x192x8xbf16, #tpu.memory_space<vmem>>, vector<1x192x8xbf16>
    %17 = vector.shape_cast %16 : vector<1x192x8xbf16> to vector<192x8xbf16>
    %cst_14 = arith.constant dense<0.000000e+00> : vector<128x8xf32>
    %18 = tpu.matmul %15, %17, %cst_14 {dimension_numbers = #tpu.dot_dimension_numbers<[1], [0], [0], [1], [0, 0, 1, 1], [], []>} : vector<128x192xbf16>, vector<192x8xbf16>, vector<128x8xf32> -> vector<128x8xf32>
    %c0_15 = arith.constant 0 : index
    %c0_16 = arith.constant 0 : index
    %c0_17 = arith.constant 0 : index
    %19 = vector.load %arg3[%c0_15, %c0_16, %c0_17] : memref<4x4x8xf32, #tpu.memory_space<vmem>>, vector<1x4x8xf32>
    %20 = vector.shape_cast %19 : vector<1x4x8xf32> to vector<4x8xf32>
    %21 = vector.extract_strided_slice %20 {offsets = [0, 0], sizes = [1, 8], strides = [1, 1]} : vector<4x8xf32> to vector<1x8xf32>
    %22 = vector.broadcast %21 : vector<1x8xf32> to vector<128x8xf32>
    %23 = arith.addf %18, %22 : vector<128x8xf32>
    %cst_18 = arith.constant dense<0.000000e+00> : vector<8xf32>
    %24 = vector.multi_reduction <add>, %23, %cst_18 [0] : vector<128x8xf32> to vector<8xf32>
    %25 = vector.shape_cast %24 : vector<8xf32> to vector<1x8xf32>
    %cst_19 = arith.constant 1.280000e+02 : f32
    %26 = vector.broadcast %cst_19 : f32 to vector<1x8xf32>
    %27 = arith.divf %25, %26 : vector<1x8xf32>
    %28 = vector.broadcast %27 : vector<1x8xf32> to vector<128x8xf32>
    %29 = arith.subf %23, %28 : vector<128x8xf32>
    %30 = arith.mulf %29, %29 : vector<128x8xf32>
    %cst_20 = arith.constant dense<0.000000e+00> : vector<8xf32>
    %31 = vector.multi_reduction <add>, %30, %cst_20 [0] : vector<128x8xf32> to vector<8xf32>
    %32 = vector.shape_cast %31 : vector<8xf32> to vector<1x8xf32>
    %cst_21 = arith.constant 1.280000e+02 : f32
    %33 = vector.broadcast %cst_21 : f32 to vector<1x8xf32>
    %34 = arith.divf %32, %33 : vector<1x8xf32>
    %cst_22 = arith.constant 9.99999974E-6 : f32
    %35 = vector.broadcast %cst_22 : f32 to vector<1x8xf32>
    %36 = arith.addf %34, %35 : vector<1x8xf32>
    %37 = math.rsqrt %36 : vector<1x8xf32>
    %38 = vector.broadcast %37 : vector<1x8xf32> to vector<128x8xf32>
    %39 = arith.mulf %29, %38 : vector<128x8xf32>
    %40 = vector.extract_strided_slice %20 {offsets = [1, 0], sizes = [1, 8], strides = [1, 1]} : vector<4x8xf32> to vector<1x8xf32>
    %41 = vector.broadcast %40 : vector<1x8xf32> to vector<128x8xf32>
    %42 = arith.mulf %39, %41 : vector<128x8xf32>
    %43 = vector.extract_strided_slice %20 {offsets = [2, 0], sizes = [1, 8], strides = [1, 1]} : vector<4x8xf32> to vector<1x8xf32>
    %44 = vector.broadcast %43 : vector<1x8xf32> to vector<128x8xf32>
    %45 = arith.addf %42, %44 : vector<128x8xf32>
    %cst_23 = arith.constant 0.000000e+00 : f32
    %46 = vector.broadcast %cst_23 : f32 to vector<128x8xf32>
    %47 = arith.cmpf oge, %45, %46 : vector<128x8xf32>
    %48 = vector.extract_strided_slice %20 {offsets = [3, 0], sizes = [1, 8], strides = [1, 1]} : vector<4x8xf32> to vector<1x8xf32>
    %49 = vector.broadcast %48 : vector<1x8xf32> to vector<128x8xf32>
    %50 = arith.mulf %49, %45 : vector<128x8xf32>
    %51 = arith.select %47, %45, %50 : vector<128x8xi1>, vector<128x8xf32>
    %52 = vector.shape_cast %51 : vector<128x8xf32> to vector<8x16x8xf32>
    %c8_24 = arith.constant 8 : index
    %c1_25 = arith.constant 1 : index
    %c16 = arith.constant 16 : index
    %53 = vector.load %arg10[%c8_24, %c1_25, %c16] : memref<16x18x32xf32, #tpu.memory_space<vmem>>, vector<8x16x8xf32>
    tpu.vector_store %arg10[%c8_24, %c1_25, %c16], %52 {strides = array<i32>} : memref<16x18x32xf32, #tpu.memory_space<vmem>>, vector<8x16x8xf32>,
    %c6 = arith.constant 6 : index
    %c0_26 = arith.constant 0 : index
    %c0_27 = arith.constant 0 : index
    %54 = vector.load %arg10[%c6, %c0_26, %c0_27] : memref<16x18x32xf32, #tpu.memory_space<vmem>>, vector<8x18x32xf32>
    %55 = vector.extract_strided_slice %54 {offsets = [0, 0, 0], sizes = [8, 16, 32], strides = [1, 1, 1]} : vector<8x18x32xf32> to vector<8x16x32xf32>
    %56 = vector.extract_strided_slice %54 {offsets = [0, 1, 0], sizes = [8, 16, 32], strides = [1, 1, 1]} : vector<8x18x32xf32> to vector<8x16x32xf32>
    %57 = vector.extract_strided_slice %54 {offsets = [0, 2, 0], sizes = [8, 16, 32], strides = [1, 1, 1]} : vector<8x18x32xf32> to vector<8x16x32xf32>
    %c8_28 = arith.constant 8 : index
    %c0_29 = arith.constant 0 : index
    %c0_30 = arith.constant 0 : index
    %58 = vector.load %arg10[%c8_28, %c0_29, %c0_30] : memref<16x18x32xf32, #tpu.memory_space<vmem>>, vector<8x18x32xf32>
    %59 = vector.extract_strided_slice %58 {offsets = [0, 0, 0], sizes = [8, 16, 32], strides = [1, 1, 1]} : vector<8x18x32xf32> to vector<8x16x32xf32>
    %60 = vector.extract_strided_slice %58 {offsets = [0, 1, 0], sizes = [8, 16, 32], strides = [1, 1, 1]} : vector<8x18x32xf32> to vector<8x16x32xf32>
    %61 = vector.extract_strided_slice %58 {offsets = [0, 2, 0], sizes = [8, 16, 32], strides = [1, 1, 1]} : vector<8x18x32xf32> to vector<8x16x32xf32>
    %62 = tpu.concatenate %55, %56, %57, %59, %60, %61 in 2 : vector<8x16x32xf32>, vector<8x16x32xf32>, vector<8x16x32xf32>, vector<8x16x32xf32>, vector<8x16x32xf32>, vector<8x16x32xf32> -> vector<8x16x192xf32>
    %63 = vector.shape_cast %62 : vector<8x16x192xf32> to vector<128x192xf32>
    %64 = arith.truncf %63 : vector<128x192xf32> to vector<128x192xbf16>
    %c1_31 = arith.constant 1 : index
    %c0_32 = arith.constant 0 : index
    %c0_33 = arith.constant 0 : index
    %65 = vector.load %arg2[%c1_31, %c0_32, %c0_33] : memref<4x192x8xbf16, #tpu.memory_space<vmem>>, vector<1x192x8xbf16>
    %66 = vector.shape_cast %65 : vector<1x192x8xbf16> to vector<192x8xbf16>
    %cst_34 = arith.constant dense<0.000000e+00> : vector<128x8xf32>
    %67 = tpu.matmul %64, %66, %cst_34 {dimension_numbers = #tpu.dot_dimension_numbers<[1], [0], [0], [1], [0, 0, 1, 1], [], []>} : vector<128x192xbf16>, vector<192x8xbf16>, vector<128x8xf32> -> vector<128x8xf32>
    %c1_35 = arith.constant 1 : index
    %c0_36 = arith.constant 0 : index
    %c0_37 = arith.constant 0 : index
    %68 = vector.load %arg3[%c1_35, %c0_36, %c0_37] : memref<4x4x8xf32, #tpu.memory_space<vmem>>, vector<1x4x8xf32>
    %69 = vector.shape_cast %68 : vector<1x4x8xf32> to vector<4x8xf32>
    %70 = vector.extract_strided_slice %69 {offsets = [0, 0], sizes = [1, 8], strides = [1, 1]} : vector<4x8xf32> to vector<1x8xf32>
    %71 = vector.broadcast %70 : vector<1x8xf32> to vector<128x8xf32>
    %72 = arith.addf %67, %71 : vector<128x8xf32>
    %cst_38 = arith.constant dense<0.000000e+00> : vector<8xf32>
    %73 = vector.multi_reduction <add>, %72, %cst_38 [0] : vector<128x8xf32> to vector<8xf32>
    %74 = vector.shape_cast %73 : vector<8xf32> to vector<1x8xf32>
    %cst_39 = arith.constant 1.280000e+02 : f32
    %75 = vector.broadcast %cst_39 : f32 to vector<1x8xf32>
    %76 = arith.divf %74, %75 : vector<1x8xf32>
    %77 = vector.broadcast %76 : vector<1x8xf32> to vector<128x8xf32>
    %78 = arith.subf %72, %77 : vector<128x8xf32>
    %79 = arith.mulf %78, %78 : vector<128x8xf32>
    %cst_40 = arith.constant dense<0.000000e+00> : vector<8xf32>
    %80 = vector.multi_reduction <add>, %79, %cst_40 [0] : vector<128x8xf32> to vector<8xf32>
    %81 = vector.shape_cast %80 : vector<8xf32> to vector<1x8xf32>
    %cst_41 = arith.constant 1.280000e+02 : f32
    %82 = vector.broadcast %cst_41 : f32 to vector<1x8xf32>
    %83 = arith.divf %81, %82 : vector<1x8xf32>
    %cst_42 = arith.constant 9.99999974E-6 : f32
    %84 = vector.broadcast %cst_42 : f32 to vector<1x8xf32>
    %85 = arith.addf %83, %84 : vector<1x8xf32>
    %86 = math.rsqrt %85 : vector<1x8xf32>
    %87 = vector.broadcast %86 : vector<1x8xf32> to vector<128x8xf32>
    %88 = arith.mulf %78, %87 : vector<128x8xf32>
    %89 = vector.extract_strided_slice %69 {offsets = [1, 0], sizes = [1, 8], strides = [1, 1]} : vector<4x8xf32> to vector<1x8xf32>
    %90 = vector.broadcast %89 : vector<1x8xf32> to vector<128x8xf32>
    %91 = arith.mulf %88, %90 : vector<128x8xf32>
    %92 = vector.extract_strided_slice %69 {offsets = [2, 0], sizes = [1, 8], strides = [1, 1]} : vector<4x8xf32> to vector<1x8xf32>
    %93 = vector.broadcast %92 : vector<1x8xf32> to vector<128x8xf32>
    %94 = arith.addf %91, %93 : vector<128x8xf32>
    %cst_43 = arith.constant 0.000000e+00 : f32
    %95 = vector.broadcast %cst_43 : f32 to vector<128x8xf32>
    %96 = arith.cmpf oge, %94, %95 : vector<128x8xf32>
    %97 = vector.extract_strided_slice %69 {offsets = [3, 0], sizes = [1, 8], strides = [1, 1]} : vector<4x8xf32> to vector<1x8xf32>
    %98 = vector.broadcast %97 : vector<1x8xf32> to vector<128x8xf32>
    %99 = arith.mulf %98, %94 : vector<128x8xf32>
    %100 = arith.select %96, %94, %99 : vector<128x8xi1>, vector<128x8xf32>
    %101 = vector.shape_cast %100 : vector<128x8xf32> to vector<8x16x8xf32>
    %c8_44 = arith.constant 8 : index
    %c1_45 = arith.constant 1 : index
    %c8_46 = arith.constant 8 : index
    %102 = vector.load %arg10[%c8_44, %c1_45, %c8_46] : memref<16x18x32xf32, #tpu.memory_space<vmem>>, vector<8x16x8xf32>
    tpu.vector_store %arg10[%c8_44, %c1_45, %c8_46], %101 {strides = array<i32>} : memref<16x18x32xf32, #tpu.memory_space<vmem>>, vector<8x16x8xf32>,
    %c4 = arith.constant 4 : index
    %c0_47 = arith.constant 0 : index
    %c0_48 = arith.constant 0 : index
    %103 = vector.load %arg10[%c4, %c0_47, %c0_48] : memref<16x18x32xf32, #tpu.memory_space<vmem>>, vector<8x18x32xf32>
    %104 = vector.extract_strided_slice %103 {offsets = [0, 0, 0], sizes = [8, 16, 32], strides = [1, 1, 1]} : vector<8x18x32xf32> to vector<8x16x32xf32>
    %105 = vector.extract_strided_slice %103 {offsets = [0, 1, 0], sizes = [8, 16, 32], strides = [1, 1, 1]} : vector<8x18x32xf32> to vector<8x16x32xf32>
    %106 = vector.extract_strided_slice %103 {offsets = [0, 2, 0], sizes = [8, 16, 32], strides = [1, 1, 1]} : vector<8x18x32xf32> to vector<8x16x32xf32>
    %c8_49 = arith.constant 8 : index
    %c0_50 = arith.constant 0 : index
    %c0_51 = arith.constant 0 : index
    %107 = vector.load %arg10[%c8_49, %c0_50, %c0_51] : memref<16x18x32xf32, #tpu.memory_space<vmem>>, vector<8x18x32xf32>
    %108 = vector.extract_strided_slice %107 {offsets = [0, 0, 0], sizes = [8, 16, 32], strides = [1, 1, 1]} : vector<8x18x32xf32> to vector<8x16x32xf32>
    %109 = vector.extract_strided_slice %107 {offsets = [0, 1, 0], sizes = [8, 16, 32], strides = [1, 1, 1]} : vector<8x18x32xf32> to vector<8x16x32xf32>
    %110 = vector.extract_strided_slice %107 {offsets = [0, 2, 0], sizes = [8, 16, 32], strides = [1, 1, 1]} : vector<8x18x32xf32> to vector<8x16x32xf32>
    %111 = tpu.concatenate %104, %105, %106, %108, %109, %110 in 2 : vector<8x16x32xf32>, vector<8x16x32xf32>, vector<8x16x32xf32>, vector<8x16x32xf32>, vector<8x16x32xf32>, vector<8x16x32xf32> -> vector<8x16x192xf32>
    %112 = vector.shape_cast %111 : vector<8x16x192xf32> to vector<128x192xf32>
    %113 = arith.truncf %112 : vector<128x192xf32> to vector<128x192xbf16>
    %c2 = arith.constant 2 : index
    %c0_52 = arith.constant 0 : index
    %c0_53 = arith.constant 0 : index
    %114 = vector.load %arg2[%c2, %c0_52, %c0_53] : memref<4x192x8xbf16, #tpu.memory_space<vmem>>, vector<1x192x8xbf16>
    %115 = vector.shape_cast %114 : vector<1x192x8xbf16> to vector<192x8xbf16>
    %cst_54 = arith.constant dense<0.000000e+00> : vector<128x8xf32>
    %116 = tpu.matmul %113, %115, %cst_54 {dimension_numbers = #tpu.dot_dimension_numbers<[1], [0], [0], [1], [0, 0, 1, 1], [], []>} : vector<128x192xbf16>, vector<192x8xbf16>, vector<128x8xf32> -> vector<128x8xf32>
    %c2_55 = arith.constant 2 : index
    %c0_56 = arith.constant 0 : index
    %c0_57 = arith.constant 0 : index
    %117 = vector.load %arg3[%c2_55, %c0_56, %c0_57] : memref<4x4x8xf32, #tpu.memory_space<vmem>>, vector<1x4x8xf32>
    %118 = vector.shape_cast %117 : vector<1x4x8xf32> to vector<4x8xf32>
    %119 = vector.extract_strided_slice %118 {offsets = [0, 0], sizes = [1, 8], strides = [1, 1]} : vector<4x8xf32> to vector<1x8xf32>
    %120 = vector.broadcast %119 : vector<1x8xf32> to vector<128x8xf32>
    %121 = arith.addf %116, %120 : vector<128x8xf32>
    %cst_58 = arith.constant dense<0.000000e+00> : vector<8xf32>
    %122 = vector.multi_reduction <add>, %121, %cst_58 [0] : vector<128x8xf32> to vector<8xf32>
    %123 = vector.shape_cast %122 : vector<8xf32> to vector<1x8xf32>
    %cst_59 = arith.constant 1.280000e+02 : f32
    %124 = vector.broadcast %cst_59 : f32 to vector<1x8xf32>
    %125 = arith.divf %123, %124 : vector<1x8xf32>
    %126 = vector.broadcast %125 : vector<1x8xf32> to vector<128x8xf32>
    %127 = arith.subf %121, %126 : vector<128x8xf32>
    %128 = arith.mulf %127, %127 : vector<128x8xf32>
    %cst_60 = arith.constant dense<0.000000e+00> : vector<8xf32>
    %129 = vector.multi_reduction <add>, %128, %cst_60 [0] : vector<128x8xf32> to vector<8xf32>
    %130 = vector.shape_cast %129 : vector<8xf32> to vector<1x8xf32>
    %cst_61 = arith.constant 1.280000e+02 : f32
    %131 = vector.broadcast %cst_61 : f32 to vector<1x8xf32>
    %132 = arith.divf %130, %131 : vector<1x8xf32>
    %cst_62 = arith.constant 9.99999974E-6 : f32
    %133 = vector.broadcast %cst_62 : f32 to vector<1x8xf32>
    %134 = arith.addf %132, %133 : vector<1x8xf32>
    %135 = math.rsqrt %134 : vector<1x8xf32>
    %136 = vector.broadcast %135 : vector<1x8xf32> to vector<128x8xf32>
    %137 = arith.mulf %127, %136 : vector<128x8xf32>
    %138 = vector.extract_strided_slice %118 {offsets = [1, 0], sizes = [1, 8], strides = [1, 1]} : vector<4x8xf32> to vector<1x8xf32>
    %139 = vector.broadcast %138 : vector<1x8xf32> to vector<128x8xf32>
    %140 = arith.mulf %137, %139 : vector<128x8xf32>
    %141 = vector.extract_strided_slice %118 {offsets = [2, 0], sizes = [1, 8], strides = [1, 1]} : vector<4x8xf32> to vector<1x8xf32>
    %142 = vector.broadcast %141 : vector<1x8xf32> to vector<128x8xf32>
    %143 = arith.addf %140, %142 : vector<128x8xf32>
    %cst_63 = arith.constant 0.000000e+00 : f32
    %144 = vector.broadcast %cst_63 : f32 to vector<128x8xf32>
    %145 = arith.cmpf oge, %143, %144 : vector<128x8xf32>
    %146 = vector.extract_strided_slice %118 {offsets = [3, 0], sizes = [1, 8], strides = [1, 1]} : vector<4x8xf32> to vector<1x8xf32>
    %147 = vector.broadcast %146 : vector<1x8xf32> to vector<128x8xf32>
    %148 = arith.mulf %147, %143 : vector<128x8xf32>
    %149 = arith.select %145, %143, %148 : vector<128x8xi1>, vector<128x8xf32>
    %150 = vector.shape_cast %149 : vector<128x8xf32> to vector<8x16x8xf32>
    %c8_64 = arith.constant 8 : index
    %c1_65 = arith.constant 1 : index
    %c0_66 = arith.constant 0 : index
    %151 = vector.load %arg10[%c8_64, %c1_65, %c0_66] : memref<16x18x32xf32, #tpu.memory_space<vmem>>, vector<8x16x8xf32>
    tpu.vector_store %arg10[%c8_64, %c1_65, %c0_66], %150 {strides = array<i32>} : memref<16x18x32xf32, #tpu.memory_space<vmem>>, vector<8x16x8xf32>,
    %c0_67 = arith.constant 0 : index
    %c0_68 = arith.constant 0 : index
    %c0_69 = arith.constant 0 : index
    %152 = vector.load %arg10[%c0_67, %c0_68, %c0_69] : memref<16x18x32xf32, #tpu.memory_space<vmem>>, vector<8x18x32xf32>
    %153 = vector.extract_strided_slice %152 {offsets = [0, 0, 0], sizes = [8, 16, 32], strides = [1, 1, 1]} : vector<8x18x32xf32> to vector<8x16x32xf32>
    %154 = vector.extract_strided_slice %152 {offsets = [0, 1, 0], sizes = [8, 16, 32], strides = [1, 1, 1]} : vector<8x18x32xf32> to vector<8x16x32xf32>
    %155 = vector.extract_strided_slice %152 {offsets = [0, 2, 0], sizes = [8, 16, 32], strides = [1, 1, 1]} : vector<8x18x32xf32> to vector<8x16x32xf32>
    %c8_70 = arith.constant 8 : index
    %c0_71 = arith.constant 0 : index
    %c0_72 = arith.constant 0 : index
    %156 = vector.load %arg10[%c8_70, %c0_71, %c0_72] : memref<16x18x32xf32, #tpu.memory_space<vmem>>, vector<8x18x32xf32>
    %157 = vector.extract_strided_slice %156 {offsets = [0, 0, 0], sizes = [8, 16, 32], strides = [1, 1, 1]} : vector<8x18x32xf32> to vector<8x16x32xf32>
    %158 = vector.extract_strided_slice %156 {offsets = [0, 1, 0], sizes = [8, 16, 32], strides = [1, 1, 1]} : vector<8x18x32xf32> to vector<8x16x32xf32>
    %159 = vector.extract_strided_slice %156 {offsets = [0, 2, 0], sizes = [8, 16, 32], strides = [1, 1, 1]} : vector<8x18x32xf32> to vector<8x16x32xf32>
    %160 = tpu.concatenate %153, %154, %155, %157, %158, %159 in 2 : vector<8x16x32xf32>, vector<8x16x32xf32>, vector<8x16x32xf32>, vector<8x16x32xf32>, vector<8x16x32xf32>, vector<8x16x32xf32> -> vector<8x16x192xf32>
    %161 = vector.shape_cast %160 : vector<8x16x192xf32> to vector<128x192xf32>
    %162 = arith.truncf %161 : vector<128x192xf32> to vector<128x192xbf16>
    %c3 = arith.constant 3 : index
    %c0_73 = arith.constant 0 : index
    %c0_74 = arith.constant 0 : index
    %163 = vector.load %arg2[%c3, %c0_73, %c0_74] : memref<4x192x8xbf16, #tpu.memory_space<vmem>>, vector<1x192x8xbf16>
    %164 = vector.shape_cast %163 : vector<1x192x8xbf16> to vector<192x8xbf16>
    %cst_75 = arith.constant dense<0.000000e+00> : vector<128x8xf32>
    %165 = tpu.matmul %162, %164, %cst_75 {dimension_numbers = #tpu.dot_dimension_numbers<[1], [0], [0], [1], [0, 0, 1, 1], [], []>} : vector<128x192xbf16>, vector<192x8xbf16>, vector<128x8xf32> -> vector<128x8xf32>
    %c3_76 = arith.constant 3 : index
    %c0_77 = arith.constant 0 : index
    %c0_78 = arith.constant 0 : index
    %166 = vector.load %arg3[%c3_76, %c0_77, %c0_78] : memref<4x4x8xf32, #tpu.memory_space<vmem>>, vector<1x4x8xf32>
    %167 = vector.shape_cast %166 : vector<1x4x8xf32> to vector<4x8xf32>
    %168 = vector.extract_strided_slice %167 {offsets = [0, 0], sizes = [1, 8], strides = [1, 1]} : vector<4x8xf32> to vector<1x8xf32>
    %169 = vector.broadcast %168 : vector<1x8xf32> to vector<128x8xf32>
    %170 = arith.addf %165, %169 : vector<128x8xf32>
    %cst_79 = arith.constant dense<0.000000e+00> : vector<8xf32>
    %171 = vector.multi_reduction <add>, %170, %cst_79 [0] : vector<128x8xf32> to vector<8xf32>
    %172 = vector.shape_cast %171 : vector<8xf32> to vector<1x8xf32>
    %cst_80 = arith.constant 1.280000e+02 : f32
    %173 = vector.broadcast %cst_80 : f32 to vector<1x8xf32>
    %174 = arith.divf %172, %173 : vector<1x8xf32>
    %175 = vector.broadcast %174 : vector<1x8xf32> to vector<128x8xf32>
    %176 = arith.subf %170, %175 : vector<128x8xf32>
    %177 = arith.mulf %176, %176 : vector<128x8xf32>
    %cst_81 = arith.constant dense<0.000000e+00> : vector<8xf32>
    %178 = vector.multi_reduction <add>, %177, %cst_81 [0] : vector<128x8xf32> to vector<8xf32>
    %179 = vector.shape_cast %178 : vector<8xf32> to vector<1x8xf32>
    %cst_82 = arith.constant 1.280000e+02 : f32
    %180 = vector.broadcast %cst_82 : f32 to vector<1x8xf32>
    %181 = arith.divf %179, %180 : vector<1x8xf32>
    %cst_83 = arith.constant 9.99999974E-6 : f32
    %182 = vector.broadcast %cst_83 : f32 to vector<1x8xf32>
    %183 = arith.addf %181, %182 : vector<1x8xf32>
    %184 = math.rsqrt %183 : vector<1x8xf32>
    %185 = vector.broadcast %184 : vector<1x8xf32> to vector<128x8xf32>
    %186 = arith.mulf %176, %185 : vector<128x8xf32>
    %187 = vector.extract_strided_slice %167 {offsets = [1, 0], sizes = [1, 8], strides = [1, 1]} : vector<4x8xf32> to vector<1x8xf32>
    %188 = vector.broadcast %187 : vector<1x8xf32> to vector<128x8xf32>
    %189 = arith.mulf %186, %188 : vector<128x8xf32>
    %190 = vector.extract_strided_slice %167 {offsets = [2, 0], sizes = [1, 8], strides = [1, 1]} : vector<4x8xf32> to vector<1x8xf32>
    %191 = vector.broadcast %190 : vector<1x8xf32> to vector<128x8xf32>
    %192 = arith.addf %189, %191 : vector<128x8xf32>
    %cst_84 = arith.constant 0.000000e+00 : f32
    %193 = vector.broadcast %cst_84 : f32 to vector<128x8xf32>
    %194 = arith.cmpf oge, %192, %193 : vector<128x8xf32>
    %195 = vector.extract_strided_slice %167 {offsets = [3, 0], sizes = [1, 8], strides = [1, 1]} : vector<4x8xf32> to vector<1x8xf32>
    %196 = vector.broadcast %195 : vector<1x8xf32> to vector<128x8xf32>
    %197 = arith.mulf %196, %192 : vector<128x8xf32>
    %198 = arith.select %194, %192, %197 : vector<128x8xi1>, vector<128x8xf32>
    %199 = vector.shape_cast %198 : vector<128x8xf32> to vector<8x16x8xf32>
    %cst_85 = arith.constant 0.000000e+00 : f32
    %200 = vector.broadcast %cst_85 : f32 to vector<8x1x8xf32>
    %201 = tpu.concatenate %200, %199, %200 in 1 : vector<8x1x8xf32>, vector<8x16x8xf32>, vector<8x1x8xf32> -> vector<8x18x8xf32>
    %202 = vector.extract_strided_slice %201 {offsets = [0, 0, 0], sizes = [8, 16, 8], strides = [1, 1, 1]} : vector<8x18x8xf32> to vector<8x16x8xf32>
    %203 = vector.extract_strided_slice %201 {offsets = [0, 1, 0], sizes = [8, 16, 8], strides = [1, 1, 1]} : vector<8x18x8xf32> to vector<8x16x8xf32>
    %204 = vector.extract_strided_slice %201 {offsets = [0, 2, 0], sizes = [8, 16, 8], strides = [1, 1, 1]} : vector<8x18x8xf32> to vector<8x16x8xf32>
    %205 = tpu.concatenate %202, %203, %204 in 2 : vector<8x16x8xf32>, vector<8x16x8xf32>, vector<8x16x8xf32> -> vector<8x16x24xf32>
    %206 = vector.shape_cast %205 : vector<8x16x24xf32> to vector<128x24xf32>
    %207 = arith.truncf %206 : vector<128x24xf32> to vector<128x24xbf16>
    %c0_86 = arith.constant 0 : index
    %c0_87 = arith.constant 0 : index
    %208 = vector.load %arg4[%c0_86, %c0_87] : memref<24x16xbf16, #tpu.memory_space<vmem>>, vector<24x16xbf16>
    %cst_88 = arith.constant dense<0.000000e+00> : vector<128x16xf32>
    %209 = tpu.matmul %207, %208, %cst_88 {dimension_numbers = #tpu.dot_dimension_numbers<[1], [0], [0], [1], [0, 0, 1, 1], [], []>} : vector<128x24xbf16>, vector<24x16xbf16>, vector<128x16xf32> -> vector<128x16xf32>
    %c0_89 = arith.constant 0 : index
    %c0_90 = arith.constant 0 : index
    %210 = vector.load %arg5[%c0_89, %c0_90] : memref<1x16xf32, #tpu.memory_space<vmem>>, vector<1x16xf32>
    %211 = vector.broadcast %210 : vector<1x16xf32> to vector<128x16xf32>
    %212 = arith.addf %209, %211 : vector<128x16xf32>
    %cst_91 = arith.constant dense<0.000000e+00> : vector<16xf32>
    %213 = vector.multi_reduction <add>, %212, %cst_91 [0] : vector<128x16xf32> to vector<16xf32>
    %214 = vector.shape_cast %213 : vector<16xf32> to vector<1x16xf32>
    %cst_92 = arith.constant 1.280000e+02 : f32
    %215 = vector.broadcast %cst_92 : f32 to vector<1x16xf32>
    %216 = arith.divf %214, %215 : vector<1x16xf32>
    %217 = vector.extract_strided_slice %216 {offsets = [0, 0], sizes = [1, 8], strides = [1, 1]} : vector<1x16xf32> to vector<1x8xf32>
    %218 = vector.extract_strided_slice %216 {offsets = [0, 8], sizes = [1, 8], strides = [1, 1]} : vector<1x16xf32> to vector<1x8xf32>
    %219 = arith.addf %217, %218 : vector<1x8xf32>
    %cst_93 = arith.constant 5.000000e-01 : f32
    %220 = vector.broadcast %cst_93 : f32 to vector<1x8xf32>
    %221 = arith.mulf %220, %219 : vector<1x8xf32>
    %222 = tpu.concatenate %221, %221 in 1 : vector<1x8xf32>, vector<1x8xf32> -> vector<1x16xf32>
    %223 = vector.broadcast %222 : vector<1x16xf32> to vector<128x16xf32>
    %224 = arith.subf %212, %223 : vector<128x16xf32>
    %225 = arith.mulf %224, %224 : vector<128x16xf32>
    %cst_94 = arith.constant dense<0.000000e+00> : vector<16xf32>
    %226 = vector.multi_reduction <add>, %225, %cst_94 [0] : vector<128x16xf32> to vector<16xf32>
    %227 = vector.shape_cast %226 : vector<16xf32> to vector<1x16xf32>
    %cst_95 = arith.constant 1.280000e+02 : f32
    %228 = vector.broadcast %cst_95 : f32 to vector<1x16xf32>
    %229 = arith.divf %227, %228 : vector<1x16xf32>
    %230 = vector.extract_strided_slice %229 {offsets = [0, 0], sizes = [1, 8], strides = [1, 1]} : vector<1x16xf32> to vector<1x8xf32>
    %231 = vector.extract_strided_slice %229 {offsets = [0, 8], sizes = [1, 8], strides = [1, 1]} : vector<1x16xf32> to vector<1x8xf32>
    %232 = arith.addf %230, %231 : vector<1x8xf32>
    %cst_96 = arith.constant 5.000000e-01 : f32
    %233 = vector.broadcast %cst_96 : f32 to vector<1x8xf32>
    %234 = arith.mulf %233, %232 : vector<1x8xf32>
    %235 = tpu.concatenate %234, %234 in 1 : vector<1x8xf32>, vector<1x8xf32> -> vector<1x16xf32>
    %cst_97 = arith.constant 9.99999974E-6 : f32
    %236 = vector.broadcast %cst_97 : f32 to vector<1x16xf32>
    %237 = arith.addf %235, %236 : vector<1x16xf32>
    %238 = math.rsqrt %237 : vector<1x16xf32>
    %239 = vector.broadcast %238 : vector<1x16xf32> to vector<128x16xf32>
    %240 = arith.mulf %224, %239 : vector<128x16xf32>
    %c0_98 = arith.constant 0 : index
    %c0_99 = arith.constant 0 : index
    %241 = vector.load %arg6[%c0_98, %c0_99] : memref<3x16xf32, #tpu.memory_space<vmem>>, vector<1x16xf32>
    %242 = vector.broadcast %241 : vector<1x16xf32> to vector<128x16xf32>
    %243 = arith.mulf %240, %242 : vector<128x16xf32>
    %c1_100 = arith.constant 1 : index
    %c0_101 = arith.constant 0 : index
    %244 = vector.load %arg6[%c1_100, %c0_101] : memref<3x16xf32, #tpu.memory_space<vmem>>, vector<1x16xf32>
    %245 = vector.broadcast %244 : vector<1x16xf32> to vector<128x16xf32>
    %246 = arith.addf %243, %245 : vector<128x16xf32>
    %cst_102 = arith.constant 0.000000e+00 : f32
    %247 = vector.broadcast %cst_102 : f32 to vector<128x16xf32>
    %248 = arith.cmpf oge, %246, %247 : vector<128x16xf32>
    %c2_103 = arith.constant 2 : index
    %c0_104 = arith.constant 0 : index
    %249 = vector.load %arg6[%c2_103, %c0_104] : memref<3x16xf32, #tpu.memory_space<vmem>>, vector<1x16xf32>
    %250 = vector.broadcast %249 : vector<1x16xf32> to vector<128x16xf32>
    %251 = arith.mulf %250, %246 : vector<128x16xf32>
    %252 = arith.select %248, %246, %251 : vector<128x16xi1>, vector<128x16xf32>
    %253 = arith.truncf %252 : vector<128x16xf32> to vector<128x16xbf16>
    %c0_105 = arith.constant 0 : index
    %c0_106 = arith.constant 0 : index
    %c0_107 = arith.constant 0 : index
    %254 = vector.load %arg7[%c0_105, %c0_106, %c0_107] : memref<3x16x1xbf16, #tpu.memory_space<vmem>>, vector<1x16x1xbf16>
    %255 = vector.shape_cast %254 : vector<1x16x1xbf16> to vector<16x1xbf16>
    %cst_108 = arith.constant dense<0.000000e+00> : vector<128x1xf32>
    %256 = tpu.matmul %253, %255, %cst_108 {dimension_numbers = #tpu.dot_dimension_numbers<[1], [0], [0], [1], [0, 0, 1, 1], [], []>} : vector<128x16xbf16>, vector<16x1xbf16>, vector<128x1xf32> -> vector<128x1xf32>
    %c1_109 = arith.constant 1 : index
    %c0_110 = arith.constant 0 : index
    %c0_111 = arith.constant 0 : index
    %257 = vector.load %arg7[%c1_109, %c0_110, %c0_111] : memref<3x16x1xbf16, #tpu.memory_space<vmem>>, vector<1x16x1xbf16>
    %258 = vector.shape_cast %257 : vector<1x16x1xbf16> to vector<16x1xbf16>
    %cst_112 = arith.constant dense<0.000000e+00> : vector<128x1xf32>
    %259 = tpu.matmul %253, %258, %cst_112 {dimension_numbers = #tpu.dot_dimension_numbers<[1], [0], [0], [1], [0, 0, 1, 1], [], []>} : vector<128x16xbf16>, vector<16x1xbf16>, vector<128x1xf32> -> vector<128x1xf32>
    %c2_113 = arith.constant 2 : index
    %c0_114 = arith.constant 0 : index
    %c0_115 = arith.constant 0 : index
    %260 = vector.load %arg7[%c2_113, %c0_114, %c0_115] : memref<3x16x1xbf16, #tpu.memory_space<vmem>>, vector<1x16x1xbf16>
    %261 = vector.shape_cast %260 : vector<1x16x1xbf16> to vector<16x1xbf16>
    %cst_116 = arith.constant dense<0.000000e+00> : vector<128x1xf32>
    %262 = tpu.matmul %253, %261, %cst_116 {dimension_numbers = #tpu.dot_dimension_numbers<[1], [0], [0], [1], [0, 0, 1, 1], [], []>} : vector<128x16xbf16>, vector<16x1xbf16>, vector<128x1xf32> -> vector<128x1xf32>
    %263 = vector.shape_cast %256 : vector<128x1xf32> to vector<8x16x1xf32>
    %264 = vector.shape_cast %259 : vector<128x1xf32> to vector<8x16x1xf32>
    %265 = vector.shape_cast %262 : vector<128x1xf32> to vector<8x16x1xf32>
    %266 = vector.extract_strided_slice %265 {offsets = [0, 1, 0], sizes = [8, 15, 1], strides = [1, 1, 1]} : vector<8x16x1xf32> to vector<8x15x1xf32>
    %cst_117 = arith.constant 0.000000e+00 : f32
    %267 = vector.broadcast %cst_117 : f32 to vector<8x1x1xf32>
    %268 = tpu.concatenate %266, %267 in 1 : vector<8x15x1xf32>, vector<8x1x1xf32> -> vector<8x16x1xf32>
    %c0_118 = arith.constant 0 : index
    %c0_119 = arith.constant 0 : index
    %269 = vector.load %arg8[%c0_118, %c0_119] : memref<1x1xf32, #tpu.memory_space<vmem>>, vector<1x1xf32>
    %270 = vector.shape_cast %269 : vector<1x1xf32> to vector<1x1x1xf32>
    %271 = vector.broadcast %270 : vector<1x1x1xf32> to vector<8x16x1xf32>
    %272 = arith.addf %263, %271 : vector<8x16x1xf32>
    %cst_120 = arith.constant 0.000000e+00 : f32
    %273 = vector.broadcast %cst_120 : f32 to vector<8x16x1xf32>
    %274 = arith.maximumf %272, %273 : vector<8x16x1xf32>
    %275 = arith.addf %264, %268 : vector<8x16x1xf32>
    %276 = vector.shape_cast %269 : vector<1x1xf32> to vector<1x1x1xf32>
    %277 = vector.broadcast %276 : vector<1x1x1xf32> to vector<8x16x1xf32>
    %278 = arith.addf %275, %277 : vector<8x16x1xf32>
    %cst_121 = arith.constant 0.000000e+00 : f32
    %279 = vector.broadcast %cst_121 : f32 to vector<8x16x1xf32>
    %280 = arith.maximumf %278, %279 : vector<8x16x1xf32>
    %281 = tpu.concatenate %274, %280 in 2 : vector<8x16x1xf32>, vector<8x16x1xf32> -> vector<8x16x2xf32>
    %c0_122 = arith.constant 0 : index
    %c0_123 = arith.constant 0 : index
    %c0_124 = arith.constant 0 : index
    %c0_125 = arith.constant 0 : index
    %282 = vector.load %arg9[%c0_122, %c0_123, %c0_124, %c0_125] : memref<1x8x16x2xf32, #tpu.memory_space<vmem>>, vector<1x8x16x2xf32>
    %283 = vector.shape_cast %282 : vector<1x8x16x2xf32> to vector<8x16x2xf32>
    %284 = vector.shape_cast %281 : vector<8x16x2xf32> to vector<1x8x16x2xf32>
    tpu.vector_store %arg9[%c0_122, %c0_123, %c0_124, %c0_125], %284 {strides = array<i32>} : memref<1x8x16x2xf32, #tpu.memory_space<vmem>>, vector<1x8x16x2xf32>,
    return
  }
  func.func @transform_0(%arg0: i32) -> (i32, i32, i32, i32) {
    %c0_i32 = arith.constant 0 : i32
    %c0_i32_0 = arith.constant 0 : i32
    %c0_i32_1 = arith.constant 0 : i32
    %c0_i32_2 = arith.constant 0 : i32
    return %arg0, %c0_i32, %c0_i32_0, %c0_i32_1 : i32, i32, i32, i32
  }
  func.func @transform_1(%arg0: i32) -> (i32, i32, i32) {
    %c0_i32 = arith.constant 0 : i32
    %c0_i32_0 = arith.constant 0 : i32
    %c0_i32_1 = arith.constant 0 : i32
    %c0_i32_2 = arith.constant 0 : i32
    return %c0_i32, %c0_i32_0, %c0_i32_1 : i32, i32, i32
  }
  func.func @transform_2(%arg0: i32) -> (i32, i32, i32) {
    %c0_i32 = arith.constant 0 : i32
    %c0_i32_0 = arith.constant 0 : i32
    %c0_i32_1 = arith.constant 0 : i32
    %c0_i32_2 = arith.constant 0 : i32
    return %c0_i32, %c0_i32_0, %c0_i32_1 : i32, i32, i32
  }
  func.func @transform_3(%arg0: i32) -> (i32, i32) {
    %c0_i32 = arith.constant 0 : i32
    %c0_i32_0 = arith.constant 0 : i32
    %c0_i32_1 = arith.constant 0 : i32
    return %c0_i32, %c0_i32_0 : i32, i32
  }
  func.func @transform_4(%arg0: i32) -> (i32, i32) {
    %c0_i32 = arith.constant 0 : i32
    %c0_i32_0 = arith.constant 0 : i32
    %c0_i32_1 = arith.constant 0 : i32
    return %c0_i32, %c0_i32_0 : i32, i32
  }
  func.func @transform_5(%arg0: i32) -> (i32, i32) {
    %c0_i32 = arith.constant 0 : i32
    %c0_i32_0 = arith.constant 0 : i32
    %c0_i32_1 = arith.constant 0 : i32
    return %c0_i32, %c0_i32_0 : i32, i32
  }
  func.func @transform_6(%arg0: i32) -> (i32, i32, i32) {
    %c0_i32 = arith.constant 0 : i32
    %c0_i32_0 = arith.constant 0 : i32
    %c0_i32_1 = arith.constant 0 : i32
    %c0_i32_2 = arith.constant 0 : i32
    return %c0_i32, %c0_i32_0, %c0_i32_1 : i32, i32, i32
  }
  func.func @transform_7(%arg0: i32) -> (i32, i32) {
    %c0_i32 = arith.constant 0 : i32
    %c0_i32_0 = arith.constant 0 : i32
    %c0_i32_1 = arith.constant 0 : i32
    return %c0_i32, %c0_i32_0 : i32, i32
  }
  func.func @transform_8(%arg0: i32) -> (i32, i32, i32, i32) {
    %c0_i32 = arith.constant 0 : i32
    %c0_i32_0 = arith.constant 0 : i32
    %c0_i32_1 = arith.constant 0 : i32
    %c0_i32_2 = arith.constant 0 : i32
    return %arg0, %c0_i32, %c0_i32_0, %c0_i32_1 : i32, i32, i32, i32
  }
}

</mosaic_0001>

<llo_original>
// kernel: mapping_decoder_forward.1
$region0: #{mapping_decoder_forward.1}
  #allocation0 [shape = 'u32[]', space=smem, size = 0x4, offset = 0x4, fixed_abs, tag = 'smem constant byte address 0x4 - core index']
  #allocation1 [shape = 'u32[144,128]{1,0:T(1,128)}', space=vmem, size = 0x12000, scoped, tag = 'internal scratch']
  #allocation2 [shape = 'f32[16,18,32]{2,1,0:T(8,128)}', space=vmem, size = 0x30000, scoped, tag = 'scratch operand']
  #allocation3 [shape = 'f32[1,1]{1,0:T(1,128)S(1)}', space=vmem, size = 0x200, scoped, tag = 'scoped memory for mapping_decoder_forward.1']
  %s0 = inlined_call_operand.vmem [shape: f32[2,8,16,8], index: 0, kind: input, shape index: {}]
  %s1 = inlined_call_operand.vmem [shape: bf16[4,192,8], index: 1, kind: input, shape index: {}]
  %s2 = inlined_call_operand.vmem [shape: f32[4,4,8], index: 2, kind: input, shape index: {}]
  %s3 = inlined_call_operand.vmem [shape: bf16[24,16], index: 3, kind: input, shape index: {}]
  %s4 = inlined_call_operand.vmem [shape: f32[1,16], index: 4, kind: input, shape index: {}]
  %s5 = inlined_call_operand.vmem [shape: f32[3,16], index: 5, kind: input, shape index: {}]
  %s6 = inlined_call_operand.vmem [shape: bf16[3,16,1], index: 6, kind: input, shape index: {}]
  %s7 = inlined_call_operand.<no memory space> [shape: f32[1,1], index: 7, kind: input, shape index: {}]
  %s8 = inlined_call_operand.vmem [shape: f32[2,8,16,2], index: 8, kind: output, shape index: {}]
  %s9 = sld [smem:[#allocation0]]
  $region65: #{mapping_decoder_forward.1} parent=0
    _
  %s11 = ssub.s32 1, %s9
  %s12 = scalar_select 0, %s11, %s9
  %v13 = vstv %s7
  %14 = vst [vmem:[#allocation3] sm:$0x1] %v13
  loop: start=0, step=1, limit=4
  $region2: #{mapping_decoder_forward.1} parent=0 // loop_pre_header
    _
  $region3: #{mapping_decoder_forward.1} parent=0 // loop_header
    %s16 = sphi 0, %s20
    %p17 = scmp.ge.s32.totalorder %s16, 4
    %s26 = sphi 0, %s28
    %s29 = sphi 0, %s26
    %s30 = sphi 0, %s29
    %s46 = sphi 0, %s30
    %s50 = sphi 0, %s50
    %s52 = sphi 0, %s50
    %s53 = sphi 0, %s52
    %s67 = sphi 0, %s53
    %s71 = sphi 0, %s71
    %s73 = sphi 0, %s71
    %s74 = sphi 0, %s73
    %s88 = sphi 0, %s74
    %s92 = sphi 0, %s92
    %s94 = sphi 0, %s92
    %s95 = sphi 0, %s94
    %s109 = sphi 0, %s95
    %s113 = sphi 0, %s113
    %s115 = sphi 0, %s113
    %s116 = sphi 0, %s115
    %s130 = sphi 0, %s116
    %s134 = sphi 0, %s134
    %s136 = sphi 0, %s134
    %s137 = sphi 0, %s136
    %s151 = sphi 0, %s137
    %s155 = sphi 0, %s155
    %s157 = sphi 0, %s155
    %s158 = sphi 0, %s157
    %s172 = sphi 0, %s158
    %s176 = sphi 0, %s176
    %s178 = sphi 0, %s176
    %s179 = sphi 0, %s178
    %s193 = sphi 0, %s179
    %s199 = sphi 0, %s201
    %s202 = sphi 0, %s199
    %s203 = sphi 0, %s202
    %s219 = sphi 0, %s203
  $region4: #{mapping_decoder_forward.1} parent=0 // loop_header_branch
    %19 = sbr.rel (%p17) target = $region8
  $region5: #{mapping_decoder_forward.1} parent=0 // loop_body
    %s21 = ssub.s32 %s16, 1
    %s22 = ssub.s32 %s16, 2
    %s23 = sadd.s32 %s16, 1
    %s24 = ssub.s32 %s16, %s23
    %p25 = scmp.eq.s32.totalorder %s24, 0
    %s27 = sadd.s32 %s26, 1
    %s28 = scalar_select %p25, %s26, %s27
    %p31 = pneg %p25
    %p32 = scmp.eq.s32.totalorder %s16, 1
    %p33 = por %p31, %p32
    %p34 = scmp.ne.s32.totalorder %s26, %s29
    %p35 = scmp.eq.s32.totalorder %s16, 0
    %p36 = por %p34, %p35
    %p37 = scmp.ne.s32.totalorder %s26, %s29
    %p38 = scmp.eq.s32.totalorder %s21, 1
    %p39 = por %p37, %p38
    %p40 = scmp.ne.s32.totalorder %s29, %s30
    %p41 = scmp.eq.s32.totalorder %s21, 0
    %p42 = por %p40, %p41
    %p43 = scmp.ne.s32.totalorder %s29, %s30
    %p44 = scmp.eq.s32.totalorder %s22, 1
    %p45 = por %p43, %p44
    %p47 = scmp.ne.s32.totalorder %s30, %s46
    %p48 = scmp.eq.s32.totalorder %s22, 0
    %p49 = por %p47, %p48
    %s51 = sadd.s32 %s50, 1
    %p54 = scmp.eq.s32.totalorder %s16, 1
    %p55 = scmp.ne.s32.totalorder %s50, %s52
    %p56 = scmp.eq.s32.totalorder %s16, 0
    %p57 = por %p55, %p56
    %p58 = scmp.ne.s32.totalorder %s50, %s52
    %p59 = scmp.eq.s32.totalorder %s21, 1
    %p60 = por %p58, %p59
    %p61 = scmp.ne.s32.totalorder %s52, %s53
    %p62 = scmp.eq.s32.totalorder %s21, 0
    %p63 = por %p61, %p62
    %p64 = scmp.ne.s32.totalorder %s52, %s53
    %p65 = scmp.eq.s32.totalorder %s22, 1
    %p66 = por %p64, %p65
    %p68 = scmp.ne.s32.totalorder %s53, %s67
    %p69 = scmp.eq.s32.totalorder %s22, 0
    %p70 = por %p68, %p69
    %s72 = sadd.s32 %s71, 1
    %p75 = scmp.eq.s32.totalorder %s16, 1
    %p76 = scmp.ne.s32.totalorder %s71, %s73
    %p77 = scmp.eq.s32.totalorder %s16, 0
    %p78 = por %p76, %p77
    %p79 = scmp.ne.s32.totalorder %s71, %s73
    %p80 = scmp.eq.s32.totalorder %s21, 1
    %p81 = por %p79, %p80
    %p82 = scmp.ne.s32.totalorder %s73, %s74
    %p83 = scmp.eq.s32.totalorder %s21, 0
    %p84 = por %p82, %p83
    %p85 = scmp.ne.s32.totalorder %s73, %s74
    %p86 = scmp.eq.s32.totalorder %s22, 1
    %p87 = por %p85, %p86
    %p89 = scmp.ne.s32.totalorder %s74, %s88
    %p90 = scmp.eq.s32.totalorder %s22, 0
    %p91 = por %p89, %p90
    %s93 = sadd.s32 %s92, 1
    %p96 = scmp.eq.s32.totalorder %s16, 1
    %p97 = scmp.ne.s32.totalorder %s92, %s94
    %p98 = scmp.eq.s32.totalorder %s16, 0
    %p99 = por %p97, %p98
    %p100 = scmp.ne.s32.totalorder %s92, %s94
    %p101 = scmp.eq.s32.totalorder %s21, 1
    %p102 = por %p100, %p101
    %p103 = scmp.ne.s32.totalorder %s94, %s95
    %p104 = scmp.eq.s32.totalorder %s21, 0
    %p105 = por %p103, %p104
    %p106 = scmp.ne.s32.totalorder %s94, %s95
    %p107 = scmp.eq.s32.totalorder %s22, 1
    %p108 = por %p106, %p107
    %p110 = scmp.ne.s32.totalorder %s95, %s109
    %p111 = scmp.eq.s32.totalorder %s22, 0
    %p112 = por %p110, %p111
    %s114 = sadd.s32 %s113, 1
    %p117 = scmp.eq.s32.totalorder %s16, 1
    %p118 = scmp.ne.s32.totalorder %s113, %s115
    %p119 = scmp.eq.s32.totalorder %s16, 0
    %p120 = por %p118, %p119
    %p121 = scmp.ne.s32.totalorder %s113, %s115
    %p122 = scmp.eq.s32.totalorder %s21, 1
    %p123 = por %p121, %p122
    %p124 = scmp.ne.s32.totalorder %s115, %s116
    %p125 = scmp.eq.s32.totalorder %s21, 0
    %p126 = por %p124, %p125
    %p127 = scmp.ne.s32.totalorder %s115, %s116
    %p128 = scmp.eq.s32.totalorder %s22, 1
    %p129 = por %p127, %p128
    %p131 = scmp.ne.s32.totalorder %s116, %s130
    %p132 = scmp.eq.s32.totalorder %s22, 0
    %p133 = por %p131, %p132
    %s135 = sadd.s32 %s134, 1
    %p138 = scmp.eq.s32.totalorder %s16, 1
    %p139 = scmp.ne.s32.totalorder %s134, %s136
    %p140 = scmp.eq.s32.totalorder %s16, 0
    %p141 = por %p139, %p140
    %p142 = scmp.ne.s32.totalorder %s134, %s136
    %p143 = scmp.eq.s32.totalorder %s21, 1
    %p144 = por %p142, %p143
    %p145 = scmp.ne.s32.totalorder %s136, %s137
    %p146 = scmp.eq.s32.totalorder %s21, 0
    %p147 = por %p145, %p146
    %p148 = scmp.ne.s32.totalorder %s136, %s137
    %p149 = scmp.eq.s32.totalorder %s22, 1
    %p150 = por %p148, %p149
    %p152 = scmp.ne.s32.totalorder %s137, %s151
    %p153 = scmp.eq.s32.totalorder %s22, 0
    %p154 = por %p152, %p153
    %s156 = sadd.s32 %s155, 1
    %p159 = scmp.eq.s32.totalorder %s16, 1
    %p160 = scmp.ne.s32.totalorder %s155, %s157
    %p161 = scmp.eq.s32.totalorder %s16, 0
    %p162 = por %p160, %p161
    %p163 = scmp.ne.s32.totalorder %s155, %s157
    %p164 = scmp.eq.s32.totalorder %s21, 1
    %p165 = por %p163, %p164
    %p166 = scmp.ne.s32.totalorder %s157, %s158
    %p167 = scmp.eq.s32.totalorder %s21, 0
    %p168 = por %p166, %p167
    %p169 = scmp.ne.s32.totalorder %s157, %s158
    %p170 = scmp.eq.s32.totalorder %s22, 1
    %p171 = por %p169, %p170
    %p173 = scmp.ne.s32.totalorder %s158, %s172
    %p174 = scmp.eq.s32.totalorder %s22, 0
    %p175 = por %p173, %p174
    %s177 = sadd.s32 %s176, 1
    %p180 = scmp.eq.s32.totalorder %s16, 1
    %p181 = scmp.ne.s32.totalorder %s176, %s178
    %p182 = scmp.eq.s32.totalorder %s16, 0
    %p183 = por %p181, %p182
    %p184 = scmp.ne.s32.totalorder %s176, %s178
    %p185 = scmp.eq.s32.totalorder %s21, 1
    %p186 = por %p184, %p185
    %p187 = scmp.ne.s32.totalorder %s178, %s179
    %p188 = scmp.eq.s32.totalorder %s21, 0
    %p189 = por %p187, %p188
    %p190 = scmp.ne.s32.totalorder %s178, %s179
    %p191 = scmp.eq.s32.totalorder %s22, 1
    %p192 = por %p190, %p191
    %p194 = scmp.ne.s32.totalorder %s179, %s193
    %p195 = scmp.eq.s32.totalorder %s22, 0
    %p196 = por %p194, %p195
    %s197 = ssub.s32 %s16, %s23
    %p198 = scmp.eq.s32.totalorder %s197, 0
    %s200 = sadd.s32 %s199, 1
    %s201 = scalar_select %p198, %s199, %s200
    %p204 = pneg %p198
    %p205 = scmp.eq.s32.totalorder %s16, 1
    %p206 = por %p204, %p205
    %p207 = scmp.ne.s32.totalorder %s199, %s202
    %p208 = scmp.eq.s32.totalorder %s16, 0
    %p209 = por %p207, %p208
    %p210 = scmp.ne.s32.totalorder %s199, %s202
    %p211 = scmp.eq.s32.totalorder %s21, 1
    %p212 = por %p210, %p211
    %p213 = scmp.ne.s32.totalorder %s202, %s203
    %p214 = scmp.eq.s32.totalorder %s21, 0
    %p215 = por %p213, %p214
    %p216 = scmp.ne.s32.totalorder %s202, %s203
    %p217 = scmp.eq.s32.totalorder %s22, 1
    %p218 = por %p216, %p217
    %p220 = scmp.ne.s32.totalorder %s203, %s219
    %p221 = scmp.eq.s32.totalorder %s22, 0
    %p222 = por %p220, %p221
    %p223 = scmp.le.s32.totalorder 1, %s16
    %p224 = scmp.lt.s32.totalorder %s16, 3
    %p225 = pnand %p223, %p224
    %p226 = pneg %p225
    // Predicated region
    $region9: #{mapping_decoder_forward.1} parent=5 // pred_check
      _
    $region10: #{mapping_decoder_forward.1} parent=5 // pred_check_branch
      %228 = sbr.rel (%p225) target = $region12
    $region11: #{mapping_decoder_forward.1} parent=5 // pred_region
      %s229 = ssub.s32 %s16, 1
      // Predicated region
      $region13: #{mapping_decoder_forward.1} parent=11 // pred_check
        %p230 = pneg %p63
      $region14: #{mapping_decoder_forward.1} parent=11 // pred_check_branch
        %232 = sbr.rel (%p230) target = $region16
      $region15: #{mapping_decoder_forward.1} parent=11 // pred_region
        _
      $region16: #{mapping_decoder_forward.1} parent=11 // pred_fallthru
        _
      // Predicated region
      $region17: #{mapping_decoder_forward.1} parent=11 // pred_check
        %p233 = pneg %p84
      $region18: #{mapping_decoder_forward.1} parent=11 // pred_check_branch
        %235 = sbr.rel (%p233) target = $region20
      $region19: #{mapping_decoder_forward.1} parent=11 // pred_region
        _
      $region20: #{mapping_decoder_forward.1} parent=11 // pred_fallthru
        _
      // Predicated region
      $region21: #{mapping_decoder_forward.1} parent=11 // pred_check
        %p236 = pneg %p105
      $region22: #{mapping_decoder_forward.1} parent=11 // pred_check_branch
        %238 = sbr.rel (%p236) target = $region24
      $region23: #{mapping_decoder_forward.1} parent=11 // pred_region
        _
      $region24: #{mapping_decoder_forward.1} parent=11 // pred_fallthru
        _
      // Predicated region
      $region25: #{mapping_decoder_forward.1} parent=11 // pred_check
        %p239 = pneg %p126
      $region26: #{mapping_decoder_forward.1} parent=11 // pred_check_branch
        %241 = sbr.rel (%p239) target = $region28
      $region27: #{mapping_decoder_forward.1} parent=11 // pred_region
        _
      $region28: #{mapping_decoder_forward.1} parent=11 // pred_fallthru
        _
      // Predicated region
      $region29: #{mapping_decoder_forward.1} parent=11 // pred_check
        %p242 = pneg %p147
      $region30: #{mapping_decoder_forward.1} parent=11 // pred_check_branch
        %244 = sbr.rel (%p242) target = $region32
      $region31: #{mapping_decoder_forward.1} parent=11 // pred_region
        _
      $region32: #{mapping_decoder_forward.1} parent=11 // pred_fallthru
        _
      // Predicated region
      $region33: #{mapping_decoder_forward.1} parent=11 // pred_check
        %p245 = pneg %p168
      $region34: #{mapping_decoder_forward.1} parent=11 // pred_check_branch
        %247 = sbr.rel (%p245) target = $region36
      $region35: #{mapping_decoder_forward.1} parent=11 // pred_region
        _
      $region36: #{mapping_decoder_forward.1} parent=11 // pred_fallthru
        _
      // Predicated region
      $region37: #{mapping_decoder_forward.1} parent=11 // pred_check
        %p248 = pneg %p189
      $region38: #{mapping_decoder_forward.1} parent=11 // pred_check_branch
        %250 = sbr.rel (%p248) target = $region40
      $region39: #{mapping_decoder_forward.1} parent=11 // pred_region
        _
      $region40: #{mapping_decoder_forward.1} parent=11 // pred_fallthru
        _
    $region12: #{mapping_decoder_forward.1} parent=5 // pred_fallthru
      _
    %p251 = scmp.lt.s32.totalorder %s16, 2
    // Predicated region
    $region41: #{mapping_decoder_forward.1} parent=5 // pred_check
      %p252 = pneg %p251
    $region42: #{mapping_decoder_forward.1} parent=5 // pred_check_branch
      %254 = sbr.rel (%p252) target = $region44
    $region43: #{mapping_decoder_forward.1} parent=5 // pred_region
      // Predicated region
      $region45: #{mapping_decoder_forward.1} parent=43 // pred_check
        %p255 = pneg %p36
      $region46: #{mapping_decoder_forward.1} parent=43 // pred_check_branch
        %257 = sbr.rel (%p255) target = $region48
      $region47: #{mapping_decoder_forward.1} parent=43 // pred_region
        %p258 = scmp.lt.s32.totalorder %s16, 1
        %s259 = scalar_select %p258, %s16, 1
        %s260 = smul.addr %s259, 16
        %s261 = smul.addr %s260, 8
        %s262 = scalar_lea.vmem %s0, %s261
      $region48: #{mapping_decoder_forward.1} parent=43 // pred_fallthru
        _
    $region44: #{mapping_decoder_forward.1} parent=5 // pred_fallthru
      _
    %p263 = scmp.le.s32.totalorder 1, %s16
    %p264 = scmp.lt.s32.totalorder %s16, 3
    %p265 = pnand %p263, %p264
    %p266 = pneg %p265
    // Predicated region
    $region49: #{mapping_decoder_forward.1} parent=5 // pred_check
      _
    $region50: #{mapping_decoder_forward.1} parent=5 // pred_check_branch
      %268 = sbr.rel (%p265) target = $region52
    $region51: #{mapping_decoder_forward.1} parent=5 // pred_region
      %s269 = ssub.s32 %s16, 1
      %p270 = scmp.lt.s32.totalorder %s21, 1
      %s271 = scalar_select %p270, %s21, 1
      %s272 = smul.addr %s271, 16
      %s273 = smul.addr %s272, 8
      %s274 = scalar_lea.vmem %s0, %s273
      %p275 = pneg %p42
      %p276 = pneg %p39
      %p277 = pneg %p63
      %p278 = pneg %p60
      %p279 = pneg %p84
      %p280 = pneg %p81
      %p281 = pneg %p105
      %p282 = pneg %p102
      %p283 = pneg %p126
      %p284 = pneg %p123
      %p285 = pneg %p147
      %p286 = pneg %p144
      %p287 = pneg %p168
      %p288 = pneg %p165
      %p289 = pneg %p189
      %p290 = pneg %p186
      %p291 = pneg %p215
      %p292 = pneg %p212
      %p293 = scmp.lt.s32.totalorder %s21, 1
      %s294 = scalar_select %p293, %s21, 1
      %s295 = smul.addr %s294, 16
      %s296 = smul.addr %s295, 8
      %s297 = scalar_lea.vmem %s8, %s296
      %p298 = scmp.lt.s32.totalorder %s21, 1
      %s299 = scalar_select %p298, %s21, 1
      %s300 = smul.addr %s299, 16
      %s301 = smul.addr %s300, 8
      %s302 = scalar_lea.vmem %s0, %s301
      %p303 = scmp.lt.s32.totalorder %s21, 1
      %s304 = scalar_select %p303, %s21, 1
      %s305 = smul.addr %s304, 16
      %s306 = smul.addr %s305, 8
      %s307 = scalar_lea.vmem %s8, %s306
      %vm309 = vcmask 261120
      %310 = vst.msk [vmem:[#allocation2] sm:$0xff] %vm309, 0.0
      %311 = vst.msk [vmem:[#allocation2 + $0x8] sm:$0xff] %vm309, 0.0
      %vm312 = vcmask 254976
      %313 = vst.msk [vmem:[#allocation2 + $0x10] sm:$0x3] %vm312, 0.0
      %314 = vst.msk [vmem:[#allocation2 + $0x18] sm:$0xff] %vm309, 0.0
      %315 = vst.msk [vmem:[#allocation2 + $0x20] sm:$0xff] %vm309, 0.0
      %316 = vst.msk [vmem:[#allocation2 + $0x28] sm:$0x3] %vm312, 0.0
      %317 = vst.msk [vmem:[#allocation2 + $0x30] sm:$0xff] %vm309, 0.0
      %318 = vst.msk [vmem:[#allocation2 + $0x38] sm:$0xff] %vm309, 0.0
      %319 = vst.msk [vmem:[#allocation2 + $0x40] sm:$0x3] %vm312, 0.0
      %320 = vst.msk [vmem:[#allocation2 + $0x48] sm:$0xff] %vm309, 0.0
      %321 = vst.msk [vmem:[#allocation2 + $0x50] sm:$0xff] %vm309, 0.0
      %322 = vst.msk [vmem:[#allocation2 + $0x58] sm:$0x3] %vm312, 0.0
      %323 = vst.msk [vmem:[#allocation2 + $0x60] sm:$0xff] %vm309, 0.0
      %324 = vst.msk [vmem:[#allocation2 + $0x68] sm:$0xff] %vm309, 0.0
      %325 = vst.msk [vmem:[#allocation2 + $0x70] sm:$0x3] %vm312, 0.0
      %326 = vst.msk [vmem:[#allocation2 + $0x78] sm:$0xff] %vm309, 0.0
      %327 = vst.msk [vmem:[#allocation2 + $0x80] sm:$0xff] %vm309, 0.0
      %328 = vst.msk [vmem:[#allocation2 + $0x88] sm:$0x3] %vm312, 0.0
      %329 = vst.msk [vmem:[#allocation2 + $0x90] sm:$0xff] %vm309, 0.0
      %330 = vst.msk [vmem:[#allocation2 + $0x98] sm:$0xff] %vm309, 0.0
      %331 = vst.msk [vmem:[#allocation2 + $0xa0] sm:$0x3] %vm312, 0.0
      %332 = vst.msk [vmem:[#allocation2 + $0xa8] sm:$0xff] %vm309, 0.0
      %333 = vst.msk [vmem:[#allocation2 + $0xb0] sm:$0xff] %vm309, 0.0
      %334 = vst.msk [vmem:[#allocation2 + $0xb8] sm:$0x3] %vm312, 0.0
      %335 = vst.msk [vmem:[#allocation2 + $0xc0] sm:$0xff] %vm309, 0.0
      %336 = vst.msk [vmem:[#allocation2 + $0xc8] sm:$0xff] %vm309, 0.0
      %337 = vst.msk [vmem:[#allocation2 + $0xd0] sm:$0x3] %vm312, 0.0
      %338 = vst.msk [vmem:[#allocation2 + $0xd8] sm:$0xff] %vm309, 0.0
      %339 = vst.msk [vmem:[#allocation2 + $0xe0] sm:$0xff] %vm309, 0.0
      %340 = vst.msk [vmem:[#allocation2 + $0xe8] sm:$0x3] %vm312, 0.0
      %341 = vst.msk [vmem:[#allocation2 + $0xf0] sm:$0xff] %vm309, 0.0
      %342 = vst.msk [vmem:[#allocation2 + $0xf8] sm:$0xff] %vm309, 0.0
      %343 = vst.msk [vmem:[#allocation2 + $0x100] sm:$0x3] %vm312, 0.0
      %344 = vst.msk [vmem:[#allocation2 + $0x108] sm:$0xff] %vm309, 0.0
      %345 = vst.msk [vmem:[#allocation2 + $0x110] sm:$0xff] %vm309, 0.0
      %346 = vst.msk [vmem:[#allocation2 + $0x118] sm:$0x3] %vm312, 0.0
      %347 = vst.msk [vmem:[#allocation2 + $0x120] sm:$0xff] %vm309, 0.0
      %348 = vst.msk [vmem:[#allocation2 + $0x128] sm:$0xff] %vm309, 0.0
      %349 = vst.msk [vmem:[#allocation2 + $0x130] sm:$0x3] %vm312, 0.0
      %350 = vst.msk [vmem:[#allocation2 + $0x138] sm:$0xff] %vm309, 0.0
      %351 = vst.msk [vmem:[#allocation2 + $0x140] sm:$0xff] %vm309, 0.0
      %352 = vst.msk [vmem:[#allocation2 + $0x148] sm:$0x3] %vm312, 0.0
      %353 = vst.msk [vmem:[#allocation2 + $0x150] sm:$0xff] %vm309, 0.0
      %354 = vst.msk [vmem:[#allocation2 + $0x158] sm:$0xff] %vm309, 0.0
      %355 = vst.msk [vmem:[#allocation2 + $0x160] sm:$0x3] %vm312, 0.0
      %356 = vst.msk [vmem:[#allocation2 + $0x168] sm:$0xff] %vm309, 0.0
      %357 = vst.msk [vmem:[#allocation2 + $0x170] sm:$0xff] %vm309, 0.0
      %358 = vst.msk [vmem:[#allocation2 + $0x178] sm:$0x3] %vm312, 0.0
      %v359 = vld [vmem:[%s302] sm:$0xff]
      %v360 = vld [vmem:[%s302 + $0x8] sm:$0xff]
      %v361 = vld [vmem:[%s302 + $0x10] sm:$0xff]
      %v362 = vld [vmem:[%s302 + $0x18] sm:$0xff]
      %v363 = vld [vmem:[%s302 + $0x20] sm:$0xff]
      %v364 = vld [vmem:[%s302 + $0x28] sm:$0xff]
      %v365 = vld [vmem:[%s302 + $0x30] sm:$0xff]
      %v366 = vld [vmem:[%s302 + $0x38] sm:$0xff]
      %v367 = vld [vmem:[%s302 + $0x40] sm:$0xff]
      %v368 = vld [vmem:[%s302 + $0x48] sm:$0xff]
      %v369 = vld [vmem:[%s302 + $0x50] sm:$0xff]
      %v370 = vld [vmem:[%s302 + $0x58] sm:$0xff]
      %v371 = vld [vmem:[%s302 + $0x60] sm:$0xff]
      %v372 = vld [vmem:[%s302 + $0x68] sm:$0xff]
      %v373 = vld [vmem:[%s302 + $0x70] sm:$0xff]
      %v374 = vld [vmem:[%s302 + $0x78] sm:$0xff]
      %391 = vrot.lane.b32.xlu0 %v359, 24
      %v392 = vpop.permute.xlu0 %391
      %393 = vrot.lane.b32.xlu0 %v360, 24
      %v394 = vpop.permute.xlu0 %393
      %395 = vrot.lane.b32.xlu0 %v361, 24
      %v396 = vpop.permute.xlu0 %395
      %397 = vrot.lane.b32.xlu0 %v362, 24
      %v398 = vpop.permute.xlu0 %397
      %399 = vrot.lane.b32.xlu0 %v363, 24
      %v400 = vpop.permute.xlu0 %399
      %401 = vrot.lane.b32.xlu0 %v364, 24
      %v402 = vpop.permute.xlu0 %401
      %403 = vrot.lane.b32.xlu0 %v365, 24
      %v404 = vpop.permute.xlu0 %403
      %405 = vrot.lane.b32.xlu0 %v366, 24
      %v406 = vpop.permute.xlu0 %405
      %407 = vrot.lane.b32.xlu0 %v367, 24
      %v408 = vpop.permute.xlu0 %407
      %409 = vrot.lane.b32.xlu0 %v368, 24
      %v410 = vpop.permute.xlu0 %409
      %411 = vrot.lane.b32.xlu0 %v369, 24
      %v412 = vpop.permute.xlu0 %411
      %413 = vrot.lane.b32.xlu0 %v370, 24
      %v414 = vpop.permute.xlu0 %413
      %415 = vrot.lane.b32.xlu0 %v371, 24
      %v416 = vpop.permute.xlu0 %415
      %417 = vrot.lane.b32.xlu0 %v372, 24
      %v418 = vpop.permute.xlu0 %417
      %419 = vrot.lane.b32.xlu0 %v373, 24
      %v420 = vpop.permute.xlu0 %419
      %421 = vrot.lane.b32.xlu0 %v374, 24
      %v422 = vpop.permute.xlu0 %421
      %s439 = scalar_lea.vmem [#allocation2], 192
      %vm440 = vcmask 261312
      %441 = vst.msk [vmem:[%s439 + $0x1] sm:$0xff] %vm440, %v392
      %442 = vst.msk [vmem:[%s439 + $0x9] sm:$0xff] %vm440, %v394
      %443 = vst.msk [vmem:[%s439 + $0x19] sm:$0xff] %vm440, %v396
      %444 = vst.msk [vmem:[%s439 + $0x21] sm:$0xff] %vm440, %v398
      %445 = vst.msk [vmem:[%s439 + $0x31] sm:$0xff] %vm440, %v400
      %446 = vst.msk [vmem:[%s439 + $0x39] sm:$0xff] %vm440, %v402
      %447 = vst.msk [vmem:[%s439 + $0x49] sm:$0xff] %vm440, %v404
      %448 = vst.msk [vmem:[%s439 + $0x51] sm:$0xff] %vm440, %v406
      %449 = vst.msk [vmem:[%s439 + $0x61] sm:$0xff] %vm440, %v408
      %450 = vst.msk [vmem:[%s439 + $0x69] sm:$0xff] %vm440, %v410
      %451 = vst.msk [vmem:[%s439 + $0x79] sm:$0xff] %vm440, %v412
      %452 = vst.msk [vmem:[%s439 + $0x81] sm:$0xff] %vm440, %v414
      %453 = vst.msk [vmem:[%s439 + $0x91] sm:$0xff] %vm440, %v416
      %454 = vst.msk [vmem:[%s439 + $0x99] sm:$0xff] %vm440, %v418
      %455 = vst.msk [vmem:[%s439 + $0xa9] sm:$0xff] %vm440, %v420
      %456 = vst.msk [vmem:[%s439 + $0xb1] sm:$0xff] %vm440, %v422
      %s457 = scalar_lea.vmem [#allocation2], 168
      %v458 = vld [vmem:[%s457] sm:$0xff]
      %v459 = vld [vmem:[%s457 + $0x8] sm:$0xff]
      %v460 = vld [vmem:[%s457 + $0x10] sm:$0x3]
      %v461 = vld [vmem:[%s457 + $0x18] sm:$0xff]
      %v462 = vld [vmem:[%s457 + $0x20] sm:$0xff]
      %v463 = vld [vmem:[%s457 + $0x28] sm:$0x3]
      %v464 = vld [vmem:[%s457 + $0x30] sm:$0xff]
      %v465 = vld [vmem:[%s457 + $0x38] sm:$0xff]
      %v466 = vld [vmem:[%s457 + $0x40] sm:$0x3]
      %v467 = vld [vmem:[%s457 + $0x48] sm:$0xff]
      %v468 = vld [vmem:[%s457 + $0x50] sm:$0xff]
      %v469 = vld [vmem:[%s457 + $0x58] sm:$0x3]
      %v470 = vld [vmem:[%s457 + $0x60] sm:$0xff]
      %v471 = vld [vmem:[%s457 + $0x68] sm:$0xff]
      %v472 = vld [vmem:[%s457 + $0x70] sm:$0x3]
      %v473 = vld [vmem:[%s457 + $0x78] sm:$0xff]
      %v474 = vld [vmem:[%s457 + $0x80] sm:$0xff]
      %v475 = vld [vmem:[%s457 + $0x88] sm:$0x3]
      %v476 = vld [vmem:[%s457 + $0x90] sm:$0xff]
      %v477 = vld [vmem:[%s457 + $0x98] sm:$0xff]
      %v478 = vld [vmem:[%s457 + $0xa0] sm:$0x3]
      %v479 = vld [vmem:[%s457 + $0xa8] sm:$0xff]
      %v480 = vld [vmem:[%s457 + $0xb0] sm:$0xff]
      %v481 = vld [vmem:[%s457 + $0xb8] sm:$0x3]
      %v482 = vld [vmem:[%s439] sm:$0xff]
      %v483 = vld [vmem:[%s439 + $0x8] sm:$0xff]
      %v484 = vld [vmem:[%s439 + $0x10] sm:$0x3]
      %v485 = vld [vmem:[%s439 + $0x18] sm:$0xff]
      %v486 = vld [vmem:[%s439 + $0x20] sm:$0xff]
      %v487 = vld [vmem:[%s439 + $0x28] sm:$0x3]
      %v488 = vld [vmem:[%s439 + $0x30] sm:$0xff]
      %v489 = vld [vmem:[%s439 + $0x38] sm:$0xff]
      %v490 = vld [vmem:[%s439 + $0x40] sm:$0x3]
      %v491 = vld [vmem:[%s439 + $0x48] sm:$0xff]
      %v492 = vld [vmem:[%s439 + $0x50] sm:$0xff]
      %v493 = vld [vmem:[%s439 + $0x58] sm:$0x3]
      %v494 = vld [vmem:[%s439 + $0x60] sm:$0xff]
      %v495 = vld [vmem:[%s439 + $0x68] sm:$0xff]
      %v496 = vld [vmem:[%s439 + $0x70] sm:$0x3]
      %v497 = vld [vmem:[%s439 + $0x78] sm:$0xff]
      %v498 = vld [vmem:[%s439 + $0x80] sm:$0xff]
      %v499 = vld [vmem:[%s439 + $0x88] sm:$0x3]
      %v500 = vld [vmem:[%s439 + $0x90] sm:$0xff]
      %v501 = vld [vmem:[%s439 + $0x98] sm:$0xff]
      %v502 = vld [vmem:[%s439 + $0xa0] sm:$0x3]
      %v503 = vld [vmem:[%s439 + $0xa8] sm:$0xff]
      %v504 = vld [vmem:[%s439 + $0xb0] sm:$0xff]
      %v505 = vld [vmem:[%s439 + $0xb8] sm:$0x3]
      %vm530 = vcmask 1046528
      %v531 = vrot.slane %v458, 1
      %v532 = vrot.slane %v459, 1
      %v533 = vsel %vm530, %v531, %v532
      %v534 = vrot.slane %v460, 1
      %v535 = vsel %vm530, %v532, %v534
      %v536 = vrot.slane %v461, 1
      %v537 = vrot.slane %v462, 1
      %v538 = vsel %vm530, %v536, %v537
      %v539 = vrot.slane %v463, 1
      %v540 = vsel %vm530, %v537, %v539
      %v541 = vrot.slane %v464, 1
      %v542 = vrot.slane %v465, 1
      %v543 = vsel %vm530, %v541, %v542
      %v544 = vrot.slane %v466, 1
      %v545 = vsel %vm530, %v542, %v544
      %v546 = vrot.slane %v467, 1
      %v547 = vrot.slane %v468, 1
      %v548 = vsel %vm530, %v546, %v547
      %v549 = vrot.slane %v469, 1
      %v550 = vsel %vm530, %v547, %v549
      %v551 = vrot.slane %v470, 1
      %v552 = vrot.slane %v471, 1
      %v553 = vsel %vm530, %v551, %v552
      %v554 = vrot.slane %v472, 1
      %v555 = vsel %vm530, %v552, %v554
      %v556 = vrot.slane %v473, 1
      %v557 = vrot.slane %v474, 1
      %v558 = vsel %vm530, %v556, %v557
      %v559 = vrot.slane %v475, 1
      %v560 = vsel %vm530, %v557, %v559
      %v561 = vrot.slane %v476, 1
      %v562 = vrot.slane %v477, 1
      %v563 = vsel %vm530, %v561, %v562
      %v564 = vrot.slane %v478, 1
      %v565 = vsel %vm530, %v562, %v564
      %v566 = vrot.slane %v479, 1
      %v567 = vrot.slane %v480, 1
      %v568 = vsel %vm530, %v566, %v567
      %v569 = vrot.slane %v481, 1
      %v570 = vsel %vm530, %v567, %v569
      %571 = vrot.lane.b32.xlu0 %v533, 32
      %v572 = vpop.permute.xlu0 %571
      %573 = vrot.lane.b32.xlu0 %v535, 32
      %v574 = vpop.permute.xlu0 %573
      %575 = vrot.lane.b32.xlu0 %v538, 32
      %v576 = vpop.permute.xlu0 %575
      %577 = vrot.lane.b32.xlu0 %v540, 32
      %v578 = vpop.permute.xlu0 %577
      %579 = vrot.lane.b32.xlu0 %v543, 32
      %v580 = vpop.permute.xlu0 %579
      %581 = vrot.lane.b32.xlu0 %v545, 32
      %v582 = vpop.permute.xlu0 %581
      %583 = vrot.lane.b32.xlu0 %v548, 32
      %v584 = vpop.permute.xlu0 %583
      %585 = vrot.lane.b32.xlu0 %v550, 32
      %v586 = vpop.permute.xlu0 %585
      %587 = vrot.lane.b32.xlu0 %v553, 32
      %v588 = vpop.permute.xlu0 %587
      %589 = vrot.lane.b32.xlu0 %v555, 32
      %v590 = vpop.permute.xlu0 %589
      %591 = vrot.lane.b32.xlu0 %v558, 32
      %v592 = vpop.permute.xlu0 %591
      %593 = vrot.lane.b32.xlu0 %v560, 32
      %v594 = vpop.permute.xlu0 %593
      %595 = vrot.lane.b32.xlu0 %v563, 32
      %v596 = vpop.permute.xlu0 %595
      %597 = vrot.lane.b32.xlu0 %v565, 32
      %v598 = vpop.permute.xlu0 %597
      %599 = vrot.lane.b32.xlu0 %v568, 32
      %v600 = vpop.permute.xlu0 %599
      %601 = vrot.lane.b32.xlu0 %v570, 32
      %v602 = vpop.permute.xlu0 %601
      %vm619 = vcmask 1045504
      %v620 = vrot.slane %v458, 2
      %v621 = vrot.slane %v459, 2
      %v622 = vsel %vm619, %v620, %v621
      %v623 = vrot.slane %v460, 2
      %v624 = vsel %vm619, %v621, %v623
      %v625 = vrot.slane %v461, 2
      %v626 = vrot.slane %v462, 2
      %v627 = vsel %vm619, %v625, %v626
      %v628 = vrot.slane %v463, 2
      %v629 = vsel %vm619, %v626, %v628
      %v630 = vrot.slane %v464, 2
      %v631 = vrot.slane %v465, 2
      %v632 = vsel %vm619, %v630, %v631
      %v633 = vrot.slane %v466, 2
      %v634 = vsel %vm619, %v631, %v633
      %v635 = vrot.slane %v467, 2
      %v636 = vrot.slane %v468, 2
      %v637 = vsel %vm619, %v635, %v636
      %v638 = vrot.slane %v469, 2
      %v639 = vsel %vm619, %v636, %v638
      %v640 = vrot.slane %v470, 2
      %v641 = vrot.slane %v471, 2
      %v642 = vsel %vm619, %v640, %v641
      %v643 = vrot.slane %v472, 2
      %v644 = vsel %vm619, %v641, %v643
      %v645 = vrot.slane %v473, 2
      %v646 = vrot.slane %v474, 2
      %v647 = vsel %vm619, %v645, %v646
      %v648 = vrot.slane %v475, 2
      %v649 = vsel %vm619, %v646, %v648
      %v650 = vrot.slane %v476, 2
      %v651 = vrot.slane %v477, 2
      %v652 = vsel %vm619, %v650, %v651
      %v653 = vrot.slane %v478, 2
      %v654 = vsel %vm619, %v651, %v653
      %v655 = vrot.slane %v479, 2
      %v656 = vrot.slane %v480, 2
      %v657 = vsel %vm619, %v655, %v656
      %v658 = vrot.slane %v481, 2
      %v659 = vsel %vm619, %v656, %v658
      %660 = vrot.lane.b32.xlu0 %v622, 64
      %v661 = vpop.permute.xlu0 %660
      %662 = vrot.lane.b32.xlu0 %v624, 64
      %v663 = vpop.permute.xlu0 %662
      %664 = vrot.lane.b32.xlu0 %v627, 64
      %v665 = vpop.permute.xlu0 %664
      %666 = vrot.lane.b32.xlu0 %v629, 64
      %v667 = vpop.permute.xlu0 %666
      %668 = vrot.lane.b32.xlu0 %v632, 64
      %v669 = vpop.permute.xlu0 %668
      %670 = vrot.lane.b32.xlu0 %v634, 64
      %v671 = vpop.permute.xlu0 %670
      %672 = vrot.lane.b32.xlu0 %v637, 64
      %v673 = vpop.permute.xlu0 %672
      %674 = vrot.lane.b32.xlu0 %v639, 64
      %v675 = vpop.permute.xlu0 %674
      %676 = vrot.lane.b32.xlu0 %v642, 64
      %v677 = vpop.permute.xlu0 %676
      %678 = vrot.lane.b32.xlu0 %v644, 64
      %v679 = vpop.permute.xlu0 %678
      %680 = vrot.lane.b32.xlu0 %v647, 64
      %v681 = vpop.permute.xlu0 %680
      %682 = vrot.lane.b32.xlu0 %v649, 64
      %v683 = vpop.permute.xlu0 %682
      %684 = vrot.lane.b32.xlu0 %v652, 64
      %v685 = vpop.permute.xlu0 %684
      %686 = vrot.lane.b32.xlu0 %v654, 64
      %v687 = vpop.permute.xlu0 %686
      %688 = vrot.lane.b32.xlu0 %v657, 64
      %v689 = vpop.permute.xlu0 %688
      %690 = vrot.lane.b32.xlu0 %v659, 64
      %v691 = vpop.permute.xlu0 %690
      %724 = vrot.lane.b32.xlu0 %v482, 96
      %v725 = vpop.permute.xlu0 %724
      %726 = vrot.lane.b32.xlu0 %v483, 96
      %v727 = vpop.permute.xlu0 %726
      %728 = vrot.lane.b32.xlu0 %v485, 96
      %v729 = vpop.permute.xlu0 %728
      %730 = vrot.lane.b32.xlu0 %v486, 96
      %v731 = vpop.permute.xlu0 %730
      %732 = vrot.lane.b32.xlu0 %v488, 96
      %v733 = vpop.permute.xlu0 %732
      %734 = vrot.lane.b32.xlu0 %v489, 96
      %v735 = vpop.permute.xlu0 %734
      %736 = vrot.lane.b32.xlu0 %v491, 96
      %v737 = vpop.permute.xlu0 %736
      %738 = vrot.lane.b32.xlu0 %v492, 96
      %v739 = vpop.permute.xlu0 %738
      %740 = vrot.lane.b32.xlu0 %v494, 96
      %v741 = vpop.permute.xlu0 %740
      %742 = vrot.lane.b32.xlu0 %v495, 96
      %v743 = vpop.permute.xlu0 %742
      %744 = vrot.lane.b32.xlu0 %v497, 96
      %v745 = vpop.permute.xlu0 %744
      %746 = vrot.lane.b32.xlu0 %v498, 96
      %v747 = vpop.permute.xlu0 %746
      %748 = vrot.lane.b32.xlu0 %v500, 96
      %v749 = vpop.permute.xlu0 %748
      %750 = vrot.lane.b32.xlu0 %v501, 96
      %v751 = vpop.permute.xlu0 %750
      %752 = vrot.lane.b32.xlu0 %v503, 96
      %v753 = vpop.permute.xlu0 %752
      %754 = vrot.lane.b32.xlu0 %v504, 96
      %v755 = vpop.permute.xlu0 %754
      %v780 = vrot.slane %v482, 1
      %v781 = vrot.slane %v483, 1
      %v782 = vsel %vm530, %v780, %v781
      %v783 = vrot.slane %v484, 1
      %v784 = vsel %vm530, %v781, %v783
      %v785 = vrot.slane %v485, 1
      %v786 = vrot.slane %v486, 1
      %v787 = vsel %vm530, %v785, %v786
      %v788 = vrot.slane %v487, 1
      %v789 = vsel %vm530, %v786, %v788
      %v790 = vrot.slane %v488, 1
      %v791 = vrot.slane %v489, 1
      %v792 = vsel %vm530, %v790, %v791
      %v793 = vrot.slane %v490, 1
      %v794 = vsel %vm530, %v791, %v793
      %v795 = vrot.slane %v491, 1
      %v796 = vrot.slane %v492, 1
      %v797 = vsel %vm530, %v795, %v796
      %v798 = vrot.slane %v493, 1
      %v799 = vsel %vm530, %v796, %v798
      %v800 = vrot.slane %v494, 1
      %v801 = vrot.slane %v495, 1
      %v802 = vsel %vm530, %v800, %v801
      %v803 = vrot.slane %v496, 1
      %v804 = vsel %vm530, %v801, %v803
      %v805 = vrot.slane %v497, 1
      %v806 = vrot.slane %v498, 1
      %v807 = vsel %vm530, %v805, %v806
      %v808 = vrot.slane %v499, 1
      %v809 = vsel %vm530, %v806, %v808
      %v810 = vrot.slane %v500, 1
      %v811 = vrot.slane %v501, 1
      %v812 = vsel %vm530, %v810, %v811
      %v813 = vrot.slane %v502, 1
      %v814 = vsel %vm530, %v811, %v813
      %v815 = vrot.slane %v503, 1
      %v816 = vrot.slane %v504, 1
      %v817 = vsel %vm530, %v815, %v816
      %v818 = vrot.slane %v505, 1
      %v819 = vsel %vm530, %v816, %v818
      %v836 = vrot.slane %v482, 2
      %v837 = vrot.slane %v483, 2
      %v838 = vsel %vm619, %v836, %v837
      %v839 = vrot.slane %v484, 2
      %v840 = vsel %vm619, %v837, %v839
      %v841 = vrot.slane %v485, 2
      %v842 = vrot.slane %v486, 2
      %v843 = vsel %vm619, %v841, %v842
      %v844 = vrot.slane %v487, 2
      %v845 = vsel %vm619, %v842, %v844
      %v846 = vrot.slane %v488, 2
      %v847 = vrot.slane %v489, 2
      %v848 = vsel %vm619, %v846, %v847
      %v849 = vrot.slane %v490, 2
      %v850 = vsel %vm619, %v847, %v849
      %v851 = vrot.slane %v491, 2
      %v852 = vrot.slane %v492, 2
      %v853 = vsel %vm619, %v851, %v852
      %v854 = vrot.slane %v493, 2
      %v855 = vsel %vm619, %v852, %v854
      %v856 = vrot.slane %v494, 2
      %v857 = vrot.slane %v495, 2
      %v858 = vsel %vm619, %v856, %v857
      %v859 = vrot.slane %v496, 2
      %v860 = vsel %vm619, %v857, %v859
      %v861 = vrot.slane %v497, 2
      %v862 = vrot.slane %v498, 2
      %v863 = vsel %vm619, %v861, %v862
      %v864 = vrot.slane %v499, 2
      %v865 = vsel %vm619, %v862, %v864
      %v866 = vrot.slane %v500, 2
      %v867 = vrot.slane %v501, 2
      %v868 = vsel %vm619, %v866, %v867
      %v869 = vrot.slane %v502, 2
      %v870 = vsel %vm619, %v867, %v869
      %v871 = vrot.slane %v503, 2
      %v872 = vrot.slane %v504, 2
      %v873 = vsel %vm619, %v871, %v872
      %v874 = vrot.slane %v505, 2
      %v875 = vsel %vm619, %v872, %v874
      %876 = vrot.lane.b32.xlu0 %v838, 32
      %v877 = vpop.permute.xlu0 %876
      %878 = vrot.lane.b32.xlu0 %v840, 32
      %v879 = vpop.permute.xlu0 %878
      %880 = vrot.lane.b32.xlu0 %v843, 32
      %v881 = vpop.permute.xlu0 %880
      %882 = vrot.lane.b32.xlu0 %v845, 32
      %v883 = vpop.permute.xlu0 %882
      %884 = vrot.lane.b32.xlu0 %v848, 32
      %v885 = vpop.permute.xlu0 %884
      %886 = vrot.lane.b32.xlu0 %v850, 32
      %v887 = vpop.permute.xlu0 %886
      %888 = vrot.lane.b32.xlu0 %v853, 32
      %v889 = vpop.permute.xlu0 %888
      %890 = vrot.lane.b32.xlu0 %v855, 32
      %v891 = vpop.permute.xlu0 %890
      %892 = vrot.lane.b32.xlu0 %v858, 32
      %v893 = vpop.permute.xlu0 %892
      %894 = vrot.lane.b32.xlu0 %v860, 32
      %v895 = vpop.permute.xlu0 %894
      %896 = vrot.lane.b32.xlu0 %v863, 32
      %v897 = vpop.permute.xlu0 %896
      %898 = vrot.lane.b32.xlu0 %v865, 32
      %v899 = vpop.permute.xlu0 %898
      %900 = vrot.lane.b32.xlu0 %v868, 32
      %v901 = vpop.permute.xlu0 %900
      %902 = vrot.lane.b32.xlu0 %v870, 32
      %v903 = vpop.permute.xlu0 %902
      %904 = vrot.lane.b32.xlu0 %v873, 32
      %v905 = vpop.permute.xlu0 %904
      %906 = vrot.lane.b32.xlu0 %v875, 32
      %v907 = vpop.permute.xlu0 %906
      %v924 = vsel %vm309, %v458, %v572
      %v925 = vsel %vm309, %v459, %v574
      %v926 = vsel %vm309, %v461, %v576
      %v927 = vsel %vm309, %v462, %v578
      %v928 = vsel %vm309, %v464, %v580
      %v929 = vsel %vm309, %v465, %v582
      %v930 = vsel %vm309, %v467, %v584
      %v931 = vsel %vm309, %v468, %v586
      %v932 = vsel %vm309, %v470, %v588
      %v933 = vsel %vm309, %v471, %v590
      %v934 = vsel %vm309, %v473, %v592
      %v935 = vsel %vm309, %v474, %v594
      %v936 = vsel %vm309, %v476, %v596
      %v937 = vsel %vm309, %v477, %v598
      %v938 = vsel %vm309, %v479, %v600
      %v939 = vsel %vm309, %v480, %v602
      %vm940 = vcmask 523264
      %v941 = vsel %vm940, %v924, %v661
      %v942 = vsel %vm940, %v925, %v663
      %v943 = vsel %vm940, %v926, %v665
      %v944 = vsel %vm940, %v927, %v667
      %v945 = vsel %vm940, %v928, %v669
      %v946 = vsel %vm940, %v929, %v671
      %v947 = vsel %vm940, %v930, %v673
      %v948 = vsel %vm940, %v931, %v675
      %v949 = vsel %vm940, %v932, %v677
      %v950 = vsel %vm940, %v933, %v679
      %v951 = vsel %vm940, %v934, %v681
      %v952 = vsel %vm940, %v935, %v683
      %v953 = vsel %vm940, %v936, %v685
      %v954 = vsel %vm940, %v937, %v687
      %v955 = vsel %vm940, %v938, %v689
      %v956 = vsel %vm940, %v939, %v691
      %vm957 = vcmask 785408
      %v958 = vsel %vm957, %v941, %v725
      %v959 = vsel %vm957, %v942, %v727
      %v960 = vsel %vm957, %v943, %v729
      %v961 = vsel %vm957, %v944, %v731
      %v962 = vsel %vm957, %v945, %v733
      %v963 = vsel %vm957, %v946, %v735
      %v964 = vsel %vm957, %v947, %v737
      %v965 = vsel %vm957, %v948, %v739
      %v966 = vsel %vm957, %v949, %v741
      %v967 = vsel %vm957, %v950, %v743
      %v968 = vsel %vm957, %v951, %v745
      %v969 = vsel %vm957, %v952, %v747
      %v970 = vsel %vm957, %v953, %v749
      %v971 = vsel %vm957, %v954, %v751
      %v972 = vsel %vm957, %v955, %v753
      %v973 = vsel %vm957, %v956, %v755
      %v974 = vsel %vm309, %v782, %v877
      %v975 = vsel %vm309, %v784, %v879
      %v976 = vsel %vm309, %v787, %v881
      %v977 = vsel %vm309, %v789, %v883
      %v978 = vsel %vm309, %v792, %v885
      %v979 = vsel %vm309, %v794, %v887
      %v980 = vsel %vm309, %v797, %v889
      %v981 = vsel %vm309, %v799, %v891
      %v982 = vsel %vm309, %v802, %v893
      %v983 = vsel %vm309, %v804, %v895
      %v984 = vsel %vm309, %v807, %v897
      %v985 = vsel %vm309, %v809, %v899
      %v986 = vsel %vm309, %v812, %v901
      %v987 = vsel %vm309, %v814, %v903
      %v988 = vsel %vm309, %v817, %v905
      %v989 = vsel %vm309, %v819, %v907
      %v990 = vpack.c.bf16 %v959, %v958
      %v991 = vpack.c.bf16 %v975, %v974
      %v992 = vpack.c.bf16 %v961, %v960
      %v993 = vpack.c.bf16 %v977, %v976
      %v994 = vpack.c.bf16 %v963, %v962
      %v995 = vpack.c.bf16 %v979, %v978
      %v996 = vpack.c.bf16 %v965, %v964
      %v997 = vpack.c.bf16 %v981, %v980
      %v998 = vpack.c.bf16 %v967, %v966
      %v999 = vpack.c.bf16 %v983, %v982
      %v1000 = vpack.c.bf16 %v969, %v968
      %v1001 = vpack.c.bf16 %v985, %v984
      %v1002 = vpack.c.bf16 %v971, %v970
      %v1003 = vpack.c.bf16 %v987, %v986
      %v1004 = vpack.c.bf16 %v973, %v972
      %v1005 = vpack.c.bf16 %v989, %v988
      %v1006 = vld [vmem:[%s1] sm:$0xf]
      %v1007 = vld [vmem:[%s1 + $0x4] sm:$0xf]
      %v1008 = vld [vmem:[%s1 + $0x8] sm:$0xf]
      %v1009 = vld [vmem:[%s1 + $0xc] sm:$0xf]
      %v1010 = vld [vmem:[%s1 + $0x10] sm:$0xf]
      %v1011 = vld [vmem:[%s1 + $0x14] sm:$0xf]
      %v1012 = vld [vmem:[%s1 + $0x18] sm:$0xf]
      %v1013 = vld [vmem:[%s1 + $0x1c] sm:$0xf]
      %v1014 = vld [vmem:[%s1 + $0x20] sm:$0xf]
      %v1015 = vld [vmem:[%s1 + $0x24] sm:$0xf]
      %v1016 = vld [vmem:[%s1 + $0x28] sm:$0xf]
      %v1017 = vld [vmem:[%s1 + $0x2c] sm:$0xf]
      %v1018 = vld [vmem:[%s1 + $0x30] sm:$0xf]
      %v1019 = vld [vmem:[%s1 + $0x34] sm:$0xf]
      %v1020 = vld [vmem:[%s1 + $0x38] sm:$0xf]
      %v1021 = vld [vmem:[%s1 + $0x3c] sm:$0xf]
      %v1022 = vld [vmem:[%s1 + $0x40] sm:$0xf]
      %v1023 = vld [vmem:[%s1 + $0x44] sm:$0xf]
      %v1024 = vld [vmem:[%s1 + $0x48] sm:$0xf]
      %v1025 = vld [vmem:[%s1 + $0x4c] sm:$0xf]
      %v1026 = vld [vmem:[%s1 + $0x50] sm:$0xf]
      %v1027 = vld [vmem:[%s1 + $0x54] sm:$0xf]
      %v1028 = vld [vmem:[%s1 + $0x58] sm:$0xf]
      %v1029 = vld [vmem:[%s1 + $0x5c] sm:$0xf]
      %v1030 = vld [vmem:[%s2] sm:$0xf]
      %v1031 = vlaneseq
      %v1032 = vshrl.u32 %v1031, 7
      %v1033 = vsub.s32 0, %v1032
      %v1034 = vrot.slane %v1030, %v1033
      %v1059 = vunpack.c.l.b16 %v1006
      %v1060 = vunpack.c.l.b16 %v1007
      %v1061 = vunpack.c.l.b16 %v1008
      %v1062 = vunpack.c.l.b16 %v1009
      %v1063 = vunpack.c.l.b16 %v1010
      %v1064 = vunpack.c.l.b16 %v1011
      %v1065 = vunpack.c.l.b16 %v1012
      %v1066 = vunpack.c.l.b16 %v1013
      %v1067 = vunpack.c.l.b16 %v1014
      %v1068 = vunpack.c.l.b16 %v1015
      %v1069 = vunpack.c.l.b16 %v1016
      %v1070 = vunpack.c.l.b16 %v1017
      %v1071 = vunpack.c.l.b16 %v1018
      %v1072 = vunpack.c.l.b16 %v1019
      %v1073 = vunpack.c.l.b16 %v1020
      %v1074 = vunpack.c.l.b16 %v1021
      %v1075 = vunpack.c.l.b16 %v1022
      %v1076 = vunpack.c.l.b16 %v1023
      %v1077 = vunpack.c.l.b16 %v1024
      %v1078 = vunpack.c.l.b16 %v1025
      %v1079 = vunpack.c.l.b16 %v1026
      %v1080 = vunpack.c.l.b16 %v1027
      %v1081 = vunpack.c.l.b16 %v1028
      %v1082 = vunpack.c.l.b16 %v1029
      %v1083 = vpack.c.b16 %v1060, %v1059
      %v1084 = vpack.c.b16 %v1062, %v1061
      %v1085 = vpack.c.b16 %v1064, %v1063
      %v1086 = vpack.c.b16 %v1066, %v1065
      %v1087 = vpack.c.b16 %v1068, %v1067
      %v1088 = vpack.c.b16 %v1070, %v1069
      %v1089 = vpack.c.b16 %v1072, %v1071
      %v1090 = vpack.c.b16 %v1074, %v1073
      %v1091 = vpack.c.b16 %v1076, %v1075
      %v1092 = vpack.c.b16 %v1078, %v1077
      %v1093 = vpack.c.b16 %v1080, %v1079
      %v1094 = vpack.c.b16 %v1082, %v1081
      %v1108 = vsel %vm940, %v991, 0
      %v1111 = vsel %vm940, %v993, 0
      %v1114 = vsel %vm940, %v995, 0
      %v1117 = vsel %vm940, %v997, 0
      %v1120 = vsel %vm940, %v999, 0
      %v1123 = vsel %vm940, %v1001, 0
      %v1126 = vsel %vm940, %v1003, 0
      %v1129 = vsel %vm940, %v1005, 0
      %1131 = vmatprep.subr.bf16.mxu0 0
      %1132 = vmatpush1.bf16.msra.mxu0 %v1090
      %1133 = vmatprep.subr.bf16.mxu0 0
      %1134 = vmatpush1.bf16.msra.mxu0 %v1089
      %1135 = vmatprep.subr.bf16.mxu0 0
      %1136 = vmatpush1.bf16.msra.mxu0 %v1088
      %1137 = vmatprep.subr.bf16.mxu0 0
      %1138 = vmatpush1.bf16.msra.mxu0 %v1087
      %1139 = vmatprep.subr.bf16.mxu0 0
      %1140 = vmatpush1.bf16.msra.mxu0 %v1086
      %1141 = vmatprep.subr.bf16.mxu0 0
      %1142 = vmatpush1.bf16.msra.mxu0 %v1085
      %1143 = vmatprep.subr.bf16.mxu0 0
      %1144 = vmatpush1.bf16.msra.mxu0 %v1084
      %1145 = vmatprep.subr.bf16.mxu0 0
      %1146 = vmatpush1.bf16.msra.mxu0 %v1083
      %1147 = vmatprep.subr.bf16.mxu0 0
      %1148 = vmatpush2.bf16.msra.mxu0 0
      %1149 = vmatprep.subr.bf16.mxu0 0
      %1150 = vmatpush2.bf16.msra.mxu0 0
      %1151 = vmatprep.subr.bf16.mxu0 0
      %1152 = vmatpush2.bf16.msra.mxu0 0
      %1153 = vmatprep.subr.bf16.mxu0 0
      %1154 = vmatpush2.bf16.msra.mxu0 0
      %1155 = vmatprep.subr.bf16.mxu0 0
      %1156 = vmatpush2.bf16.msra.mxu0 %v1094
      %1157 = vmatprep.subr.bf16.mxu0 0
      %1158 = vmatpush2.bf16.msra.mxu0 %v1093
      %1159 = vmatprep.subr.bf16.mxu0 0
      %1160 = vmatpush2.bf16.msra.mxu0 %v1092
      %1161 = vmatprep.subr.bf16.mxu0 0
      %1162 = vmatpush2.bf16.msra.mxu0 %v1091
      %1163 = vmatprep.mubr.bf16.mxu0 %v1108
      %1164 = vmatmul.mubr.bf16.gmra.mxu0 %v990
      %v1165 = vpop.f32.mrf.mxu0
      %v1166 = vadd.f32 %v1034, %v1165
      %v1167 = vpop.f32.mrf.mxu0
      %v1168 = vpop.f32.mrf.mxu0
      %v1169 = vadd.f32 %v1034, %v1168
      %v1170 = vpop.f32.mrf.mxu0
      %1171 = vmatprep.mubr.bf16.mxu0 %v1111
      %1172 = vmatmul.mubr.bf16.gmra.mxu0 %v992
      %v1173 = vpop.f32.mrf.mxu0
      %v1174 = vadd.f32 %v1034, %v1173
      %v1175 = vpop.f32.mrf.mxu0
      %v1176 = vpop.f32.mrf.mxu0
      %v1177 = vadd.f32 %v1034, %v1176
      %v1178 = vpop.f32.mrf.mxu0
      %1179 = vmatprep.mubr.bf16.mxu0 %v1114
      %1180 = vmatmul.mubr.bf16.gmra.mxu0 %v994
      %v1181 = vpop.f32.mrf.mxu0
      %v1182 = vadd.f32 %v1034, %v1181
      %v1183 = vpop.f32.mrf.mxu0
      %v1184 = vpop.f32.mrf.mxu0
      %v1185 = vadd.f32 %v1034, %v1184
      %v1186 = vpop.f32.mrf.mxu0
      %1187 = vmatprep.mubr.bf16.mxu0 %v1117
      %1188 = vmatmul.mubr.bf16.gmra.mxu0 %v996
      %v1189 = vpop.f32.mrf.mxu0
      %v1190 = vadd.f32 %v1034, %v1189
      %v1191 = vpop.f32.mrf.mxu0
      %v1192 = vpop.f32.mrf.mxu0
      %v1193 = vadd.f32 %v1034, %v1192
      %v1194 = vpop.f32.mrf.mxu0
      %1195 = vmatprep.mubr.bf16.mxu0 %v1120
      %1196 = vmatmul.mubr.bf16.gmra.mxu0 %v998
      %v1197 = vpop.f32.mrf.mxu0
      %v1198 = vadd.f32 %v1034, %v1197
      %v1199 = vpop.f32.mrf.mxu0
      %v1200 = vpop.f32.mrf.mxu0
      %v1201 = vadd.f32 %v1034, %v1200
      %v1202 = vpop.f32.mrf.mxu0
      %1203 = vmatprep.mubr.bf16.mxu0 %v1123
      %1204 = vmatmul.mubr.bf16.gmra.mxu0 %v1000
      %v1205 = vpop.f32.mrf.mxu0
      %v1206 = vadd.f32 %v1034, %v1205
      %v1207 = vpop.f32.mrf.mxu0
      %v1208 = vpop.f32.mrf.mxu0
      %v1209 = vadd.f32 %v1034, %v1208
      %v1210 = vpop.f32.mrf.mxu0
      %1211 = vmatprep.mubr.bf16.mxu0 %v1126
      %1212 = vmatmul.mubr.bf16.gmra.mxu0 %v1002
      %v1213 = vpop.f32.mrf.mxu0
      %v1214 = vadd.f32 %v1034, %v1213
      %v1215 = vpop.f32.mrf.mxu0
      %v1216 = vpop.f32.mrf.mxu0
      %v1217 = vadd.f32 %v1034, %v1216
      %v1218 = vpop.f32.mrf.mxu0
      %1219 = vmatprep.mubr.bf16.mxu0 %v1129
      %1220 = vmatmul.mubr.bf16.gmra.mxu0 %v1004
      %v1221 = vpop.f32.mrf.mxu0
      %v1222 = vadd.f32 %v1034, %v1221
      %v1223 = vpop.f32.mrf.mxu0
      %v1224 = vpop.f32.mrf.mxu0
      %v1225 = vadd.f32 %v1034, %v1224
      %v1226 = vpop.f32.mrf.mxu0
      %1227 = vdwg.mxu0
      %vm1228 = vcmask 64512
      %v1229 = vsel %vm1228, %v1166, 0.0
      %v1230 = vsel %vm1228, %v1169, 0.0
      %v1231 = vadd.f32 %v1229, %v1230
      %v1232 = vsel %vm1228, %v1174, 0.0
      %v1233 = vadd.f32 %v1231, %v1232
      %v1234 = vsel %vm1228, %v1177, 0.0
      %v1235 = vadd.f32 %v1233, %v1234
      %v1236 = vsel %vm1228, %v1182, 0.0
      %v1237 = vadd.f32 %v1235, %v1236
      %v1238 = vsel %vm1228, %v1185, 0.0
      %v1239 = vadd.f32 %v1237, %v1238
      %v1240 = vsel %vm1228, %v1190, 0.0
      %v1241 = vadd.f32 %v1239, %v1240
      %v1242 = vsel %vm1228, %v1193, 0.0
      %v1243 = vadd.f32 %v1241, %v1242
      %v1244 = vsel %vm1228, %v1198, 0.0
      %v1245 = vadd.f32 %v1243, %v1244
      %v1246 = vsel %vm1228, %v1201, 0.0
      %v1247 = vadd.f32 %v1245, %v1246
      %v1248 = vsel %vm1228, %v1206, 0.0
      %v1249 = vadd.f32 %v1247, %v1248
      %v1250 = vsel %vm1228, %v1209, 0.0
      %v1251 = vadd.f32 %v1249, %v1250
      %v1252 = vsel %vm1228, %v1214, 0.0
      %v1253 = vadd.f32 %v1251, %v1252
      %v1254 = vsel %vm1228, %v1217, 0.0
      %v1255 = vadd.f32 %v1253, %v1254
      %v1256 = vsel %vm1228, %v1222, 0.0
      %v1257 = vadd.f32 %v1255, %v1256
      %v1258 = vsel %vm1228, %v1225, 0.0
      %v1259 = vadd.f32 %v1257, %v1258
      %v1260 = vrot.slane %v1259, 4
      %v1261 = vadd.f32 %v1259, %v1260
      %v1262 = vrot.slane %v1261, 2
      %v1263 = vadd.f32 %v1261, %v1262
      %v1264 = vrot.slane %v1263, 1
      %v1265 = vadd.f32 %v1263, %v1264
      %v1266 = vrcp.pop 128.0
      %v1267 = vmul.f32 %v1265, %v1266
      %v1268 = vsub.f32 %v1166, %v1267
      %v1269 = vsub.f32 %v1169, %v1267
      %v1270 = vsub.f32 %v1174, %v1267
      %v1271 = vsub.f32 %v1177, %v1267
      %v1272 = vsub.f32 %v1182, %v1267
      %v1273 = vsub.f32 %v1185, %v1267
      %v1274 = vsub.f32 %v1190, %v1267
      %v1275 = vsub.f32 %v1193, %v1267
      %v1276 = vsub.f32 %v1198, %v1267
      %v1277 = vsub.f32 %v1201, %v1267
      %v1278 = vsub.f32 %v1206, %v1267
      %v1279 = vsub.f32 %v1209, %v1267
      %v1280 = vsub.f32 %v1214, %v1267
      %v1281 = vsub.f32 %v1217, %v1267
      %v1282 = vsub.f32 %v1222, %v1267
      %v1283 = vsub.f32 %v1225, %v1267
      %v1284 = vmul.f32 %v1268, %v1268
      %v1285 = vmul.f32 %v1269, %v1269
      %v1286 = vmul.f32 %v1270, %v1270
      %v1287 = vmul.f32 %v1271, %v1271
      %v1288 = vmul.f32 %v1272, %v1272
      %v1289 = vmul.f32 %v1273, %v1273
      %v1290 = vmul.f32 %v1274, %v1274
      %v1291 = vmul.f32 %v1275, %v1275
      %v1292 = vmul.f32 %v1276, %v1276
      %v1293 = vmul.f32 %v1277, %v1277
      %v1294 = vmul.f32 %v1278, %v1278
      %v1295 = vmul.f32 %v1279, %v1279
      %v1296 = vmul.f32 %v1280, %v1280
      %v1297 = vmul.f32 %v1281, %v1281
      %v1298 = vmul.f32 %v1282, %v1282
      %v1299 = vmul.f32 %v1283, %v1283
      %v1300 = vsel %vm1228, %v1284, 0.0
      %v1301 = vsel %vm1228, %v1285, 0.0
      %v1302 = vadd.f32 %v1300, %v1301
      %v1303 = vsel %vm1228, %v1286, 0.0
      %v1304 = vadd.f32 %v1302, %v1303
      %v1305 = vsel %vm1228, %v1287, 0.0
      %v1306 = vadd.f32 %v1304, %v1305
      %v1307 = vsel %vm1228, %v1288, 0.0
      %v1308 = vadd.f32 %v1306, %v1307
      %v1309 = vsel %vm1228, %v1289, 0.0
      %v1310 = vadd.f32 %v1308, %v1309
      %v1311 = vsel %vm1228, %v1290, 0.0
      %v1312 = vadd.f32 %v1310, %v1311
      %v1313 = vsel %vm1228, %v1291, 0.0
      %v1314 = vadd.f32 %v1312, %v1313
      %v1315 = vsel %vm1228, %v1292, 0.0
      %v1316 = vadd.f32 %v1314, %v1315
      %v1317 = vsel %vm1228, %v1293, 0.0
      %v1318 = vadd.f32 %v1316, %v1317
      %v1319 = vsel %vm1228, %v1294, 0.0
      %v1320 = vadd.f32 %v1318, %v1319
      %v1321 = vsel %vm1228, %v1295, 0.0
      %v1322 = vadd.f32 %v1320, %v1321
      %v1323 = vsel %vm1228, %v1296, 0.0
      %v1324 = vadd.f32 %v1322, %v1323
      %v1325 = vsel %vm1228, %v1297, 0.0
      %v1326 = vadd.f32 %v1324, %v1325
      %v1327 = vsel %vm1228, %v1298, 0.0
      %v1328 = vadd.f32 %v1326, %v1327
      %v1329 = vsel %vm1228, %v1299, 0.0
      %v1330 = vadd.f32 %v1328, %v1329
      %v1331 = vrot.slane %v1330, 4
      %v1332 = vadd.f32 %v1330, %v1331
      %v1333 = vrot.slane %v1332, 2
      %v1334 = vadd.f32 %v1332, %v1333
      %v1335 = vrot.slane %v1334, 1
      %v1336 = vadd.f32 %v1334, %v1335
      %v1337 = vmul.f32 %v1336, %v1266
      %v1338 = vadd.f32 %v1337, 1e-05
      %v1339 = vrsqrt.pop %v1338
      %v1340 = vmul.f32 %v1268, %v1339
      %v1341 = vmul.f32 %v1269, %v1339
      %v1342 = vmul.f32 %v1270, %v1339
      %v1343 = vmul.f32 %v1271, %v1339
      %v1344 = vmul.f32 %v1272, %v1339
      %v1345 = vmul.f32 %v1273, %v1339
      %v1346 = vmul.f32 %v1274, %v1339
      %v1347 = vmul.f32 %v1275, %v1339
      %v1348 = vmul.f32 %v1276, %v1339
      %v1349 = vmul.f32 %v1277, %v1339
      %v1350 = vmul.f32 %v1278, %v1339
      %v1351 = vmul.f32 %v1279, %v1339
      %v1352 = vmul.f32 %v1280, %v1339
      %v1353 = vmul.f32 %v1281, %v1339
      %v1354 = vmul.f32 %v1282, %v1339
      %v1355 = vmul.f32 %v1283, %v1339
      %v1356 = vlaneseq
      %v1357 = vshrl.u32 %v1356, 7
      %v1358 = vsub.s32 1, %v1357
      %v1359 = vrot.slane %v1030, %v1358
      %v1360 = vmul.f32 %v1340, %v1359
      %v1361 = vmul.f32 %v1341, %v1359
      %v1362 = vmul.f32 %v1342, %v1359
      %v1363 = vmul.f32 %v1343, %v1359
      %v1364 = vmul.f32 %v1344, %v1359
      %v1365 = vmul.f32 %v1345, %v1359
      %v1366 = vmul.f32 %v1346, %v1359
      %v1367 = vmul.f32 %v1347, %v1359
      %v1368 = vmul.f32 %v1348, %v1359
      %v1369 = vmul.f32 %v1349, %v1359
      %v1370 = vmul.f32 %v1350, %v1359
      %v1371 = vmul.f32 %v1351, %v1359
      %v1372 = vmul.f32 %v1352, %v1359
      %v1373 = vmul.f32 %v1353, %v1359
      %v1374 = vmul.f32 %v1354, %v1359
      %v1375 = vmul.f32 %v1355, %v1359
      %v1376 = vlaneseq
      %v1377 = vshrl.u32 %v1376, 7
      %v1378 = vsub.s32 2, %v1377
      %v1379 = vrot.slane %v1030, %v1378
      %v1380 = vadd.f32 %v1360, %v1379
      %v1381 = vadd.f32 %v1361, %v1379
      %v1382 = vadd.f32 %v1362, %v1379
      %v1383 = vadd.f32 %v1363, %v1379
      %v1384 = vadd.f32 %v1364, %v1379
      %v1385 = vadd.f32 %v1365, %v1379
      %v1386 = vadd.f32 %v1366, %v1379
      %v1387 = vadd.f32 %v1367, %v1379
      %v1388 = vadd.f32 %v1368, %v1379
      %v1389 = vadd.f32 %v1369, %v1379
      %v1390 = vadd.f32 %v1370, %v1379
      %v1391 = vadd.f32 %v1371, %v1379
      %v1392 = vadd.f32 %v1372, %v1379
      %v1393 = vadd.f32 %v1373, %v1379
      %v1394 = vadd.f32 %v1374, %v1379
      %v1395 = vadd.f32 %v1375, %v1379
      %vm1396 = vcmp.ge.f32.partialorder %v1380, 0.0
      %vm1397 = vcmp.ge.f32.partialorder %v1381, 0.0
      %vm1398 = vcmp.ge.f32.partialorder %v1382, 0.0
      %vm1399 = vcmp.ge.f32.partialorder %v1383, 0.0
      %vm1400 = vcmp.ge.f32.partialorder %v1384, 0.0
      %vm1401 = vcmp.ge.f32.partialorder %v1385, 0.0
      %vm1402 = vcmp.ge.f32.partialorder %v1386, 0.0
      %vm1403 = vcmp.ge.f32.partialorder %v1387, 0.0
      %vm1404 = vcmp.ge.f32.partialorder %v1388, 0.0
      %vm1405 = vcmp.ge.f32.partialorder %v1389, 0.0
      %vm1406 = vcmp.ge.f32.partialorder %v1390, 0.0
      %vm1407 = vcmp.ge.f32.partialorder %v1391, 0.0
      %vm1408 = vcmp.ge.f32.partialorder %v1392, 0.0
      %vm1409 = vcmp.ge.f32.partialorder %v1393, 0.0
      %vm1410 = vcmp.ge.f32.partialorder %v1394, 0.0
      %vm1411 = vcmp.ge.f32.partialorder %v1395, 0.0
      %v1412 = vlaneseq
      %v1413 = vshrl.u32 %v1412, 7
      %v1414 = vsub.s32 3, %v1413
      %v1415 = vrot.slane %v1030, %v1414
      %v1416 = vmul.f32 %v1415, %v1380
      %v1417 = vmul.f32 %v1415, %v1381
      %v1418 = vmul.f32 %v1415, %v1382
      %v1419 = vmul.f32 %v1415, %v1383
      %v1420 = vmul.f32 %v1415, %v1384
      %v1421 = vmul.f32 %v1415, %v1385
      %v1422 = vmul.f32 %v1415, %v1386
      %v1423 = vmul.f32 %v1415, %v1387
      %v1424 = vmul.f32 %v1415, %v1388
      %v1425 = vmul.f32 %v1415, %v1389
      %v1426 = vmul.f32 %v1415, %v1390
      %v1427 = vmul.f32 %v1415, %v1391
      %v1428 = vmul.f32 %v1415, %v1392
      %v1429 = vmul.f32 %v1415, %v1393
      %v1430 = vmul.f32 %v1415, %v1394
      %v1431 = vmul.f32 %v1415, %v1395
      %v1432 = vsel %vm1396, %v1380, %v1416
      %v1433 = vsel %vm1397, %v1381, %v1417
      %v1434 = vsel %vm1398, %v1382, %v1418
      %v1435 = vsel %vm1399, %v1383, %v1419
      %v1436 = vsel %vm1400, %v1384, %v1420
      %v1437 = vsel %vm1401, %v1385, %v1421
      %v1438 = vsel %vm1402, %v1386, %v1422
      %v1439 = vsel %vm1403, %v1387, %v1423
      %v1440 = vsel %vm1404, %v1388, %v1424
      %v1441 = vsel %vm1405, %v1389, %v1425
      %v1442 = vsel %vm1406, %v1390, %v1426
      %v1443 = vsel %vm1407, %v1391, %v1427
      %v1444 = vsel %vm1408, %v1392, %v1428
      %v1445 = vsel %vm1409, %v1393, %v1429
      %v1446 = vsel %vm1410, %v1394, %v1430
      %v1447 = vsel %vm1411, %v1395, %v1431
      %1464 = vrot.lane.b32.xlu0 %v1432, 16
      %v1465 = vpop.permute.xlu0 %1464
      %1466 = vrot.lane.b32.xlu0 %v1433, 16
      %v1467 = vpop.permute.xlu0 %1466
      %1468 = vrot.lane.b32.xlu0 %v1434, 16
      %v1469 = vpop.permute.xlu0 %1468
      %1470 = vrot.lane.b32.xlu0 %v1435, 16
      %v1471 = vpop.permute.xlu0 %1470
      %1472 = vrot.lane.b32.xlu0 %v1436, 16
      %v1473 = vpop.permute.xlu0 %1472
      %1474 = vrot.lane.b32.xlu0 %v1437, 16
      %v1475 = vpop.permute.xlu0 %1474
      %1476 = vrot.lane.b32.xlu0 %v1438, 16
      %v1477 = vpop.permute.xlu0 %1476
      %1478 = vrot.lane.b32.xlu0 %v1439, 16
      %v1479 = vpop.permute.xlu0 %1478
      %1480 = vrot.lane.b32.xlu0 %v1440, 16
      %v1481 = vpop.permute.xlu0 %1480
      %1482 = vrot.lane.b32.xlu0 %v1441, 16
      %v1483 = vpop.permute.xlu0 %1482
      %1484 = vrot.lane.b32.xlu0 %v1442, 16
      %v1485 = vpop.permute.xlu0 %1484
      %1486 = vrot.lane.b32.xlu0 %v1443, 16
      %v1487 = vpop.permute.xlu0 %1486
      %1488 = vrot.lane.b32.xlu0 %v1444, 16
      %v1489 = vpop.permute.xlu0 %1488
      %1490 = vrot.lane.b32.xlu0 %v1445, 16
      %v1491 = vpop.permute.xlu0 %1490
      %1492 = vrot.lane.b32.xlu0 %v1446, 16
      %v1493 = vpop.permute.xlu0 %1492
      %1494 = vrot.lane.b32.xlu0 %v1447, 16
      %v1495 = vpop.permute.xlu0 %1494
      %vm1512 = vcmask 195712
      %1513 = vst.msk [vmem:[%s439 + $0x1] sm:$0xff] %vm1512, %v1465
      %1514 = vst.msk [vmem:[%s439 + $0x9] sm:$0xff] %vm1512, %v1467
      %1515 = vst.msk [vmem:[%s439 + $0x19] sm:$0xff] %vm1512, %v1469
      %1516 = vst.msk [vmem:[%s439 + $0x21] sm:$0xff] %vm1512, %v1471
      %1517 = vst.msk [vmem:[%s439 + $0x31] sm:$0xff] %vm1512, %v1473
      %1518 = vst.msk [vmem:[%s439 + $0x39] sm:$0xff] %vm1512, %v1475
      %1519 = vst.msk [vmem:[%s439 + $0x49] sm:$0xff] %vm1512, %v1477
      %1520 = vst.msk [vmem:[%s439 + $0x51] sm:$0xff] %vm1512, %v1479
      %1521 = vst.msk [vmem:[%s439 + $0x61] sm:$0xff] %vm1512, %v1481
      %1522 = vst.msk [vmem:[%s439 + $0x69] sm:$0xff] %vm1512, %v1483
      %1523 = vst.msk [vmem:[%s439 + $0x79] sm:$0xff] %vm1512, %v1485
      %1524 = vst.msk [vmem:[%s439 + $0x81] sm:$0xff] %vm1512, %v1487
      %1525 = vst.msk [vmem:[%s439 + $0x91] sm:$0xff] %vm1512, %v1489
      %1526 = vst.msk [vmem:[%s439 + $0x99] sm:$0xff] %vm1512, %v1491
      %1527 = vst.msk [vmem:[%s439 + $0xa9] sm:$0xff] %vm1512, %v1493
      %1528 = vst.msk [vmem:[%s439 + $0xb1] sm:$0xff] %vm1512, %v1495
      %s1529 = scalar_lea.vmem [#allocation2], 144
      %v1530 = vld [vmem:[%s1529] sm:$0xff]
      %v1531 = vld [vmem:[%s1529 + $0x8] sm:$0xff]
      %v1532 = vld [vmem:[%s1529 + $0x10] sm:$0x3]
      %v1533 = vld [vmem:[%s1529 + $0x18] sm:$0xff]
      %v1534 = vld [vmem:[%s1529 + $0x20] sm:$0xff]
      %v1535 = vld [vmem:[%s1529 + $0x28] sm:$0x3]
      %v1536 = vld [vmem:[%s1529 + $0x30] sm:$0xff]
      %v1537 = vld [vmem:[%s1529 + $0x38] sm:$0xff]
      %v1538 = vld [vmem:[%s1529 + $0x40] sm:$0x3]
      %v1539 = vld [vmem:[%s1529 + $0x48] sm:$0xff]
      %v1540 = vld [vmem:[%s1529 + $0x50] sm:$0xff]
      %v1541 = vld [vmem:[%s1529 + $0x58] sm:$0x3]
      %v1542 = vld [vmem:[%s1529 + $0x60] sm:$0xff]
      %v1543 = vld [vmem:[%s1529 + $0x68] sm:$0xff]
      %v1544 = vld [vmem:[%s1529 + $0x70] sm:$0x3]
      %v1545 = vld [vmem:[%s1529 + $0x78] sm:$0xff]
      %v1546 = vld [vmem:[%s1529 + $0x80] sm:$0xff]
      %v1547 = vld [vmem:[%s1529 + $0x88] sm:$0x3]
      %v1548 = vld [vmem:[%s1529 + $0x90] sm:$0xff]
      %v1549 = vld [vmem:[%s1529 + $0x98] sm:$0xff]
      %v1550 = vld [vmem:[%s1529 + $0xa0] sm:$0x3]
      %v1551 = vld [vmem:[%s1529 + $0xa8] sm:$0xff]
      %v1552 = vld [vmem:[%s1529 + $0xb0] sm:$0xff]
      %v1553 = vld [vmem:[%s1529 + $0xb8] sm:$0x3]
      %v1554 = vld [vmem:[%s439] sm:$0xff]
      %v1555 = vld [vmem:[%s439 + $0x8] sm:$0xff]
      %v1556 = vld [vmem:[%s439 + $0x10] sm:$0x3]
      %v1557 = vld [vmem:[%s439 + $0x18] sm:$0xff]
      %v1558 = vld [vmem:[%s439 + $0x20] sm:$0xff]
      %v1559 = vld [vmem:[%s439 + $0x28] sm:$0x3]
      %v1560 = vld [vmem:[%s439 + $0x30] sm:$0xff]
      %v1561 = vld [vmem:[%s439 + $0x38] sm:$0xff]
      %v1562 = vld [vmem:[%s439 + $0x40] sm:$0x3]
      %v1563 = vld [vmem:[%s439 + $0x48] sm:$0xff]
      %v1564 = vld [vmem:[%s439 + $0x50] sm:$0xff]
      %v1565 = vld [vmem:[%s439 + $0x58] sm:$0x3]
      %v1566 = vld [vmem:[%s439 + $0x60] sm:$0xff]
      %v1567 = vld [vmem:[%s439 + $0x68] sm:$0xff]
      %v1568 = vld [vmem:[%s439 + $0x70] sm:$0x3]
      %v1569 = vld [vmem:[%s439 + $0x78] sm:$0xff]
      %v1570 = vld [vmem:[%s439 + $0x80] sm:$0xff]
      %v1571 = vld [vmem:[%s439 + $0x88] sm:$0x3]
      %v1572 = vld [vmem:[%s439 + $0x90] sm:$0xff]
      %v1573 = vld [vmem:[%s439 + $0x98] sm:$0xff]
      %v1574 = vld [vmem:[%s439 + $0xa0] sm:$0x3]
      %v1575 = vld [vmem:[%s439 + $0xa8] sm:$0xff]
      %v1576 = vld [vmem:[%s439 + $0xb0] sm:$0xff]
      %v1577 = vld [vmem:[%s439 + $0xb8] sm:$0x3]
      %v1602 = vrot.slane %v1530, 1
      %v1603 = vrot.slane %v1531, 1
      %v1604 = vsel %vm530, %v1602, %v1603
      %v1605 = vrot.slane %v1532, 1
      %v1606 = vsel %vm530, %v1603, %v1605
      %v1607 = vrot.slane %v1533, 1
      %v1608 = vrot.slane %v1534, 1
      %v1609 = vsel %vm530, %v1607, %v1608
      %v1610 = vrot.slane %v1535, 1
      %v1611 = vsel %vm530, %v1608, %v1610
      %v1612 = vrot.slane %v1536, 1
      %v1613 = vrot.slane %v1537, 1
      %v1614 = vsel %vm530, %v1612, %v1613
      %v1615 = vrot.slane %v1538, 1
      %v1616 = vsel %vm530, %v1613, %v1615
      %v1617 = vrot.slane %v1539, 1
      %v1618 = vrot.slane %v1540, 1
      %v1619 = vsel %vm530, %v1617, %v1618
      %v1620 = vrot.slane %v1541, 1
      %v1621 = vsel %vm530, %v1618, %v1620
      %v1622 = vrot.slane %v1542, 1
      %v1623 = vrot.slane %v1543, 1
      %v1624 = vsel %vm530, %v1622, %v1623
      %v1625 = vrot.slane %v1544, 1
      %v1626 = vsel %vm530, %v1623, %v1625
      %v1627 = vrot.slane %v1545, 1
      %v1628 = vrot.slane %v1546, 1
      %v1629 = vsel %vm530, %v1627, %v1628
      %v1630 = vrot.slane %v1547, 1
      %v1631 = vsel %vm530, %v1628, %v1630
      %v1632 = vrot.slane %v1548, 1
      %v1633 = vrot.slane %v1549, 1
      %v1634 = vsel %vm530, %v1632, %v1633
      %v1635 = vrot.slane %v1550, 1
      %v1636 = vsel %vm530, %v1633, %v1635
      %v1637 = vrot.slane %v1551, 1
      %v1638 = vrot.slane %v1552, 1
      %v1639 = vsel %vm530, %v1637, %v1638
      %v1640 = vrot.slane %v1553, 1
      %v1641 = vsel %vm530, %v1638, %v1640
      %1642 = vrot.lane.b32.xlu0 %v1604, 32
      %v1643 = vpop.permute.xlu0 %1642
      %1644 = vrot.lane.b32.xlu0 %v1606, 32
      %v1645 = vpop.permute.xlu0 %1644
      %1646 = vrot.lane.b32.xlu0 %v1609, 32
      %v1647 = vpop.permute.xlu0 %1646
      %1648 = vrot.lane.b32.xlu0 %v1611, 32
      %v1649 = vpop.permute.xlu0 %1648
      %1650 = vrot.lane.b32.xlu0 %v1614, 32
      %v1651 = vpop.permute.xlu0 %1650
      %1652 = vrot.lane.b32.xlu0 %v1616, 32
      %v1653 = vpop.permute.xlu0 %1652
      %1654 = vrot.lane.b32.xlu0 %v1619, 32
      %v1655 = vpop.permute.xlu0 %1654
      %1656 = vrot.lane.b32.xlu0 %v1621, 32
      %v1657 = vpop.permute.xlu0 %1656
      %1658 = vrot.lane.b32.xlu0 %v1624, 32
      %v1659 = vpop.permute.xlu0 %1658
      %1660 = vrot.lane.b32.xlu0 %v1626, 32
      %v1661 = vpop.permute.xlu0 %1660
      %1662 = vrot.lane.b32.xlu0 %v1629, 32
      %v1663 = vpop.permute.xlu0 %1662
      %1664 = vrot.lane.b32.xlu0 %v1631, 32
      %v1665 = vpop.permute.xlu0 %1664
      %1666 = vrot.lane.b32.xlu0 %v1634, 32
      %v1667 = vpop.permute.xlu0 %1666
      %1668 = vrot.lane.b32.xlu0 %v1636, 32
      %v1669 = vpop.permute.xlu0 %1668
      %1670 = vrot.lane.b32.xlu0 %v1639, 32
      %v1671 = vpop.permute.xlu0 %1670
      %1672 = vrot.lane.b32.xlu0 %v1641, 32
      %v1673 = vpop.permute.xlu0 %1672
      %v1690 = vrot.slane %v1530, 2
      %v1691 = vrot.slane %v1531, 2
      %v1692 = vsel %vm619, %v1690, %v1691
      %v1693 = vrot.slane %v1532, 2
      %v1694 = vsel %vm619, %v1691, %v1693
      %v1695 = vrot.slane %v1533, 2
      %v1696 = vrot.slane %v1534, 2
      %v1697 = vsel %vm619, %v1695, %v1696
      %v1698 = vrot.slane %v1535, 2
      %v1699 = vsel %vm619, %v1696, %v1698
      %v1700 = vrot.slane %v1536, 2
      %v1701 = vrot.slane %v1537, 2
      %v1702 = vsel %vm619, %v1700, %v1701
      %v1703 = vrot.slane %v1538, 2
      %v1704 = vsel %vm619, %v1701, %v1703
      %v1705 = vrot.slane %v1539, 2
      %v1706 = vrot.slane %v1540, 2
      %v1707 = vsel %vm619, %v1705, %v1706
      %v1708 = vrot.slane %v1541, 2
      %v1709 = vsel %vm619, %v1706, %v1708
      %v1710 = vrot.slane %v1542, 2
      %v1711 = vrot.slane %v1543, 2
      %v1712 = vsel %vm619, %v1710, %v1711
      %v1713 = vrot.slane %v1544, 2
      %v1714 = vsel %vm619, %v1711, %v1713
      %v1715 = vrot.slane %v1545, 2
      %v1716 = vrot.slane %v1546, 2
      %v1717 = vsel %vm619, %v1715, %v1716
      %v1718 = vrot.slane %v1547, 2
      %v1719 = vsel %vm619, %v1716, %v1718
      %v1720 = vrot.slane %v1548, 2
      %v1721 = vrot.slane %v1549, 2
      %v1722 = vsel %vm619, %v1720, %v1721
      %v1723 = vrot.slane %v1550, 2
      %v1724 = vsel %vm619, %v1721, %v1723
      %v1725 = vrot.slane %v1551, 2
      %v1726 = vrot.slane %v1552, 2
      %v1727 = vsel %vm619, %v1725, %v1726
      %v1728 = vrot.slane %v1553, 2
      %v1729 = vsel %vm619, %v1726, %v1728
      %1730 = vrot.lane.b32.xlu0 %v1692, 64
      %v1731 = vpop.permute.xlu0 %1730
      %1732 = vrot.lane.b32.xlu0 %v1694, 64
      %v1733 = vpop.permute.xlu0 %1732
      %1734 = vrot.lane.b32.xlu0 %v1697, 64
      %v1735 = vpop.permute.xlu0 %1734
      %1736 = vrot.lane.b32.xlu0 %v1699, 64
      %v1737 = vpop.permute.xlu0 %1736
      %1738 = vrot.lane.b32.xlu0 %v1702, 64
      %v1739 = vpop.permute.xlu0 %1738
      %1740 = vrot.lane.b32.xlu0 %v1704, 64
      %v1741 = vpop.permute.xlu0 %1740
      %1742 = vrot.lane.b32.xlu0 %v1707, 64
      %v1743 = vpop.permute.xlu0 %1742
      %1744 = vrot.lane.b32.xlu0 %v1709, 64
      %v1745 = vpop.permute.xlu0 %1744
      %1746 = vrot.lane.b32.xlu0 %v1712, 64
      %v1747 = vpop.permute.xlu0 %1746
      %1748 = vrot.lane.b32.xlu0 %v1714, 64
      %v1749 = vpop.permute.xlu0 %1748
      %1750 = vrot.lane.b32.xlu0 %v1717, 64
      %v1751 = vpop.permute.xlu0 %1750
      %1752 = vrot.lane.b32.xlu0 %v1719, 64
      %v1753 = vpop.permute.xlu0 %1752
      %1754 = vrot.lane.b32.xlu0 %v1722, 64
      %v1755 = vpop.permute.xlu0 %1754
      %1756 = vrot.lane.b32.xlu0 %v1724, 64
      %v1757 = vpop.permute.xlu0 %1756
      %1758 = vrot.lane.b32.xlu0 %v1727, 64
      %v1759 = vpop.permute.xlu0 %1758
      %1760 = vrot.lane.b32.xlu0 %v1729, 64
      %v1761 = vpop.permute.xlu0 %1760
      %1794 = vrot.lane.b32.xlu0 %v1554, 96
      %v1795 = vpop.permute.xlu0 %1794
      %1796 = vrot.lane.b32.xlu0 %v1555, 96
      %v1797 = vpop.permute.xlu0 %1796
      %1798 = vrot.lane.b32.xlu0 %v1557, 96
      %v1799 = vpop.permute.xlu0 %1798
      %1800 = vrot.lane.b32.xlu0 %v1558, 96
      %v1801 = vpop.permute.xlu0 %1800
      %1802 = vrot.lane.b32.xlu0 %v1560, 96
      %v1803 = vpop.permute.xlu0 %1802
      %1804 = vrot.lane.b32.xlu0 %v1561, 96
      %v1805 = vpop.permute.xlu0 %1804
      %1806 = vrot.lane.b32.xlu0 %v1563, 96
      %v1807 = vpop.permute.xlu0 %1806
      %1808 = vrot.lane.b32.xlu0 %v1564, 96
      %v1809 = vpop.permute.xlu0 %1808
      %1810 = vrot.lane.b32.xlu0 %v1566, 96
      %v1811 = vpop.permute.xlu0 %1810
      %1812 = vrot.lane.b32.xlu0 %v1567, 96
      %v1813 = vpop.permute.xlu0 %1812
      %1814 = vrot.lane.b32.xlu0 %v1569, 96
      %v1815 = vpop.permute.xlu0 %1814
      %1816 = vrot.lane.b32.xlu0 %v1570, 96
      %v1817 = vpop.permute.xlu0 %1816
      %1818 = vrot.lane.b32.xlu0 %v1572, 96
      %v1819 = vpop.permute.xlu0 %1818
      %1820 = vrot.lane.b32.xlu0 %v1573, 96
      %v1821 = vpop.permute.xlu0 %1820
      %1822 = vrot.lane.b32.xlu0 %v1575, 96
      %v1823 = vpop.permute.xlu0 %1822
      %1824 = vrot.lane.b32.xlu0 %v1576, 96
      %v1825 = vpop.permute.xlu0 %1824
      %v1850 = vrot.slane %v1554, 1
      %v1851 = vrot.slane %v1555, 1
      %v1852 = vsel %vm530, %v1850, %v1851
      %v1853 = vrot.slane %v1556, 1
      %v1854 = vsel %vm530, %v1851, %v1853
      %v1855 = vrot.slane %v1557, 1
      %v1856 = vrot.slane %v1558, 1
      %v1857 = vsel %vm530, %v1855, %v1856
      %v1858 = vrot.slane %v1559, 1
      %v1859 = vsel %vm530, %v1856, %v1858
      %v1860 = vrot.slane %v1560, 1
      %v1861 = vrot.slane %v1561, 1
      %v1862 = vsel %vm530, %v1860, %v1861
      %v1863 = vrot.slane %v1562, 1
      %v1864 = vsel %vm530, %v1861, %v1863
      %v1865 = vrot.slane %v1563, 1
      %v1866 = vrot.slane %v1564, 1
      %v1867 = vsel %vm530, %v1865, %v1866
      %v1868 = vrot.slane %v1565, 1
      %v1869 = vsel %vm530, %v1866, %v1868
      %v1870 = vrot.slane %v1566, 1
      %v1871 = vrot.slane %v1567, 1
      %v1872 = vsel %vm530, %v1870, %v1871
      %v1873 = vrot.slane %v1568, 1
      %v1874 = vsel %vm530, %v1871, %v1873
      %v1875 = vrot.slane %v1569, 1
      %v1876 = vrot.slane %v1570, 1
      %v1877 = vsel %vm530, %v1875, %v1876
      %v1878 = vrot.slane %v1571, 1
      %v1879 = vsel %vm530, %v1876, %v1878
      %v1880 = vrot.slane %v1572, 1
      %v1881 = vrot.slane %v1573, 1
      %v1882 = vsel %vm530, %v1880, %v1881
      %v1883 = vrot.slane %v1574, 1
      %v1884 = vsel %vm530, %v1881, %v1883
      %v1885 = vrot.slane %v1575, 1
      %v1886 = vrot.slane %v1576, 1
      %v1887 = vsel %vm530, %v1885, %v1886
      %v1888 = vrot.slane %v1577, 1
      %v1889 = vsel %vm530, %v1886, %v1888
      %v1906 = vrot.slane %v1554, 2
      %v1907 = vrot.slane %v1555, 2
      %v1908 = vsel %vm619, %v1906, %v1907
      %v1909 = vrot.slane %v1556, 2
      %v1910 = vsel %vm619, %v1907, %v1909
      %v1911 = vrot.slane %v1557, 2
      %v1912 = vrot.slane %v1558, 2
      %v1913 = vsel %vm619, %v1911, %v1912
      %v1914 = vrot.slane %v1559, 2
      %v1915 = vsel %vm619, %v1912, %v1914
      %v1916 = vrot.slane %v1560, 2
      %v1917 = vrot.slane %v1561, 2
      %v1918 = vsel %vm619, %v1916, %v1917
      %v1919 = vrot.slane %v1562, 2
      %v1920 = vsel %vm619, %v1917, %v1919
      %v1921 = vrot.slane %v1563, 2
      %v1922 = vrot.slane %v1564, 2
      %v1923 = vsel %vm619, %v1921, %v1922
      %v1924 = vrot.slane %v1565, 2
      %v1925 = vsel %vm619, %v1922, %v1924
      %v1926 = vrot.slane %v1566, 2
      %v1927 = vrot.slane %v1567, 2
      %v1928 = vsel %vm619, %v1926, %v1927
      %v1929 = vrot.slane %v1568, 2
      %v1930 = vsel %vm619, %v1927, %v1929
      %v1931 = vrot.slane %v1569, 2
      %v1932 = vrot.slane %v1570, 2
      %v1933 = vsel %vm619, %v1931, %v1932
      %v1934 = vrot.slane %v1571, 2
      %v1935 = vsel %vm619, %v1932, %v1934
      %v1936 = vrot.slane %v1572, 2
      %v1937 = vrot.slane %v1573, 2
      %v1938 = vsel %vm619, %v1936, %v1937
      %v1939 = vrot.slane %v1574, 2
      %v1940 = vsel %vm619, %v1937, %v1939
      %v1941 = vrot.slane %v1575, 2
      %v1942 = vrot.slane %v1576, 2
      %v1943 = vsel %vm619, %v1941, %v1942
      %v1944 = vrot.slane %v1577, 2
      %v1945 = vsel %vm619, %v1942, %v1944
      %1946 = vrot.lane.b32.xlu0 %v1908, 32
      %v1947 = vpop.permute.xlu0 %1946
      %1948 = vrot.lane.b32.xlu0 %v1910, 32
      %v1949 = vpop.permute.xlu0 %1948
      %1950 = vrot.lane.b32.xlu0 %v1913, 32
      %v1951 = vpop.permute.xlu0 %1950
      %1952 = vrot.lane.b32.xlu0 %v1915, 32
      %v1953 = vpop.permute.xlu0 %1952
      %1954 = vrot.lane.b32.xlu0 %v1918, 32
      %v1955 = vpop.permute.xlu0 %1954
      %1956 = vrot.lane.b32.xlu0 %v1920, 32
      %v1957 = vpop.permute.xlu0 %1956
      %1958 = vrot.lane.b32.xlu0 %v1923, 32
      %v1959 = vpop.permute.xlu0 %1958
      %1960 = vrot.lane.b32.xlu0 %v1925, 32
      %v1961 = vpop.permute.xlu0 %1960
      %1962 = vrot.lane.b32.xlu0 %v1928, 32
      %v1963 = vpop.permute.xlu0 %1962
      %1964 = vrot.lane.b32.xlu0 %v1930, 32
      %v1965 = vpop.permute.xlu0 %1964
      %1966 = vrot.lane.b32.xlu0 %v1933, 32
      %v1967 = vpop.permute.xlu0 %1966
      %1968 = vrot.lane.b32.xlu0 %v1935, 32
      %v1969 = vpop.permute.xlu0 %1968
      %1970 = vrot.lane.b32.xlu0 %v1938, 32
      %v1971 = vpop.permute.xlu0 %1970
      %1972 = vrot.lane.b32.xlu0 %v1940, 32
      %v1973 = vpop.permute.xlu0 %1972
      %1974 = vrot.lane.b32.xlu0 %v1943, 32
      %v1975 = vpop.permute.xlu0 %1974
      %1976 = vrot.lane.b32.xlu0 %v1945, 32
      %v1977 = vpop.permute.xlu0 %1976
      %v1994 = vsel %vm309, %v1530, %v1643
      %v1995 = vsel %vm309, %v1531, %v1645
      %v1996 = vsel %vm309, %v1533, %v1647
      %v1997 = vsel %vm309, %v1534, %v1649
      %v1998 = vsel %vm309, %v1536, %v1651
      %v1999 = vsel %vm309, %v1537, %v1653
      %v2000 = vsel %vm309, %v1539, %v1655
      %v2001 = vsel %vm309, %v1540, %v1657
      %v2002 = vsel %vm309, %v1542, %v1659
      %v2003 = vsel %vm309, %v1543, %v1661
      %v2004 = vsel %vm309, %v1545, %v1663
      %v2005 = vsel %vm309, %v1546, %v1665
      %v2006 = vsel %vm309, %v1548, %v1667
      %v2007 = vsel %vm309, %v1549, %v1669
      %v2008 = vsel %vm309, %v1551, %v1671
      %v2009 = vsel %vm309, %v1552, %v1673
      %v2010 = vsel %vm940, %v1994, %v1731
      %v2011 = vsel %vm940, %v1995, %v1733
      %v2012 = vsel %vm940, %v1996, %v1735
      %v2013 = vsel %vm940, %v1997, %v1737
      %v2014 = vsel %vm940, %v1998, %v1739
      %v2015 = vsel %vm940, %v1999, %v1741
      %v2016 = vsel %vm940, %v2000, %v1743
      %v2017 = vsel %vm940, %v2001, %v1745
      %v2018 = vsel %vm940, %v2002, %v1747
      %v2019 = vsel %vm940, %v2003, %v1749
      %v2020 = vsel %vm940, %v2004, %v1751
      %v2021 = vsel %vm940, %v2005, %v1753
      %v2022 = vsel %vm940, %v2006, %v1755
      %v2023 = vsel %vm940, %v2007, %v1757
      %v2024 = vsel %vm940, %v2008, %v1759
      %v2025 = vsel %vm940, %v2009, %v1761
      %v2026 = vsel %vm957, %v2010, %v1795
      %v2027 = vsel %vm957, %v2011, %v1797
      %v2028 = vsel %vm957, %v2012, %v1799
      %v2029 = vsel %vm957, %v2013, %v1801
      %v2030 = vsel %vm957, %v2014, %v1803
      %v2031 = vsel %vm957, %v2015, %v1805
      %v2032 = vsel %vm957, %v2016, %v1807
      %v2033 = vsel %vm957, %v2017, %v1809
      %v2034 = vsel %vm957, %v2018, %v1811
      %v2035 = vsel %vm957, %v2019, %v1813
      %v2036 = vsel %vm957, %v2020, %v1815
      %v2037 = vsel %vm957, %v2021, %v1817
      %v2038 = vsel %vm957, %v2022, %v1819
      %v2039 = vsel %vm957, %v2023, %v1821
      %v2040 = vsel %vm957, %v2024, %v1823
      %v2041 = vsel %vm957, %v2025, %v1825
      %v2042 = vsel %vm309, %v1852, %v1947
      %v2043 = vsel %vm309, %v1854, %v1949
      %v2044 = vsel %vm309, %v1857, %v1951
      %v2045 = vsel %vm309, %v1859, %v1953
      %v2046 = vsel %vm309, %v1862, %v1955
      %v2047 = vsel %vm309, %v1864, %v1957
      %v2048 = vsel %vm309, %v1867, %v1959
      %v2049 = vsel %vm309, %v1869, %v1961
      %v2050 = vsel %vm309, %v1872, %v1963
      %v2051 = vsel %vm309, %v1874, %v1965
      %v2052 = vsel %vm309, %v1877, %v1967
      %v2053 = vsel %vm309, %v1879, %v1969
      %v2054 = vsel %vm309, %v1882, %v1971
      %v2055 = vsel %vm309, %v1884, %v1973
      %v2056 = vsel %vm309, %v1887, %v1975
      %v2057 = vsel %vm309, %v1889, %v1977
      %v2058 = vpack.c.bf16 %v2027, %v2026
      %v2059 = vpack.c.bf16 %v2043, %v2042
      %v2060 = vpack.c.bf16 %v2029, %v2028
      %v2061 = vpack.c.bf16 %v2045, %v2044
      %v2062 = vpack.c.bf16 %v2031, %v2030
      %v2063 = vpack.c.bf16 %v2047, %v2046
      %v2064 = vpack.c.bf16 %v2033, %v2032
      %v2065 = vpack.c.bf16 %v2049, %v2048
      %v2066 = vpack.c.bf16 %v2035, %v2034
      %v2067 = vpack.c.bf16 %v2051, %v2050
      %v2068 = vpack.c.bf16 %v2037, %v2036
      %v2069 = vpack.c.bf16 %v2053, %v2052
      %v2070 = vpack.c.bf16 %v2039, %v2038
      %v2071 = vpack.c.bf16 %v2055, %v2054
      %v2072 = vpack.c.bf16 %v2041, %v2040
      %v2073 = vpack.c.bf16 %v2057, %v2056
      %s2074 = scalar_lea.vmem %s1, 96
      %v2075 = vld [vmem:[%s2074] sm:$0xf]
      %v2076 = vld [vmem:[%s2074 + $0x4] sm:$0xf]
      %v2077 = vld [vmem:[%s2074 + $0x8] sm:$0xf]
      %v2078 = vld [vmem:[%s2074 + $0xc] sm:$0xf]
      %v2079 = vld [vmem:[%s2074 + $0x10] sm:$0xf]
      %v2080 = vld [vmem:[%s2074 + $0x14] sm:$0xf]
      %v2081 = vld [vmem:[%s2074 + $0x18] sm:$0xf]
      %v2082 = vld [vmem:[%s2074 + $0x1c] sm:$0xf]
      %v2083 = vld [vmem:[%s2074 + $0x20] sm:$0xf]
      %v2084 = vld [vmem:[%s2074 + $0x24] sm:$0xf]
      %v2085 = vld [vmem:[%s2074 + $0x28] sm:$0xf]
      %v2086 = vld [vmem:[%s2074 + $0x2c] sm:$0xf]
      %v2087 = vld [vmem:[%s2074 + $0x30] sm:$0xf]
      %v2088 = vld [vmem:[%s2074 + $0x34] sm:$0xf]
      %v2089 = vld [vmem:[%s2074 + $0x38] sm:$0xf]
      %v2090 = vld [vmem:[%s2074 + $0x3c] sm:$0xf]
      %v2091 = vld [vmem:[%s2074 + $0x40] sm:$0xf]
      %v2092 = vld [vmem:[%s2074 + $0x44] sm:$0xf]
      %v2093 = vld [vmem:[%s2074 + $0x48] sm:$0xf]
      %v2094 = vld [vmem:[%s2074 + $0x4c] sm:$0xf]
      %v2095 = vld [vmem:[%s2074 + $0x50] sm:$0xf]
      %v2096 = vld [vmem:[%s2074 + $0x54] sm:$0xf]
      %v2097 = vld [vmem:[%s2074 + $0x58] sm:$0xf]
      %v2098 = vld [vmem:[%s2074 + $0x5c] sm:$0xf]
      %s2099 = scalar_lea.vmem %s2, 4
      %v2100 = vld [vmem:[%s2099] sm:$0xf]
      %v2101 = vlaneseq
      %v2102 = vshrl.u32 %v2101, 7
      %v2103 = vsub.s32 0, %v2102
      %v2104 = vrot.slane %v2100, %v2103
      %v2129 = vunpack.c.l.b16 %v2075
      %v2130 = vunpack.c.l.b16 %v2076
      %v2131 = vunpack.c.l.b16 %v2077
      %v2132 = vunpack.c.l.b16 %v2078
      %v2133 = vunpack.c.l.b16 %v2079
      %v2134 = vunpack.c.l.b16 %v2080
      %v2135 = vunpack.c.l.b16 %v2081
      %v2136 = vunpack.c.l.b16 %v2082
      %v2137 = vunpack.c.l.b16 %v2083
      %v2138 = vunpack.c.l.b16 %v2084
      %v2139 = vunpack.c.l.b16 %v2085
      %v2140 = vunpack.c.l.b16 %v2086
      %v2141 = vunpack.c.l.b16 %v2087
      %v2142 = vunpack.c.l.b16 %v2088
      %v2143 = vunpack.c.l.b16 %v2089
      %v2144 = vunpack.c.l.b16 %v2090
      %v2145 = vunpack.c.l.b16 %v2091
      %v2146 = vunpack.c.l.b16 %v2092
      %v2147 = vunpack.c.l.b16 %v2093
      %v2148 = vunpack.c.l.b16 %v2094
      %v2149 = vunpack.c.l.b16 %v2095
      %v2150 = vunpack.c.l.b16 %v2096
      %v2151 = vunpack.c.l.b16 %v2097
      %v2152 = vunpack.c.l.b16 %v2098
      %v2153 = vpack.c.b16 %v2130, %v2129
      %v2154 = vpack.c.b16 %v2132, %v2131
      %v2155 = vpack.c.b16 %v2134, %v2133
      %v2156 = vpack.c.b16 %v2136, %v2135
      %v2157 = vpack.c.b16 %v2138, %v2137
      %v2158 = vpack.c.b16 %v2140, %v2139
      %v2159 = vpack.c.b16 %v2142, %v2141
      %v2160 = vpack.c.b16 %v2144, %v2143
      %v2161 = vpack.c.b16 %v2146, %v2145
      %v2162 = vpack.c.b16 %v2148, %v2147
      %v2163 = vpack.c.b16 %v2150, %v2149
      %v2164 = vpack.c.b16 %v2152, %v2151
      %v2178 = vsel %vm940, %v2059, 0
      %v2181 = vsel %vm940, %v2061, 0
      %v2184 = vsel %vm940, %v2063, 0
      %v2187 = vsel %vm940, %v2065, 0
      %v2190 = vsel %vm940, %v2067, 0
      %v2193 = vsel %vm940, %v2069, 0
      %v2196 = vsel %vm940, %v2071, 0
      %v2199 = vsel %vm940, %v2073, 0
      %2201 = vmatprep.subr.bf16.mxu0 0
      %2202 = vmatpush1.bf16.msra.mxu0 %v2160
      %2203 = vmatprep.subr.bf16.mxu0 0
      %2204 = vmatpush1.bf16.msra.mxu0 %v2159
      %2205 = vmatprep.subr.bf16.mxu0 0
      %2206 = vmatpush1.bf16.msra.mxu0 %v2158
      %2207 = vmatprep.subr.bf16.mxu0 0
      %2208 = vmatpush1.bf16.msra.mxu0 %v2157
      %2209 = vmatprep.subr.bf16.mxu0 0
      %2210 = vmatpush1.bf16.msra.mxu0 %v2156
      %2211 = vmatprep.subr.bf16.mxu0 0
      %2212 = vmatpush1.bf16.msra.mxu0 %v2155
      %2213 = vmatprep.subr.bf16.mxu0 0
      %2214 = vmatpush1.bf16.msra.mxu0 %v2154
      %2215 = vmatprep.subr.bf16.mxu0 0
      %2216 = vmatpush1.bf16.msra.mxu0 %v2153
      %2217 = vmatprep.subr.bf16.mxu0 0
      %2218 = vmatpush2.bf16.msra.mxu0 0
      %2219 = vmatprep.subr.bf16.mxu0 0
      %2220 = vmatpush2.bf16.msra.mxu0 0
      %2221 = vmatprep.subr.bf16.mxu0 0
      %2222 = vmatpush2.bf16.msra.mxu0 0
      %2223 = vmatprep.subr.bf16.mxu0 0
      %2224 = vmatpush2.bf16.msra.mxu0 0
      %2225 = vmatprep.subr.bf16.mxu0 0
      %2226 = vmatpush2.bf16.msra.mxu0 %v2164
      %2227 = vmatprep.subr.bf16.mxu0 0
      %2228 = vmatpush2.bf16.msra.mxu0 %v2163
      %2229 = vmatprep.subr.bf16.mxu0 0
      %2230 = vmatpush2.bf16.msra.mxu0 %v2162
      %2231 = vmatprep.subr.bf16.mxu0 0
      %2232 = vmatpush2.bf16.msra.mxu0 %v2161
      %2233 = vmatprep.mubr.bf16.mxu0 %v2178
      %2234 = vmatmul.mubr.bf16.gmra.mxu0 %v2058
      %v2235 = vpop.f32.mrf.mxu0
      %v2236 = vadd.f32 %v2104, %v2235
      %v2237 = vpop.f32.mrf.mxu0
      %v2238 = vpop.f32.mrf.mxu0
      %v2239 = vadd.f32 %v2104, %v2238
      %v2240 = vpop.f32.mrf.mxu0
      %2241 = vmatprep.mubr.bf16.mxu0 %v2181
      %2242 = vmatmul.mubr.bf16.gmra.mxu0 %v2060
      %v2243 = vpop.f32.mrf.mxu0
      %v2244 = vadd.f32 %v2104, %v2243
      %v2245 = vpop.f32.mrf.mxu0
      %v2246 = vpop.f32.mrf.mxu0
      %v2247 = vadd.f32 %v2104, %v2246
      %v2248 = vpop.f32.mrf.mxu0
      %2249 = vmatprep.mubr.bf16.mxu0 %v2184
      %2250 = vmatmul.mubr.bf16.gmra.mxu0 %v2062
      %v2251 = vpop.f32.mrf.mxu0
      %v2252 = vadd.f32 %v2104, %v2251
      %v2253 = vpop.f32.mrf.mxu0
      %v2254 = vpop.f32.mrf.mxu0
      %v2255 = vadd.f32 %v2104, %v2254
      %v2256 = vpop.f32.mrf.mxu0
      %2257 = vmatprep.mubr.bf16.mxu0 %v2187
      %2258 = vmatmul.mubr.bf16.gmra.mxu0 %v2064
      %v2259 = vpop.f32.mrf.mxu0
      %v2260 = vadd.f32 %v2104, %v2259
      %v2261 = vpop.f32.mrf.mxu0
      %v2262 = vpop.f32.mrf.mxu0
      %v2263 = vadd.f32 %v2104, %v2262
      %v2264 = vpop.f32.mrf.mxu0
      %2265 = vmatprep.mubr.bf16.mxu0 %v2190
      %2266 = vmatmul.mubr.bf16.gmra.mxu0 %v2066
      %v2267 = vpop.f32.mrf.mxu0
      %v2268 = vadd.f32 %v2104, %v2267
      %v2269 = vpop.f32.mrf.mxu0
      %v2270 = vpop.f32.mrf.mxu0
      %v2271 = vadd.f32 %v2104, %v2270
      %v2272 = vpop.f32.mrf.mxu0
      %2273 = vmatprep.mubr.bf16.mxu0 %v2193
      %2274 = vmatmul.mubr.bf16.gmra.mxu0 %v2068
      %v2275 = vpop.f32.mrf.mxu0
      %v2276 = vadd.f32 %v2104, %v2275
      %v2277 = vpop.f32.mrf.mxu0
      %v2278 = vpop.f32.mrf.mxu0
      %v2279 = vadd.f32 %v2104, %v2278
      %v2280 = vpop.f32.mrf.mxu0
      %2281 = vmatprep.mubr.bf16.mxu0 %v2196
      %2282 = vmatmul.mubr.bf16.gmra.mxu0 %v2070
      %v2283 = vpop.f32.mrf.mxu0
      %v2284 = vadd.f32 %v2104, %v2283
      %v2285 = vpop.f32.mrf.mxu0
      %v2286 = vpop.f32.mrf.mxu0
      %v2287 = vadd.f32 %v2104, %v2286
      %v2288 = vpop.f32.mrf.mxu0
      %2289 = vmatprep.mubr.bf16.mxu0 %v2199
      %2290 = vmatmul.mubr.bf16.gmra.mxu0 %v2072
      %v2291 = vpop.f32.mrf.mxu0
      %v2292 = vadd.f32 %v2104, %v2291
      %v2293 = vpop.f32.mrf.mxu0
      %v2294 = vpop.f32.mrf.mxu0
      %v2295 = vadd.f32 %v2104, %v2294
      %v2296 = vpop.f32.mrf.mxu0
      %2297 = vdwg.mxu0
      %v2298 = vsel %vm1228, %v2236, 0.0
      %v2299 = vsel %vm1228, %v2239, 0.0
      %v2300 = vadd.f32 %v2298, %v2299
      %v2301 = vsel %vm1228, %v2244, 0.0
      %v2302 = vadd.f32 %v2300, %v2301
      %v2303 = vsel %vm1228, %v2247, 0.0
      %v2304 = vadd.f32 %v2302, %v2303
      %v2305 = vsel %vm1228, %v2252, 0.0
      %v2306 = vadd.f32 %v2304, %v2305
      %v2307 = vsel %vm1228, %v2255, 0.0
      %v2308 = vadd.f32 %v2306, %v2307
      %v2309 = vsel %vm1228, %v2260, 0.0
      %v2310 = vadd.f32 %v2308, %v2309
      %v2311 = vsel %vm1228, %v2263, 0.0
      %v2312 = vadd.f32 %v2310, %v2311
      %v2313 = vsel %vm1228, %v2268, 0.0
      %v2314 = vadd.f32 %v2312, %v2313
      %v2315 = vsel %vm1228, %v2271, 0.0
      %v2316 = vadd.f32 %v2314, %v2315
      %v2317 = vsel %vm1228, %v2276, 0.0
      %v2318 = vadd.f32 %v2316, %v2317
      %v2319 = vsel %vm1228, %v2279, 0.0
      %v2320 = vadd.f32 %v2318, %v2319
      %v2321 = vsel %vm1228, %v2284, 0.0
      %v2322 = vadd.f32 %v2320, %v2321
      %v2323 = vsel %vm1228, %v2287, 0.0
      %v2324 = vadd.f32 %v2322, %v2323
      %v2325 = vsel %vm1228, %v2292, 0.0
      %v2326 = vadd.f32 %v2324, %v2325
      %v2327 = vsel %vm1228, %v2295, 0.0
      %v2328 = vadd.f32 %v2326, %v2327
      %v2329 = vrot.slane %v2328, 4
      %v2330 = vadd.f32 %v2328, %v2329
      %v2331 = vrot.slane %v2330, 2
      %v2332 = vadd.f32 %v2330, %v2331
      %v2333 = vrot.slane %v2332, 1
      %v2334 = vadd.f32 %v2332, %v2333
      %v2335 = vmul.f32 %v2334, %v1266
      %v2336 = vsub.f32 %v2236, %v2335
      %v2337 = vsub.f32 %v2239, %v2335
      %v2338 = vsub.f32 %v2244, %v2335
      %v2339 = vsub.f32 %v2247, %v2335
      %v2340 = vsub.f32 %v2252, %v2335
      %v2341 = vsub.f32 %v2255, %v2335
      %v2342 = vsub.f32 %v2260, %v2335
      %v2343 = vsub.f32 %v2263, %v2335
      %v2344 = vsub.f32 %v2268, %v2335
      %v2345 = vsub.f32 %v2271, %v2335
      %v2346 = vsub.f32 %v2276, %v2335
      %v2347 = vsub.f32 %v2279, %v2335
      %v2348 = vsub.f32 %v2284, %v2335
      %v2349 = vsub.f32 %v2287, %v2335
      %v2350 = vsub.f32 %v2292, %v2335
      %v2351 = vsub.f32 %v2295, %v2335
      %v2352 = vmul.f32 %v2336, %v2336
      %v2353 = vmul.f32 %v2337, %v2337
      %v2354 = vmul.f32 %v2338, %v2338
      %v2355 = vmul.f32 %v2339, %v2339
      %v2356 = vmul.f32 %v2340, %v2340
      %v2357 = vmul.f32 %v2341, %v2341
      %v2358 = vmul.f32 %v2342, %v2342
      %v2359 = vmul.f32 %v2343, %v2343
      %v2360 = vmul.f32 %v2344, %v2344
      %v2361 = vmul.f32 %v2345, %v2345
      %v2362 = vmul.f32 %v2346, %v2346
      %v2363 = vmul.f32 %v2347, %v2347
      %v2364 = vmul.f32 %v2348, %v2348
      %v2365 = vmul.f32 %v2349, %v2349
      %v2366 = vmul.f32 %v2350, %v2350
      %v2367 = vmul.f32 %v2351, %v2351
      %v2368 = vsel %vm1228, %v2352, 0.0
      %v2369 = vsel %vm1228, %v2353, 0.0
      %v2370 = vadd.f32 %v2368, %v2369
      %v2371 = vsel %vm1228, %v2354, 0.0
      %v2372 = vadd.f32 %v2370, %v2371
      %v2373 = vsel %vm1228, %v2355, 0.0
      %v2374 = vadd.f32 %v2372, %v2373
      %v2375 = vsel %vm1228, %v2356, 0.0
      %v2376 = vadd.f32 %v2374, %v2375
      %v2377 = vsel %vm1228, %v2357, 0.0
      %v2378 = vadd.f32 %v2376, %v2377
      %v2379 = vsel %vm1228, %v2358, 0.0
      %v2380 = vadd.f32 %v2378, %v2379
      %v2381 = vsel %vm1228, %v2359, 0.0
      %v2382 = vadd.f32 %v2380, %v2381
      %v2383 = vsel %vm1228, %v2360, 0.0
      %v2384 = vadd.f32 %v2382, %v2383
      %v2385 = vsel %vm1228, %v2361, 0.0
      %v2386 = vadd.f32 %v2384, %v2385
      %v2387 = vsel %vm1228, %v2362, 0.0
      %v2388 = vadd.f32 %v2386, %v2387
      %v2389 = vsel %vm1228, %v2363, 0.0
      %v2390 = vadd.f32 %v2388, %v2389
      %v2391 = vsel %vm1228, %v2364, 0.0
      %v2392 = vadd.f32 %v2390, %v2391
      %v2393 = vsel %vm1228, %v2365, 0.0
      %v2394 = vadd.f32 %v2392, %v2393
      %v2395 = vsel %vm1228, %v2366, 0.0
      %v2396 = vadd.f32 %v2394, %v2395
      %v2397 = vsel %vm1228, %v2367, 0.0
      %v2398 = vadd.f32 %v2396, %v2397
      %v2399 = vrot.slane %v2398, 4
      %v2400 = vadd.f32 %v2398, %v2399
      %v2401 = vrot.slane %v2400, 2
      %v2402 = vadd.f32 %v2400, %v2401
      %v2403 = vrot.slane %v2402, 1
      %v2404 = vadd.f32 %v2402, %v2403
      %v2405 = vmul.f32 %v2404, %v1266
      %v2406 = vadd.f32 %v2405, 1e-05
      %v2407 = vrsqrt.pop %v2406
      %v2408 = vmul.f32 %v2336, %v2407
      %v2409 = vmul.f32 %v2337, %v2407
      %v2410 = vmul.f32 %v2338, %v2407
      %v2411 = vmul.f32 %v2339, %v2407
      %v2412 = vmul.f32 %v2340, %v2407
      %v2413 = vmul.f32 %v2341, %v2407
      %v2414 = vmul.f32 %v2342, %v2407
      %v2415 = vmul.f32 %v2343, %v2407
      %v2416 = vmul.f32 %v2344, %v2407
      %v2417 = vmul.f32 %v2345, %v2407
      %v2418 = vmul.f32 %v2346, %v2407
      %v2419 = vmul.f32 %v2347, %v2407
      %v2420 = vmul.f32 %v2348, %v2407
      %v2421 = vmul.f32 %v2349, %v2407
      %v2422 = vmul.f32 %v2350, %v2407
      %v2423 = vmul.f32 %v2351, %v2407
      %v2424 = vlaneseq
      %v2425 = vshrl.u32 %v2424, 7
      %v2426 = vsub.s32 1, %v2425
      %v2427 = vrot.slane %v2100, %v2426
      %v2428 = vmul.f32 %v2408, %v2427
      %v2429 = vmul.f32 %v2409, %v2427
      %v2430 = vmul.f32 %v2410, %v2427
      %v2431 = vmul.f32 %v2411, %v2427
      %v2432 = vmul.f32 %v2412, %v2427
      %v2433 = vmul.f32 %v2413, %v2427
      %v2434 = vmul.f32 %v2414, %v2427
      %v2435 = vmul.f32 %v2415, %v2427
      %v2436 = vmul.f32 %v2416, %v2427
      %v2437 = vmul.f32 %v2417, %v2427
      %v2438 = vmul.f32 %v2418, %v2427
      %v2439 = vmul.f32 %v2419, %v2427
      %v2440 = vmul.f32 %v2420, %v2427
      %v2441 = vmul.f32 %v2421, %v2427
      %v2442 = vmul.f32 %v2422, %v2427
      %v2443 = vmul.f32 %v2423, %v2427
      %v2444 = vlaneseq
      %v2445 = vshrl.u32 %v2444, 7
      %v2446 = vsub.s32 2, %v2445
      %v2447 = vrot.slane %v2100, %v2446
      %v2448 = vadd.f32 %v2428, %v2447
      %v2449 = vadd.f32 %v2429, %v2447
      %v2450 = vadd.f32 %v2430, %v2447
      %v2451 = vadd.f32 %v2431, %v2447
      %v2452 = vadd.f32 %v2432, %v2447
      %v2453 = vadd.f32 %v2433, %v2447
      %v2454 = vadd.f32 %v2434, %v2447
      %v2455 = vadd.f32 %v2435, %v2447
      %v2456 = vadd.f32 %v2436, %v2447
      %v2457 = vadd.f32 %v2437, %v2447
      %v2458 = vadd.f32 %v2438, %v2447
      %v2459 = vadd.f32 %v2439, %v2447
      %v2460 = vadd.f32 %v2440, %v2447
      %v2461 = vadd.f32 %v2441, %v2447
      %v2462 = vadd.f32 %v2442, %v2447
      %v2463 = vadd.f32 %v2443, %v2447
      %vm2464 = vcmp.ge.f32.partialorder %v2448, 0.0
      %vm2465 = vcmp.ge.f32.partialorder %v2449, 0.0
      %vm2466 = vcmp.ge.f32.partialorder %v2450, 0.0
      %vm2467 = vcmp.ge.f32.partialorder %v2451, 0.0
      %vm2468 = vcmp.ge.f32.partialorder %v2452, 0.0
      %vm2469 = vcmp.ge.f32.partialorder %v2453, 0.0
      %vm2470 = vcmp.ge.f32.partialorder %v2454, 0.0
      %vm2471 = vcmp.ge.f32.partialorder %v2455, 0.0
      %vm2472 = vcmp.ge.f32.partialorder %v2456, 0.0
      %vm2473 = vcmp.ge.f32.partialorder %v2457, 0.0
      %vm2474 = vcmp.ge.f32.partialorder %v2458, 0.0
      %vm2475 = vcmp.ge.f32.partialorder %v2459, 0.0
      %vm2476 = vcmp.ge.f32.partialorder %v2460, 0.0
      %vm2477 = vcmp.ge.f32.partialorder %v2461, 0.0
      %vm2478 = vcmp.ge.f32.partialorder %v2462, 0.0
      %vm2479 = vcmp.ge.f32.partialorder %v2463, 0.0
      %v2480 = vlaneseq
      %v2481 = vshrl.u32 %v2480, 7
      %v2482 = vsub.s32 3, %v2481
      %v2483 = vrot.slane %v2100, %v2482
      %v2484 = vmul.f32 %v2483, %v2448
      %v2485 = vmul.f32 %v2483, %v2449
      %v2486 = vmul.f32 %v2483, %v2450
      %v2487 = vmul.f32 %v2483, %v2451
      %v2488 = vmul.f32 %v2483, %v2452
      %v2489 = vmul.f32 %v2483, %v2453
      %v2490 = vmul.f32 %v2483, %v2454
      %v2491 = vmul.f32 %v2483, %v2455
      %v2492 = vmul.f32 %v2483, %v2456
      %v2493 = vmul.f32 %v2483, %v2457
      %v2494 = vmul.f32 %v2483, %v2458
      %v2495 = vmul.f32 %v2483, %v2459
      %v2496 = vmul.f32 %v2483, %v2460
      %v2497 = vmul.f32 %v2483, %v2461
      %v2498 = vmul.f32 %v2483, %v2462
      %v2499 = vmul.f32 %v2483, %v2463
      %v2500 = vsel %vm2464, %v2448, %v2484
      %v2501 = vsel %vm2465, %v2449, %v2485
      %v2502 = vsel %vm2466, %v2450, %v2486
      %v2503 = vsel %vm2467, %v2451, %v2487
      %v2504 = vsel %vm2468, %v2452, %v2488
      %v2505 = vsel %vm2469, %v2453, %v2489
      %v2506 = vsel %vm2470, %v2454, %v2490
      %v2507 = vsel %vm2471, %v2455, %v2491
      %v2508 = vsel %vm2472, %v2456, %v2492
      %v2509 = vsel %vm2473, %v2457, %v2493
      %v2510 = vsel %vm2474, %v2458, %v2494
      %v2511 = vsel %vm2475, %v2459, %v2495
      %v2512 = vsel %vm2476, %v2460, %v2496
      %v2513 = vsel %vm2477, %v2461, %v2497
      %v2514 = vsel %vm2478, %v2462, %v2498
      %v2515 = vsel %vm2479, %v2463, %v2499
      %2532 = vrot.lane.b32.xlu0 %v2500, 8
      %v2533 = vpop.permute.xlu0 %2532
      %2534 = vrot.lane.b32.xlu0 %v2501, 8
      %v2535 = vpop.permute.xlu0 %2534
      %2536 = vrot.lane.b32.xlu0 %v2502, 8
      %v2537 = vpop.permute.xlu0 %2536
      %2538 = vrot.lane.b32.xlu0 %v2503, 8
      %v2539 = vpop.permute.xlu0 %2538
      %2540 = vrot.lane.b32.xlu0 %v2504, 8
      %v2541 = vpop.permute.xlu0 %2540
      %2542 = vrot.lane.b32.xlu0 %v2505, 8
      %v2543 = vpop.permute.xlu0 %2542
      %2544 = vrot.lane.b32.xlu0 %v2506, 8
      %v2545 = vpop.permute.xlu0 %2544
      %2546 = vrot.lane.b32.xlu0 %v2507, 8
      %v2547 = vpop.permute.xlu0 %2546
      %2548 = vrot.lane.b32.xlu0 %v2508, 8
      %v2549 = vpop.permute.xlu0 %2548
      %2550 = vrot.lane.b32.xlu0 %v2509, 8
      %v2551 = vpop.permute.xlu0 %2550
      %2552 = vrot.lane.b32.xlu0 %v2510, 8
      %v2553 = vpop.permute.xlu0 %2552
      %2554 = vrot.lane.b32.xlu0 %v2511, 8
      %v2555 = vpop.permute.xlu0 %2554
      %2556 = vrot.lane.b32.xlu0 %v2512, 8
      %v2557 = vpop.permute.xlu0 %2556
      %2558 = vrot.lane.b32.xlu0 %v2513, 8
      %v2559 = vpop.permute.xlu0 %2558
      %2560 = vrot.lane.b32.xlu0 %v2514, 8
      %v2561 = vpop.permute.xlu0 %2560
      %2562 = vrot.lane.b32.xlu0 %v2515, 8
      %v2563 = vpop.permute.xlu0 %2562
      %vm2580 = vcmask 130112
      %2581 = vst.msk [vmem:[%s439 + $0x1] sm:$0xff] %vm2580, %v2533
      %2582 = vst.msk [vmem:[%s439 + $0x9] sm:$0xff] %vm2580, %v2535
      %2583 = vst.msk [vmem:[%s439 + $0x19] sm:$0xff] %vm2580, %v2537
      %2584 = vst.msk [vmem:[%s439 + $0x21] sm:$0xff] %vm2580, %v2539
      %2585 = vst.msk [vmem:[%s439 + $0x31] sm:$0xff] %vm2580, %v2541
      %2586 = vst.msk [vmem:[%s439 + $0x39] sm:$0xff] %vm2580, %v2543
      %2587 = vst.msk [vmem:[%s439 + $0x49] sm:$0xff] %vm2580, %v2545
      %2588 = vst.msk [vmem:[%s439 + $0x51] sm:$0xff] %vm2580, %v2547
      %2589 = vst.msk [vmem:[%s439 + $0x61] sm:$0xff] %vm2580, %v2549
      %2590 = vst.msk [vmem:[%s439 + $0x69] sm:$0xff] %vm2580, %v2551
      %2591 = vst.msk [vmem:[%s439 + $0x79] sm:$0xff] %vm2580, %v2553
      %2592 = vst.msk [vmem:[%s439 + $0x81] sm:$0xff] %vm2580, %v2555
      %2593 = vst.msk [vmem:[%s439 + $0x91] sm:$0xff] %vm2580, %v2557
      %2594 = vst.msk [vmem:[%s439 + $0x99] sm:$0xff] %vm2580, %v2559
      %2595 = vst.msk [vmem:[%s439 + $0xa9] sm:$0xff] %vm2580, %v2561
      %2596 = vst.msk [vmem:[%s439 + $0xb1] sm:$0xff] %vm2580, %v2563
      %s2597 = scalar_lea.vmem [#allocation2], 96
      %v2598 = vld [vmem:[%s2597] sm:$0xff]
      %v2599 = vld [vmem:[%s2597 + $0x8] sm:$0xff]
      %v2600 = vld [vmem:[%s2597 + $0x10] sm:$0x3]
      %v2601 = vld [vmem:[%s2597 + $0x18] sm:$0xff]
      %v2602 = vld [vmem:[%s2597 + $0x20] sm:$0xff]
      %v2603 = vld [vmem:[%s2597 + $0x28] sm:$0x3]
      %v2604 = vld [vmem:[%s2597 + $0x30] sm:$0xff]
      %v2605 = vld [vmem:[%s2597 + $0x38] sm:$0xff]
      %v2606 = vld [vmem:[%s2597 + $0x40] sm:$0x3]
      %v2607 = vld [vmem:[%s2597 + $0x48] sm:$0xff]
      %v2608 = vld [vmem:[%s2597 + $0x50] sm:$0xff]
      %v2609 = vld [vmem:[%s2597 + $0x58] sm:$0x3]
      %v2610 = vld [vmem:[%s2597 + $0x60] sm:$0xff]
      %v2611 = vld [vmem:[%s2597 + $0x68] sm:$0xff]
      %v2612 = vld [vmem:[%s2597 + $0x70] sm:$0x3]
      %v2613 = vld [vmem:[%s2597 + $0x78] sm:$0xff]
      %v2614 = vld [vmem:[%s2597 + $0x80] sm:$0xff]
      %v2615 = vld [vmem:[%s2597 + $0x88] sm:$0x3]
      %v2616 = vld [vmem:[%s2597 + $0x90] sm:$0xff]
      %v2617 = vld [vmem:[%s2597 + $0x98] sm:$0xff]
      %v2618 = vld [vmem:[%s2597 + $0xa0] sm:$0x3]
      %v2619 = vld [vmem:[%s2597 + $0xa8] sm:$0xff]
      %v2620 = vld [vmem:[%s2597 + $0xb0] sm:$0xff]
      %v2621 = vld [vmem:[%s2597 + $0xb8] sm:$0x3]
      %v2622 = vld [vmem:[%s439] sm:$0xff]
      %v2623 = vld [vmem:[%s439 + $0x8] sm:$0xff]
      %v2624 = vld [vmem:[%s439 + $0x10] sm:$0x3]
      %v2625 = vld [vmem:[%s439 + $0x18] sm:$0xff]
      %v2626 = vld [vmem:[%s439 + $0x20] sm:$0xff]
      %v2627 = vld [vmem:[%s439 + $0x28] sm:$0x3]
      %v2628 = vld [vmem:[%s439 + $0x30] sm:$0xff]
      %v2629 = vld [vmem:[%s439 + $0x38] sm:$0xff]
      %v2630 = vld [vmem:[%s439 + $0x40] sm:$0x3]
      %v2631 = vld [vmem:[%s439 + $0x48] sm:$0xff]
      %v2632 = vld [vmem:[%s439 + $0x50] sm:$0xff]
      %v2633 = vld [vmem:[%s439 + $0x58] sm:$0x3]
      %v2634 = vld [vmem:[%s439 + $0x60] sm:$0xff]
      %v2635 = vld [vmem:[%s439 + $0x68] sm:$0xff]
      %v2636 = vld [vmem:[%s439 + $0x70] sm:$0x3]
      %v2637 = vld [vmem:[%s439 + $0x78] sm:$0xff]
      %v2638 = vld [vmem:[%s439 + $0x80] sm:$0xff]
      %v2639 = vld [vmem:[%s439 + $0x88] sm:$0x3]
      %v2640 = vld [vmem:[%s439 + $0x90] sm:$0xff]
      %v2641 = vld [vmem:[%s439 + $0x98] sm:$0xff]
      %v2642 = vld [vmem:[%s439 + $0xa0] sm:$0x3]
      %v2643 = vld [vmem:[%s439 + $0xa8] sm:$0xff]
      %v2644 = vld [vmem:[%s439 + $0xb0] sm:$0xff]
      %v2645 = vld [vmem:[%s439 + $0xb8] sm:$0x3]
      %v2670 = vrot.slane %v2598, 1
      %v2671 = vrot.slane %v2599, 1
      %v2672 = vsel %vm530, %v2670, %v2671
      %v2673 = vrot.slane %v2600, 1
      %v2674 = vsel %vm530, %v2671, %v2673
      %v2675 = vrot.slane %v2601, 1
      %v2676 = vrot.slane %v2602, 1
      %v2677 = vsel %vm530, %v2675, %v2676
      %v2678 = vrot.slane %v2603, 1
      %v2679 = vsel %vm530, %v2676, %v2678
      %v2680 = vrot.slane %v2604, 1
      %v2681 = vrot.slane %v2605, 1
      %v2682 = vsel %vm530, %v2680, %v2681
      %v2683 = vrot.slane %v2606, 1
      %v2684 = vsel %vm530, %v2681, %v2683
      %v2685 = vrot.slane %v2607, 1
      %v2686 = vrot.slane %v2608, 1
      %v2687 = vsel %vm530, %v2685, %v2686
      %v2688 = vrot.slane %v2609, 1
      %v2689 = vsel %vm530, %v2686, %v2688
      %v2690 = vrot.slane %v2610, 1
      %v2691 = vrot.slane %v2611, 1
      %v2692 = vsel %vm530, %v2690, %v2691
      %v2693 = vrot.slane %v2612, 1
      %v2694 = vsel %vm530, %v2691, %v2693
      %v2695 = vrot.slane %v2613, 1
      %v2696 = vrot.slane %v2614, 1
      %v2697 = vsel %vm530, %v2695, %v2696
      %v2698 = vrot.slane %v2615, 1
      %v2699 = vsel %vm530, %v2696, %v2698
      %v2700 = vrot.slane %v2616, 1
      %v2701 = vrot.slane %v2617, 1
      %v2702 = vsel %vm530, %v2700, %v2701
      %v2703 = vrot.slane %v2618, 1
      %v2704 = vsel %vm530, %v2701, %v2703
      %v2705 = vrot.slane %v2619, 1
      %v2706 = vrot.slane %v2620, 1
      %v2707 = vsel %vm530, %v2705, %v2706
      %v2708 = vrot.slane %v2621, 1
      %v2709 = vsel %vm530, %v2706, %v2708
      %2710 = vrot.lane.b32.xlu0 %v2672, 32
      %v2711 = vpop.permute.xlu0 %2710
      %2712 = vrot.lane.b32.xlu0 %v2674, 32
      %v2713 = vpop.permute.xlu0 %2712
      %2714 = vrot.lane.b32.xlu0 %v2677, 32
      %v2715 = vpop.permute.xlu0 %2714
      %2716 = vrot.lane.b32.xlu0 %v2679, 32
      %v2717 = vpop.permute.xlu0 %2716
      %2718 = vrot.lane.b32.xlu0 %v2682, 32
      %v2719 = vpop.permute.xlu0 %2718
      %2720 = vrot.lane.b32.xlu0 %v2684, 32
      %v2721 = vpop.permute.xlu0 %2720
      %2722 = vrot.lane.b32.xlu0 %v2687, 32
      %v2723 = vpop.permute.xlu0 %2722
      %2724 = vrot.lane.b32.xlu0 %v2689, 32
      %v2725 = vpop.permute.xlu0 %2724
      %2726 = vrot.lane.b32.xlu0 %v2692, 32
      %v2727 = vpop.permute.xlu0 %2726
      %2728 = vrot.lane.b32.xlu0 %v2694, 32
      %v2729 = vpop.permute.xlu0 %2728
      %2730 = vrot.lane.b32.xlu0 %v2697, 32
      %v2731 = vpop.permute.xlu0 %2730
      %2732 = vrot.lane.b32.xlu0 %v2699, 32
      %v2733 = vpop.permute.xlu0 %2732
      %2734 = vrot.lane.b32.xlu0 %v2702, 32
      %v2735 = vpop.permute.xlu0 %2734
      %2736 = vrot.lane.b32.xlu0 %v2704, 32
      %v2737 = vpop.permute.xlu0 %2736
      %2738 = vrot.lane.b32.xlu0 %v2707, 32
      %v2739 = vpop.permute.xlu0 %2738
      %2740 = vrot.lane.b32.xlu0 %v2709, 32
      %v2741 = vpop.permute.xlu0 %2740
      %v2758 = vrot.slane %v2598, 2
      %v2759 = vrot.slane %v2599, 2
      %v2760 = vsel %vm619, %v2758, %v2759
      %v2761 = vrot.slane %v2600, 2
      %v2762 = vsel %vm619, %v2759, %v2761
      %v2763 = vrot.slane %v2601, 2
      %v2764 = vrot.slane %v2602, 2
      %v2765 = vsel %vm619, %v2763, %v2764
      %v2766 = vrot.slane %v2603, 2
      %v2767 = vsel %vm619, %v2764, %v2766
      %v2768 = vrot.slane %v2604, 2
      %v2769 = vrot.slane %v2605, 2
      %v2770 = vsel %vm619, %v2768, %v2769
      %v2771 = vrot.slane %v2606, 2
      %v2772 = vsel %vm619, %v2769, %v2771
      %v2773 = vrot.slane %v2607, 2
      %v2774 = vrot.slane %v2608, 2
      %v2775 = vsel %vm619, %v2773, %v2774
      %v2776 = vrot.slane %v2609, 2
      %v2777 = vsel %vm619, %v2774, %v2776
      %v2778 = vrot.slane %v2610, 2
      %v2779 = vrot.slane %v2611, 2
      %v2780 = vsel %vm619, %v2778, %v2779
      %v2781 = vrot.slane %v2612, 2
      %v2782 = vsel %vm619, %v2779, %v2781
      %v2783 = vrot.slane %v2613, 2
      %v2784 = vrot.slane %v2614, 2
      %v2785 = vsel %vm619, %v2783, %v2784
      %v2786 = vrot.slane %v2615, 2
      %v2787 = vsel %vm619, %v2784, %v2786
      %v2788 = vrot.slane %v2616, 2
      %v2789 = vrot.slane %v2617, 2
      %v2790 = vsel %vm619, %v2788, %v2789
      %v2791 = vrot.slane %v2618, 2
      %v2792 = vsel %vm619, %v2789, %v2791
      %v2793 = vrot.slane %v2619, 2
      %v2794 = vrot.slane %v2620, 2
      %v2795 = vsel %vm619, %v2793, %v2794
      %v2796 = vrot.slane %v2621, 2
      %v2797 = vsel %vm619, %v2794, %v2796
      %2798 = vrot.lane.b32.xlu0 %v2760, 64
      %v2799 = vpop.permute.xlu0 %2798
      %2800 = vrot.lane.b32.xlu0 %v2762, 64
      %v2801 = vpop.permute.xlu0 %2800
      %2802 = vrot.lane.b32.xlu0 %v2765, 64
      %v2803 = vpop.permute.xlu0 %2802
      %2804 = vrot.lane.b32.xlu0 %v2767, 64
      %v2805 = vpop.permute.xlu0 %2804
      %2806 = vrot.lane.b32.xlu0 %v2770, 64
      %v2807 = vpop.permute.xlu0 %2806
      %2808 = vrot.lane.b32.xlu0 %v2772, 64
      %v2809 = vpop.permute.xlu0 %2808
      %2810 = vrot.lane.b32.xlu0 %v2775, 64
      %v2811 = vpop.permute.xlu0 %2810
      %2812 = vrot.lane.b32.xlu0 %v2777, 64
      %v2813 = vpop.permute.xlu0 %2812
      %2814 = vrot.lane.b32.xlu0 %v2780, 64
      %v2815 = vpop.permute.xlu0 %2814
      %2816 = vrot.lane.b32.xlu0 %v2782, 64
      %v2817 = vpop.permute.xlu0 %2816
      %2818 = vrot.lane.b32.xlu0 %v2785, 64
      %v2819 = vpop.permute.xlu0 %2818
      %2820 = vrot.lane.b32.xlu0 %v2787, 64
      %v2821 = vpop.permute.xlu0 %2820
      %2822 = vrot.lane.b32.xlu0 %v2790, 64
      %v2823 = vpop.permute.xlu0 %2822
      %2824 = vrot.lane.b32.xlu0 %v2792, 64
      %v2825 = vpop.permute.xlu0 %2824
      %2826 = vrot.lane.b32.xlu0 %v2795, 64
      %v2827 = vpop.permute.xlu0 %2826
      %2828 = vrot.lane.b32.xlu0 %v2797, 64
      %v2829 = vpop.permute.xlu0 %2828
      %2862 = vrot.lane.b32.xlu0 %v2622, 96
      %v2863 = vpop.permute.xlu0 %2862
      %2864 = vrot.lane.b32.xlu0 %v2623, 96
      %v2865 = vpop.permute.xlu0 %2864
      %2866 = vrot.lane.b32.xlu0 %v2625, 96
      %v2867 = vpop.permute.xlu0 %2866
      %2868 = vrot.lane.b32.xlu0 %v2626, 96
      %v2869 = vpop.permute.xlu0 %2868
      %2870 = vrot.lane.b32.xlu0 %v2628, 96
      %v2871 = vpop.permute.xlu0 %2870
      %2872 = vrot.lane.b32.xlu0 %v2629, 96
      %v2873 = vpop.permute.xlu0 %2872
      %2874 = vrot.lane.b32.xlu0 %v2631, 96
      %v2875 = vpop.permute.xlu0 %2874
      %2876 = vrot.lane.b32.xlu0 %v2632, 96
      %v2877 = vpop.permute.xlu0 %2876
      %2878 = vrot.lane.b32.xlu0 %v2634, 96
      %v2879 = vpop.permute.xlu0 %2878
      %2880 = vrot.lane.b32.xlu0 %v2635, 96
      %v2881 = vpop.permute.xlu0 %2880
      %2882 = vrot.lane.b32.xlu0 %v2637, 96
      %v2883 = vpop.permute.xlu0 %2882
      %2884 = vrot.lane.b32.xlu0 %v2638, 96
      %v2885 = vpop.permute.xlu0 %2884
      %2886 = vrot.lane.b32.xlu0 %v2640, 96
      %v2887 = vpop.permute.xlu0 %2886
      %2888 = vrot.lane.b32.xlu0 %v2641, 96
      %v2889 = vpop.permute.xlu0 %2888
      %2890 = vrot.lane.b32.xlu0 %v2643, 96
      %v2891 = vpop.permute.xlu0 %2890
      %2892 = vrot.lane.b32.xlu0 %v2644, 96
      %v2893 = vpop.permute.xlu0 %2892
      %v2918 = vrot.slane %v2622, 1
      %v2919 = vrot.slane %v2623, 1
      %v2920 = vsel %vm530, %v2918, %v2919
      %v2921 = vrot.slane %v2624, 1
      %v2922 = vsel %vm530, %v2919, %v2921
      %v2923 = vrot.slane %v2625, 1
      %v2924 = vrot.slane %v2626, 1
      %v2925 = vsel %vm530, %v2923, %v2924
      %v2926 = vrot.slane %v2627, 1
      %v2927 = vsel %vm530, %v2924, %v2926
      %v2928 = vrot.slane %v2628, 1
      %v2929 = vrot.slane %v2629, 1
      %v2930 = vsel %vm530, %v2928, %v2929
      %v2931 = vrot.slane %v2630, 1
      %v2932 = vsel %vm530, %v2929, %v2931
      %v2933 = vrot.slane %v2631, 1
      %v2934 = vrot.slane %v2632, 1
      %v2935 = vsel %vm530, %v2933, %v2934
      %v2936 = vrot.slane %v2633, 1
      %v2937 = vsel %vm530, %v2934, %v2936
      %v2938 = vrot.slane %v2634, 1
      %v2939 = vrot.slane %v2635, 1
      %v2940 = vsel %vm530, %v2938, %v2939
      %v2941 = vrot.slane %v2636, 1
      %v2942 = vsel %vm530, %v2939, %v2941
      %v2943 = vrot.slane %v2637, 1
      %v2944 = vrot.slane %v2638, 1
      %v2945 = vsel %vm530, %v2943, %v2944
      %v2946 = vrot.slane %v2639, 1
      %v2947 = vsel %vm530, %v2944, %v2946
      %v2948 = vrot.slane %v2640, 1
      %v2949 = vrot.slane %v2641, 1
      %v2950 = vsel %vm530, %v2948, %v2949
      %v2951 = vrot.slane %v2642, 1
      %v2952 = vsel %vm530, %v2949, %v2951
      %v2953 = vrot.slane %v2643, 1
      %v2954 = vrot.slane %v2644, 1
      %v2955 = vsel %vm530, %v2953, %v2954
      %v2956 = vrot.slane %v2645, 1
      %v2957 = vsel %vm530, %v2954, %v2956
      %v2974 = vrot.slane %v2622, 2
      %v2975 = vrot.slane %v2623, 2
      %v2976 = vsel %vm619, %v2974, %v2975
      %v2977 = vrot.slane %v2624, 2
      %v2978 = vsel %vm619, %v2975, %v2977
      %v2979 = vrot.slane %v2625, 2
      %v2980 = vrot.slane %v2626, 2
      %v2981 = vsel %vm619, %v2979, %v2980
      %v2982 = vrot.slane %v2627, 2
      %v2983 = vsel %vm619, %v2980, %v2982
      %v2984 = vrot.slane %v2628, 2
      %v2985 = vrot.slane %v2629, 2
      %v2986 = vsel %vm619, %v2984, %v2985
      %v2987 = vrot.slane %v2630, 2
      %v2988 = vsel %vm619, %v2985, %v2987
      %v2989 = vrot.slane %v2631, 2
      %v2990 = vrot.slane %v2632, 2
      %v2991 = vsel %vm619, %v2989, %v2990
      %v2992 = vrot.slane %v2633, 2
      %v2993 = vsel %vm619, %v2990, %v2992
      %v2994 = vrot.slane %v2634, 2
      %v2995 = vrot.slane %v2635, 2
      %v2996 = vsel %vm619, %v2994, %v2995
      %v2997 = vrot.slane %v2636, 2
      %v2998 = vsel %vm619, %v2995, %v2997
      %v2999 = vrot.slane %v2637, 2
      %v3000 = vrot.slane %v2638, 2
      %v3001 = vsel %vm619, %v2999, %v3000
      %v3002 = vrot.slane %v2639, 2
      %v3003 = vsel %vm619, %v3000, %v3002
      %v3004 = vrot.slane %v2640, 2
      %v3005 = vrot.slane %v2641, 2
      %v3006 = vsel %vm619, %v3004, %v3005
      %v3007 = vrot.slane %v2642, 2
      %v3008 = vsel %vm619, %v3005, %v3007
      %v3009 = vrot.slane %v2643, 2
      %v3010 = vrot.slane %v2644, 2
      %v3011 = vsel %vm619, %v3009, %v3010
      %v3012 = vrot.slane %v2645, 2
      %v3013 = vsel %vm619, %v3010, %v3012
      %3014 = vrot.lane.b32.xlu0 %v2976, 32
      %v3015 = vpop.permute.xlu0 %3014
      %3016 = vrot.lane.b32.xlu0 %v2978, 32
      %v3017 = vpop.permute.xlu0 %3016
      %3018 = vrot.lane.b32.xlu0 %v2981, 32
      %v3019 = vpop.permute.xlu0 %3018
      %3020 = vrot.lane.b32.xlu0 %v2983, 32
      %v3021 = vpop.permute.xlu0 %3020
      %3022 = vrot.lane.b32.xlu0 %v2986, 32
      %v3023 = vpop.permute.xlu0 %3022
      %3024 = vrot.lane.b32.xlu0 %v2988, 32
      %v3025 = vpop.permute.xlu0 %3024
      %3026 = vrot.lane.b32.xlu0 %v2991, 32
      %v3027 = vpop.permute.xlu0 %3026
      %3028 = vrot.lane.b32.xlu0 %v2993, 32
      %v3029 = vpop.permute.xlu0 %3028
      %3030 = vrot.lane.b32.xlu0 %v2996, 32
      %v3031 = vpop.permute.xlu0 %3030
      %3032 = vrot.lane.b32.xlu0 %v2998, 32
      %v3033 = vpop.permute.xlu0 %3032
      %3034 = vrot.lane.b32.xlu0 %v3001, 32
      %v3035 = vpop.permute.xlu0 %3034
      %3036 = vrot.lane.b32.xlu0 %v3003, 32
      %v3037 = vpop.permute.xlu0 %3036
      %3038 = vrot.lane.b32.xlu0 %v3006, 32
      %v3039 = vpop.permute.xlu0 %3038
      %3040 = vrot.lane.b32.xlu0 %v3008, 32
      %v3041 = vpop.permute.xlu0 %3040
      %3042 = vrot.lane.b32.xlu0 %v3011, 32
      %v3043 = vpop.permute.xlu0 %3042
      %3044 = vrot.lane.b32.xlu0 %v3013, 32
      %v3045 = vpop.permute.xlu0 %3044
      %v3062 = vsel %vm309, %v2598, %v2711
      %v3063 = vsel %vm309, %v2599, %v2713
      %v3064 = vsel %vm309, %v2601, %v2715
      %v3065 = vsel %vm309, %v2602, %v2717
      %v3066 = vsel %vm309, %v2604, %v2719
      %v3067 = vsel %vm309, %v2605, %v2721
      %v3068 = vsel %vm309, %v2607, %v2723
      %v3069 = vsel %vm309, %v2608, %v2725
      %v3070 = vsel %vm309, %v2610, %v2727
      %v3071 = vsel %vm309, %v2611, %v2729
      %v3072 = vsel %vm309, %v2613, %v2731
      %v3073 = vsel %vm309, %v2614, %v2733
      %v3074 = vsel %vm309, %v2616, %v2735
      %v3075 = vsel %vm309, %v2617, %v2737
      %v3076 = vsel %vm309, %v2619, %v2739
      %v3077 = vsel %vm309, %v2620, %v2741
      %v3078 = vsel %vm940, %v3062, %v2799
      %v3079 = vsel %vm940, %v3063, %v2801
      %v3080 = vsel %vm940, %v3064, %v2803
      %v3081 = vsel %vm940, %v3065, %v2805
      %v3082 = vsel %vm940, %v3066, %v2807
      %v3083 = vsel %vm940, %v3067, %v2809
      %v3084 = vsel %vm940, %v3068, %v2811
      %v3085 = vsel %vm940, %v3069, %v2813
      %v3086 = vsel %vm940, %v3070, %v2815
      %v3087 = vsel %vm940, %v3071, %v2817
      %v3088 = vsel %vm940, %v3072, %v2819
      %v3089 = vsel %vm940, %v3073, %v2821
      %v3090 = vsel %vm940, %v3074, %v2823
      %v3091 = vsel %vm940, %v3075, %v2825
      %v3092 = vsel %vm940, %v3076, %v2827
      %v3093 = vsel %vm940, %v3077, %v2829
      %v3094 = vsel %vm957, %v3078, %v2863
      %v3095 = vsel %vm957, %v3079, %v2865
      %v3096 = vsel %vm957, %v3080, %v2867
      %v3097 = vsel %vm957, %v3081, %v2869
      %v3098 = vsel %vm957, %v3082, %v2871
      %v3099 = vsel %vm957, %v3083, %v2873
      %v3100 = vsel %vm957, %v3084, %v2875
      %v3101 = vsel %vm957, %v3085, %v2877
      %v3102 = vsel %vm957, %v3086, %v2879
      %v3103 = vsel %vm957, %v3087, %v2881
      %v3104 = vsel %vm957, %v3088, %v2883
      %v3105 = vsel %vm957, %v3089, %v2885
      %v3106 = vsel %vm957, %v3090, %v2887
      %v3107 = vsel %vm957, %v3091, %v2889
      %v3108 = vsel %vm957, %v3092, %v2891
      %v3109 = vsel %vm957, %v3093, %v2893
      %v3110 = vsel %vm309, %v2920, %v3015
      %v3111 = vsel %vm309, %v2922, %v3017
      %v3112 = vsel %vm309, %v2925, %v3019
      %v3113 = vsel %vm309, %v2927, %v3021
      %v3114 = vsel %vm309, %v2930, %v3023
      %v3115 = vsel %vm309, %v2932, %v3025
      %v3116 = vsel %vm309, %v2935, %v3027
      %v3117 = vsel %vm309, %v2937, %v3029
      %v3118 = vsel %vm309, %v2940, %v3031
      %v3119 = vsel %vm309, %v2942, %v3033
      %v3120 = vsel %vm309, %v2945, %v3035
      %v3121 = vsel %vm309, %v2947, %v3037
      %v3122 = vsel %vm309, %v2950, %v3039
      %v3123 = vsel %vm309, %v2952, %v3041
      %v3124 = vsel %vm309, %v2955, %v3043
      %v3125 = vsel %vm309, %v2957, %v3045
      %v3126 = vpack.c.bf16 %v3095, %v3094
      %v3127 = vpack.c.bf16 %v3111, %v3110
      %v3128 = vpack.c.bf16 %v3097, %v3096
      %v3129 = vpack.c.bf16 %v3113, %v3112
      %v3130 = vpack.c.bf16 %v3099, %v3098
      %v3131 = vpack.c.bf16 %v3115, %v3114
      %v3132 = vpack.c.bf16 %v3101, %v3100
      %v3133 = vpack.c.bf16 %v3117, %v3116
      %v3134 = vpack.c.bf16 %v3103, %v3102
      %v3135 = vpack.c.bf16 %v3119, %v3118
      %v3136 = vpack.c.bf16 %v3105, %v3104
      %v3137 = vpack.c.bf16 %v3121, %v3120
      %v3138 = vpack.c.bf16 %v3107, %v3106
      %v3139 = vpack.c.bf16 %v3123, %v3122
      %v3140 = vpack.c.bf16 %v3109, %v3108
      %v3141 = vpack.c.bf16 %v3125, %v3124
      %s3142 = scalar_lea.vmem %s1, 192
      %v3143 = vld [vmem:[%s3142] sm:$0xf]
      %v3144 = vld [vmem:[%s3142 + $0x4] sm:$0xf]
      %v3145 = vld [vmem:[%s3142 + $0x8] sm:$0xf]
      %v3146 = vld [vmem:[%s3142 + $0xc] sm:$0xf]
      %v3147 = vld [vmem:[%s3142 + $0x10] sm:$0xf]
      %v3148 = vld [vmem:[%s3142 + $0x14] sm:$0xf]
      %v3149 = vld [vmem:[%s3142 + $0x18] sm:$0xf]
      %v3150 = vld [vmem:[%s3142 + $0x1c] sm:$0xf]
      %v3151 = vld [vmem:[%s3142 + $0x20] sm:$0xf]
      %v3152 = vld [vmem:[%s3142 + $0x24] sm:$0xf]
      %v3153 = vld [vmem:[%s3142 + $0x28] sm:$0xf]
      %v3154 = vld [vmem:[%s3142 + $0x2c] sm:$0xf]
      %v3155 = vld [vmem:[%s3142 + $0x30] sm:$0xf]
      %v3156 = vld [vmem:[%s3142 + $0x34] sm:$0xf]
      %v3157 = vld [vmem:[%s3142 + $0x38] sm:$0xf]
      %v3158 = vld [vmem:[%s3142 + $0x3c] sm:$0xf]
      %v3159 = vld [vmem:[%s3142 + $0x40] sm:$0xf]
      %v3160 = vld [vmem:[%s3142 + $0x44] sm:$0xf]
      %v3161 = vld [vmem:[%s3142 + $0x48] sm:$0xf]
      %v3162 = vld [vmem:[%s3142 + $0x4c] sm:$0xf]
      %v3163 = vld [vmem:[%s3142 + $0x50] sm:$0xf]
      %v3164 = vld [vmem:[%s3142 + $0x54] sm:$0xf]
      %v3165 = vld [vmem:[%s3142 + $0x58] sm:$0xf]
      %v3166 = vld [vmem:[%s3142 + $0x5c] sm:$0xf]
      %s3167 = scalar_lea.vmem %s2, 8
      %v3168 = vld [vmem:[%s3167] sm:$0xf]
      %v3169 = vlaneseq
      %v3170 = vshrl.u32 %v3169, 7
      %v3171 = vsub.s32 0, %v3170
      %v3172 = vrot.slane %v3168, %v3171
      %v3197 = vunpack.c.l.b16 %v3143
      %v3198 = vunpack.c.l.b16 %v3144
      %v3199 = vunpack.c.l.b16 %v3145
      %v3200 = vunpack.c.l.b16 %v3146
      %v3201 = vunpack.c.l.b16 %v3147
      %v3202 = vunpack.c.l.b16 %v3148
      %v3203 = vunpack.c.l.b16 %v3149
      %v3204 = vunpack.c.l.b16 %v3150
      %v3205 = vunpack.c.l.b16 %v3151
      %v3206 = vunpack.c.l.b16 %v3152
      %v3207 = vunpack.c.l.b16 %v3153
      %v3208 = vunpack.c.l.b16 %v3154
      %v3209 = vunpack.c.l.b16 %v3155
      %v3210 = vunpack.c.l.b16 %v3156
      %v3211 = vunpack.c.l.b16 %v3157
      %v3212 = vunpack.c.l.b16 %v3158
      %v3213 = vunpack.c.l.b16 %v3159
      %v3214 = vunpack.c.l.b16 %v3160
      %v3215 = vunpack.c.l.b16 %v3161
      %v3216 = vunpack.c.l.b16 %v3162
      %v3217 = vunpack.c.l.b16 %v3163
      %v3218 = vunpack.c.l.b16 %v3164
      %v3219 = vunpack.c.l.b16 %v3165
      %v3220 = vunpack.c.l.b16 %v3166
      %v3221 = vpack.c.b16 %v3198, %v3197
      %v3222 = vpack.c.b16 %v3200, %v3199
      %v3223 = vpack.c.b16 %v3202, %v3201
      %v3224 = vpack.c.b16 %v3204, %v3203
      %v3225 = vpack.c.b16 %v3206, %v3205
      %v3226 = vpack.c.b16 %v3208, %v3207
      %v3227 = vpack.c.b16 %v3210, %v3209
      %v3228 = vpack.c.b16 %v3212, %v3211
      %v3229 = vpack.c.b16 %v3214, %v3213
      %v3230 = vpack.c.b16 %v3216, %v3215
      %v3231 = vpack.c.b16 %v3218, %v3217
      %v3232 = vpack.c.b16 %v3220, %v3219
      %v3246 = vsel %vm940, %v3127, 0
      %v3249 = vsel %vm940, %v3129, 0
      %v3252 = vsel %vm940, %v3131, 0
      %v3255 = vsel %vm940, %v3133, 0
      %v3258 = vsel %vm940, %v3135, 0
      %v3261 = vsel %vm940, %v3137, 0
      %v3264 = vsel %vm940, %v3139, 0
      %v3267 = vsel %vm940, %v3141, 0
      %3269 = vmatprep.subr.bf16.mxu0 0
      %3270 = vmatpush1.bf16.msra.mxu0 %v3228
      %3271 = vmatprep.subr.bf16.mxu0 0
      %3272 = vmatpush1.bf16.msra.mxu0 %v3227
      %3273 = vmatprep.subr.bf16.mxu0 0
      %3274 = vmatpush1.bf16.msra.mxu0 %v3226
      %3275 = vmatprep.subr.bf16.mxu0 0
      %3276 = vmatpush1.bf16.msra.mxu0 %v3225
      %3277 = vmatprep.subr.bf16.mxu0 0
      %3278 = vmatpush1.bf16.msra.mxu0 %v3224
      %3279 = vmatprep.subr.bf16.mxu0 0
      %3280 = vmatpush1.bf16.msra.mxu0 %v3223
      %3281 = vmatprep.subr.bf16.mxu0 0
      %3282 = vmatpush1.bf16.msra.mxu0 %v3222
      %3283 = vmatprep.subr.bf16.mxu0 0
      %3284 = vmatpush1.bf16.msra.mxu0 %v3221
      %3285 = vmatprep.subr.bf16.mxu0 0
      %3286 = vmatpush2.bf16.msra.mxu0 0
      %3287 = vmatprep.subr.bf16.mxu0 0
      %3288 = vmatpush2.bf16.msra.mxu0 0
      %3289 = vmatprep.subr.bf16.mxu0 0
      %3290 = vmatpush2.bf16.msra.mxu0 0
      %3291 = vmatprep.subr.bf16.mxu0 0
      %3292 = vmatpush2.bf16.msra.mxu0 0
      %3293 = vmatprep.subr.bf16.mxu0 0
      %3294 = vmatpush2.bf16.msra.mxu0 %v3232
      %3295 = vmatprep.subr.bf16.mxu0 0
      %3296 = vmatpush2.bf16.msra.mxu0 %v3231
      %3297 = vmatprep.subr.bf16.mxu0 0
      %3298 = vmatpush2.bf16.msra.mxu0 %v3230
      %3299 = vmatprep.subr.bf16.mxu0 0
      %3300 = vmatpush2.bf16.msra.mxu0 %v3229
      %3301 = vmatprep.mubr.bf16.mxu0 %v3246
      %3302 = vmatmul.mubr.bf16.gmra.mxu0 %v3126
      %v3303 = vpop.f32.mrf.mxu0
      %v3304 = vadd.f32 %v3172, %v3303
      %v3305 = vpop.f32.mrf.mxu0
      %v3306 = vpop.f32.mrf.mxu0
      %v3307 = vadd.f32 %v3172, %v3306
      %v3308 = vpop.f32.mrf.mxu0
      %3309 = vmatprep.mubr.bf16.mxu0 %v3249
      %3310 = vmatmul.mubr.bf16.gmra.mxu0 %v3128
      %v3311 = vpop.f32.mrf.mxu0
      %v3312 = vadd.f32 %v3172, %v3311
      %v3313 = vpop.f32.mrf.mxu0
      %v3314 = vpop.f32.mrf.mxu0
      %v3315 = vadd.f32 %v3172, %v3314
      %v3316 = vpop.f32.mrf.mxu0
      %3317 = vmatprep.mubr.bf16.mxu0 %v3252
      %3318 = vmatmul.mubr.bf16.gmra.mxu0 %v3130
      %v3319 = vpop.f32.mrf.mxu0
      %v3320 = vadd.f32 %v3172, %v3319
      %v3321 = vpop.f32.mrf.mxu0
      %v3322 = vpop.f32.mrf.mxu0
      %v3323 = vadd.f32 %v3172, %v3322
      %v3324 = vpop.f32.mrf.mxu0
      %3325 = vmatprep.mubr.bf16.mxu0 %v3255
      %3326 = vmatmul.mubr.bf16.gmra.mxu0 %v3132
      %v3327 = vpop.f32.mrf.mxu0
      %v3328 = vadd.f32 %v3172, %v3327
      %v3329 = vpop.f32.mrf.mxu0
      %v3330 = vpop.f32.mrf.mxu0
      %v3331 = vadd.f32 %v3172, %v3330
      %v3332 = vpop.f32.mrf.mxu0
      %3333 = vmatprep.mubr.bf16.mxu0 %v3258
      %3334 = vmatmul.mubr.bf16.gmra.mxu0 %v3134
      %v3335 = vpop.f32.mrf.mxu0
      %v3336 = vadd.f32 %v3172, %v3335
      %v3337 = vpop.f32.mrf.mxu0
      %v3338 = vpop.f32.mrf.mxu0
      %v3339 = vadd.f32 %v3172, %v3338
      %v3340 = vpop.f32.mrf.mxu0
      %3341 = vmatprep.mubr.bf16.mxu0 %v3261
      %3342 = vmatmul.mubr.bf16.gmra.mxu0 %v3136
      %v3343 = vpop.f32.mrf.mxu0
      %v3344 = vadd.f32 %v3172, %v3343
      %v3345 = vpop.f32.mrf.mxu0
      %v3346 = vpop.f32.mrf.mxu0
      %v3347 = vadd.f32 %v3172, %v3346
      %v3348 = vpop.f32.mrf.mxu0
      %3349 = vmatprep.mubr.bf16.mxu0 %v3264
      %3350 = vmatmul.mubr.bf16.gmra.mxu0 %v3138
      %v3351 = vpop.f32.mrf.mxu0
      %v3352 = vadd.f32 %v3172, %v3351
      %v3353 = vpop.f32.mrf.mxu0
      %v3354 = vpop.f32.mrf.mxu0
      %v3355 = vadd.f32 %v3172, %v3354
      %v3356 = vpop.f32.mrf.mxu0
      %3357 = vmatprep.mubr.bf16.mxu0 %v3267
      %3358 = vmatmul.mubr.bf16.gmra.mxu0 %v3140
      %v3359 = vpop.f32.mrf.mxu0
      %v3360 = vadd.f32 %v3172, %v3359
      %v3361 = vpop.f32.mrf.mxu0
      %v3362 = vpop.f32.mrf.mxu0
      %v3363 = vadd.f32 %v3172, %v3362
      %v3364 = vpop.f32.mrf.mxu0
      %3365 = vdwg.mxu0
      %v3366 = vsel %vm1228, %v3304, 0.0
      %v3367 = vsel %vm1228, %v3307, 0.0
      %v3368 = vadd.f32 %v3366, %v3367
      %v3369 = vsel %vm1228, %v3312, 0.0
      %v3370 = vadd.f32 %v3368, %v3369
      %v3371 = vsel %vm1228, %v3315, 0.0
      %v3372 = vadd.f32 %v3370, %v3371
      %v3373 = vsel %vm1228, %v3320, 0.0
      %v3374 = vadd.f32 %v3372, %v3373
      %v3375 = vsel %vm1228, %v3323, 0.0
      %v3376 = vadd.f32 %v3374, %v3375
      %v3377 = vsel %vm1228, %v3328, 0.0
      %v3378 = vadd.f32 %v3376, %v3377
      %v3379 = vsel %vm1228, %v3331, 0.0
      %v3380 = vadd.f32 %v3378, %v3379
      %v3381 = vsel %vm1228, %v3336, 0.0
      %v3382 = vadd.f32 %v3380, %v3381
      %v3383 = vsel %vm1228, %v3339, 0.0
      %v3384 = vadd.f32 %v3382, %v3383
      %v3385 = vsel %vm1228, %v3344, 0.0
      %v3386 = vadd.f32 %v3384, %v3385
      %v3387 = vsel %vm1228, %v3347, 0.0
      %v3388 = vadd.f32 %v3386, %v3387
      %v3389 = vsel %vm1228, %v3352, 0.0
      %v3390 = vadd.f32 %v3388, %v3389
      %v3391 = vsel %vm1228, %v3355, 0.0
      %v3392 = vadd.f32 %v3390, %v3391
      %v3393 = vsel %vm1228, %v3360, 0.0
      %v3394 = vadd.f32 %v3392, %v3393
      %v3395 = vsel %vm1228, %v3363, 0.0
      %v3396 = vadd.f32 %v3394, %v3395
      %v3397 = vrot.slane %v3396, 4
      %v3398 = vadd.f32 %v3396, %v3397
      %v3399 = vrot.slane %v3398, 2
      %v3400 = vadd.f32 %v3398, %v3399
      %v3401 = vrot.slane %v3400, 1
      %v3402 = vadd.f32 %v3400, %v3401
      %v3403 = vmul.f32 %v3402, %v1266
      %v3404 = vsub.f32 %v3304, %v3403
      %v3405 = vsub.f32 %v3307, %v3403
      %v3406 = vsub.f32 %v3312, %v3403
      %v3407 = vsub.f32 %v3315, %v3403
      %v3408 = vsub.f32 %v3320, %v3403
      %v3409 = vsub.f32 %v3323, %v3403
      %v3410 = vsub.f32 %v3328, %v3403
      %v3411 = vsub.f32 %v3331, %v3403
      %v3412 = vsub.f32 %v3336, %v3403
      %v3413 = vsub.f32 %v3339, %v3403
      %v3414 = vsub.f32 %v3344, %v3403
      %v3415 = vsub.f32 %v3347, %v3403
      %v3416 = vsub.f32 %v3352, %v3403
      %v3417 = vsub.f32 %v3355, %v3403
      %v3418 = vsub.f32 %v3360, %v3403
      %v3419 = vsub.f32 %v3363, %v3403
      %v3420 = vmul.f32 %v3404, %v3404
      %v3421 = vmul.f32 %v3405, %v3405
      %v3422 = vmul.f32 %v3406, %v3406
      %v3423 = vmul.f32 %v3407, %v3407
      %v3424 = vmul.f32 %v3408, %v3408
      %v3425 = vmul.f32 %v3409, %v3409
      %v3426 = vmul.f32 %v3410, %v3410
      %v3427 = vmul.f32 %v3411, %v3411
      %v3428 = vmul.f32 %v3412, %v3412
      %v3429 = vmul.f32 %v3413, %v3413
      %v3430 = vmul.f32 %v3414, %v3414
      %v3431 = vmul.f32 %v3415, %v3415
      %v3432 = vmul.f32 %v3416, %v3416
      %v3433 = vmul.f32 %v3417, %v3417
      %v3434 = vmul.f32 %v3418, %v3418
      %v3435 = vmul.f32 %v3419, %v3419
      %v3436 = vsel %vm1228, %v3420, 0.0
      %v3437 = vsel %vm1228, %v3421, 0.0
      %v3438 = vadd.f32 %v3436, %v3437
      %v3439 = vsel %vm1228, %v3422, 0.0
      %v3440 = vadd.f32 %v3438, %v3439
      %v3441 = vsel %vm1228, %v3423, 0.0
      %v3442 = vadd.f32 %v3440, %v3441
      %v3443 = vsel %vm1228, %v3424, 0.0
      %v3444 = vadd.f32 %v3442, %v3443
      %v3445 = vsel %vm1228, %v3425, 0.0
      %v3446 = vadd.f32 %v3444, %v3445
      %v3447 = vsel %vm1228, %v3426, 0.0
      %v3448 = vadd.f32 %v3446, %v3447
      %v3449 = vsel %vm1228, %v3427, 0.0
      %v3450 = vadd.f32 %v3448, %v3449
      %v3451 = vsel %vm1228, %v3428, 0.0
      %v3452 = vadd.f32 %v3450, %v3451
      %v3453 = vsel %vm1228, %v3429, 0.0
      %v3454 = vadd.f32 %v3452, %v3453
      %v3455 = vsel %vm1228, %v3430, 0.0
      %v3456 = vadd.f32 %v3454, %v3455
      %v3457 = vsel %vm1228, %v3431, 0.0
      %v3458 = vadd.f32 %v3456, %v3457
      %v3459 = vsel %vm1228, %v3432, 0.0
      %v3460 = vadd.f32 %v3458, %v3459
      %v3461 = vsel %vm1228, %v3433, 0.0
      %v3462 = vadd.f32 %v3460, %v3461
      %v3463 = vsel %vm1228, %v3434, 0.0
      %v3464 = vadd.f32 %v3462, %v3463
      %v3465 = vsel %vm1228, %v3435, 0.0
      %v3466 = vadd.f32 %v3464, %v3465
      %v3467 = vrot.slane %v3466, 4
      %v3468 = vadd.f32 %v3466, %v3467
      %v3469 = vrot.slane %v3468, 2
      %v3470 = vadd.f32 %v3468, %v3469
      %v3471 = vrot.slane %v3470, 1
      %v3472 = vadd.f32 %v3470, %v3471
      %v3473 = vmul.f32 %v3472, %v1266
      %v3474 = vadd.f32 %v3473, 1e-05
      %v3475 = vrsqrt.pop %v3474
      %v3476 = vmul.f32 %v3404, %v3475
      %v3477 = vmul.f32 %v3405, %v3475
      %v3478 = vmul.f32 %v3406, %v3475
      %v3479 = vmul.f32 %v3407, %v3475
      %v3480 = vmul.f32 %v3408, %v3475
      %v3481 = vmul.f32 %v3409, %v3475
      %v3482 = vmul.f32 %v3410, %v3475
      %v3483 = vmul.f32 %v3411, %v3475
      %v3484 = vmul.f32 %v3412, %v3475
      %v3485 = vmul.f32 %v3413, %v3475
      %v3486 = vmul.f32 %v3414, %v3475
      %v3487 = vmul.f32 %v3415, %v3475
      %v3488 = vmul.f32 %v3416, %v3475
      %v3489 = vmul.f32 %v3417, %v3475
      %v3490 = vmul.f32 %v3418, %v3475
      %v3491 = vmul.f32 %v3419, %v3475
      %v3492 = vlaneseq
      %v3493 = vshrl.u32 %v3492, 7
      %v3494 = vsub.s32 1, %v3493
      %v3495 = vrot.slane %v3168, %v3494
      %v3496 = vmul.f32 %v3476, %v3495
      %v3497 = vmul.f32 %v3477, %v3495
      %v3498 = vmul.f32 %v3478, %v3495
      %v3499 = vmul.f32 %v3479, %v3495
      %v3500 = vmul.f32 %v3480, %v3495
      %v3501 = vmul.f32 %v3481, %v3495
      %v3502 = vmul.f32 %v3482, %v3495
      %v3503 = vmul.f32 %v3483, %v3495
      %v3504 = vmul.f32 %v3484, %v3495
      %v3505 = vmul.f32 %v3485, %v3495
      %v3506 = vmul.f32 %v3486, %v3495
      %v3507 = vmul.f32 %v3487, %v3495
      %v3508 = vmul.f32 %v3488, %v3495
      %v3509 = vmul.f32 %v3489, %v3495
      %v3510 = vmul.f32 %v3490, %v3495
      %v3511 = vmul.f32 %v3491, %v3495
      %v3512 = vlaneseq
      %v3513 = vshrl.u32 %v3512, 7
      %v3514 = vsub.s32 2, %v3513
      %v3515 = vrot.slane %v3168, %v3514
      %v3516 = vadd.f32 %v3496, %v3515
      %v3517 = vadd.f32 %v3497, %v3515
      %v3518 = vadd.f32 %v3498, %v3515
      %v3519 = vadd.f32 %v3499, %v3515
      %v3520 = vadd.f32 %v3500, %v3515
      %v3521 = vadd.f32 %v3501, %v3515
      %v3522 = vadd.f32 %v3502, %v3515
      %v3523 = vadd.f32 %v3503, %v3515
      %v3524 = vadd.f32 %v3504, %v3515
      %v3525 = vadd.f32 %v3505, %v3515
      %v3526 = vadd.f32 %v3506, %v3515
      %v3527 = vadd.f32 %v3507, %v3515
      %v3528 = vadd.f32 %v3508, %v3515
      %v3529 = vadd.f32 %v3509, %v3515
      %v3530 = vadd.f32 %v3510, %v3515
      %v3531 = vadd.f32 %v3511, %v3515
      %vm3532 = vcmp.ge.f32.partialorder %v3516, 0.0
      %vm3533 = vcmp.ge.f32.partialorder %v3517, 0.0
      %vm3534 = vcmp.ge.f32.partialorder %v3518, 0.0
      %vm3535 = vcmp.ge.f32.partialorder %v3519, 0.0
      %vm3536 = vcmp.ge.f32.partialorder %v3520, 0.0
      %vm3537 = vcmp.ge.f32.partialorder %v3521, 0.0
      %vm3538 = vcmp.ge.f32.partialorder %v3522, 0.0
      %vm3539 = vcmp.ge.f32.partialorder %v3523, 0.0
      %vm3540 = vcmp.ge.f32.partialorder %v3524, 0.0
      %vm3541 = vcmp.ge.f32.partialorder %v3525, 0.0
      %vm3542 = vcmp.ge.f32.partialorder %v3526, 0.0
      %vm3543 = vcmp.ge.f32.partialorder %v3527, 0.0
      %vm3544 = vcmp.ge.f32.partialorder %v3528, 0.0
      %vm3545 = vcmp.ge.f32.partialorder %v3529, 0.0
      %vm3546 = vcmp.ge.f32.partialorder %v3530, 0.0
      %vm3547 = vcmp.ge.f32.partialorder %v3531, 0.0
      %v3548 = vlaneseq
      %v3549 = vshrl.u32 %v3548, 7
      %v3550 = vsub.s32 3, %v3549
      %v3551 = vrot.slane %v3168, %v3550
      %v3552 = vmul.f32 %v3551, %v3516
      %v3553 = vmul.f32 %v3551, %v3517
      %v3554 = vmul.f32 %v3551, %v3518
      %v3555 = vmul.f32 %v3551, %v3519
      %v3556 = vmul.f32 %v3551, %v3520
      %v3557 = vmul.f32 %v3551, %v3521
      %v3558 = vmul.f32 %v3551, %v3522
      %v3559 = vmul.f32 %v3551, %v3523
      %v3560 = vmul.f32 %v3551, %v3524
      %v3561 = vmul.f32 %v3551, %v3525
      %v3562 = vmul.f32 %v3551, %v3526
      %v3563 = vmul.f32 %v3551, %v3527
      %v3564 = vmul.f32 %v3551, %v3528
      %v3565 = vmul.f32 %v3551, %v3529
      %v3566 = vmul.f32 %v3551, %v3530
      %v3567 = vmul.f32 %v3551, %v3531
      %v3568 = vsel %vm3532, %v3516, %v3552
      %v3569 = vsel %vm3533, %v3517, %v3553
      %v3570 = vsel %vm3534, %v3518, %v3554
      %v3571 = vsel %vm3535, %v3519, %v3555
      %v3572 = vsel %vm3536, %v3520, %v3556
      %v3573 = vsel %vm3537, %v3521, %v3557
      %v3574 = vsel %vm3538, %v3522, %v3558
      %v3575 = vsel %vm3539, %v3523, %v3559
      %v3576 = vsel %vm3540, %v3524, %v3560
      %v3577 = vsel %vm3541, %v3525, %v3561
      %v3578 = vsel %vm3542, %v3526, %v3562
      %v3579 = vsel %vm3543, %v3527, %v3563
      %v3580 = vsel %vm3544, %v3528, %v3564
      %v3581 = vsel %vm3545, %v3529, %v3565
      %v3582 = vsel %vm3546, %v3530, %v3566
      %v3583 = vsel %vm3547, %v3531, %v3567
      %3584 = vst.msk [vmem:[%s439 + $0x1] sm:$0xff] %vm1228, %v3568
      %3585 = vst.msk [vmem:[%s439 + $0x9] sm:$0xff] %vm1228, %v3569
      %3586 = vst.msk [vmem:[%s439 + $0x19] sm:$0xff] %vm1228, %v3570
      %3587 = vst.msk [vmem:[%s439 + $0x21] sm:$0xff] %vm1228, %v3571
      %3588 = vst.msk [vmem:[%s439 + $0x31] sm:$0xff] %vm1228, %v3572
      %3589 = vst.msk [vmem:[%s439 + $0x39] sm:$0xff] %vm1228, %v3573
      %3590 = vst.msk [vmem:[%s439 + $0x49] sm:$0xff] %vm1228, %v3574
      %3591 = vst.msk [vmem:[%s439 + $0x51] sm:$0xff] %vm1228, %v3575
      %3592 = vst.msk [vmem:[%s439 + $0x61] sm:$0xff] %vm1228, %v3576
      %3593 = vst.msk [vmem:[%s439 + $0x69] sm:$0xff] %vm1228, %v3577
      %3594 = vst.msk [vmem:[%s439 + $0x79] sm:$0xff] %vm1228, %v3578
      %3595 = vst.msk [vmem:[%s439 + $0x81] sm:$0xff] %vm1228, %v3579
      %3596 = vst.msk [vmem:[%s439 + $0x91] sm:$0xff] %vm1228, %v3580
      %3597 = vst.msk [vmem:[%s439 + $0x99] sm:$0xff] %vm1228, %v3581
      %3598 = vst.msk [vmem:[%s439 + $0xa9] sm:$0xff] %vm1228, %v3582
      %3599 = vst.msk [vmem:[%s439 + $0xb1] sm:$0xff] %vm1228, %v3583
      %v3600 = vld [vmem:[#allocation2] sm:$0xff]
      %v3601 = vld [vmem:[#allocation2 + $0x8] sm:$0xff]
      %v3602 = vld [vmem:[#allocation2 + $0x10] sm:$0x3]
      %v3603 = vld [vmem:[#allocation2 + $0x18] sm:$0xff]
      %v3604 = vld [vmem:[#allocation2 + $0x20] sm:$0xff]
      %v3605 = vld [vmem:[#allocation2 + $0x28] sm:$0x3]
      %v3606 = vld [vmem:[#allocation2 + $0x30] sm:$0xff]
      %v3607 = vld [vmem:[#allocation2 + $0x38] sm:$0xff]
      %v3608 = vld [vmem:[#allocation2 + $0x40] sm:$0x3]
      %v3609 = vld [vmem:[#allocation2 + $0x48] sm:$0xff]
      %v3610 = vld [vmem:[#allocation2 + $0x50] sm:$0xff]
      %v3611 = vld [vmem:[#allocation2 + $0x58] sm:$0x3]
      %v3612 = vld [vmem:[#allocation2 + $0x60] sm:$0xff]
      %v3613 = vld [vmem:[#allocation2 + $0x68] sm:$0xff]
      %v3614 = vld [vmem:[#allocation2 + $0x70] sm:$0x3]
      %v3615 = vld [vmem:[#allocation2 + $0x78] sm:$0xff]
      %v3616 = vld [vmem:[#allocation2 + $0x80] sm:$0xff]
      %v3617 = vld [vmem:[#allocation2 + $0x88] sm:$0x3]
      %v3618 = vld [vmem:[#allocation2 + $0x90] sm:$0xff]
      %v3619 = vld [vmem:[#allocation2 + $0x98] sm:$0xff]
      %v3620 = vld [vmem:[#allocation2 + $0xa0] sm:$0x3]
      %v3621 = vld [vmem:[#allocation2 + $0xa8] sm:$0xff]
      %v3622 = vld [vmem:[#allocation2 + $0xb0] sm:$0xff]
      %v3623 = vld [vmem:[#allocation2 + $0xb8] sm:$0x3]
      %v3624 = vld [vmem:[%s439] sm:$0xff]
      %v3625 = vld [vmem:[%s439 + $0x8] sm:$0xff]
      %v3626 = vld [vmem:[%s439 + $0x10] sm:$0x3]
      %v3627 = vld [vmem:[%s439 + $0x18] sm:$0xff]
      %v3628 = vld [vmem:[%s439 + $0x20] sm:$0xff]
      %v3629 = vld [vmem:[%s439 + $0x28] sm:$0x3]
      %v3630 = vld [vmem:[%s439 + $0x30] sm:$0xff]
      %v3631 = vld [vmem:[%s439 + $0x38] sm:$0xff]
      %v3632 = vld [vmem:[%s439 + $0x40] sm:$0x3]
      %v3633 = vld [vmem:[%s439 + $0x48] sm:$0xff]
      %v3634 = vld [vmem:[%s439 + $0x50] sm:$0xff]
      %v3635 = vld [vmem:[%s439 + $0x58] sm:$0x3]
      %v3636 = vld [vmem:[%s439 + $0x60] sm:$0xff]
      %v3637 = vld [vmem:[%s439 + $0x68] sm:$0xff]
      %v3638 = vld [vmem:[%s439 + $0x70] sm:$0x3]
      %v3639 = vld [vmem:[%s439 + $0x78] sm:$0xff]
      %v3640 = vld [vmem:[%s439 + $0x80] sm:$0xff]
      %v3641 = vld [vmem:[%s439 + $0x88] sm:$0x3]
      %v3642 = vld [vmem:[%s439 + $0x90] sm:$0xff]
      %v3643 = vld [vmem:[%s439 + $0x98] sm:$0xff]
      %v3644 = vld [vmem:[%s439 + $0xa0] sm:$0x3]
      %v3645 = vld [vmem:[%s439 + $0xa8] sm:$0xff]
      %v3646 = vld [vmem:[%s439 + $0xb0] sm:$0xff]
      %v3647 = vld [vmem:[%s439 + $0xb8] sm:$0x3]
      %v3672 = vrot.slane %v3600, 1
      %v3673 = vrot.slane %v3601, 1
      %v3674 = vsel %vm530, %v3672, %v3673
      %v3675 = vrot.slane %v3602, 1
      %v3676 = vsel %vm530, %v3673, %v3675
      %v3677 = vrot.slane %v3603, 1
      %v3678 = vrot.slane %v3604, 1
      %v3679 = vsel %vm530, %v3677, %v3678
      %v3680 = vrot.slane %v3605, 1
      %v3681 = vsel %vm530, %v3678, %v3680
      %v3682 = vrot.slane %v3606, 1
      %v3683 = vrot.slane %v3607, 1
      %v3684 = vsel %vm530, %v3682, %v3683
      %v3685 = vrot.slane %v3608, 1
      %v3686 = vsel %vm530, %v3683, %v3685
      %v3687 = vrot.slane %v3609, 1
      %v3688 = vrot.slane %v3610, 1
      %v3689 = vsel %vm530, %v3687, %v3688
      %v3690 = vrot.slane %v3611, 1
      %v3691 = vsel %vm530, %v3688, %v3690
      %v3692 = vrot.slane %v3612, 1
      %v3693 = vrot.slane %v3613, 1
      %v3694 = vsel %vm530, %v3692, %v3693
      %v3695 = vrot.slane %v3614, 1
      %v3696 = vsel %vm530, %v3693, %v3695
      %v3697 = vrot.slane %v3615, 1
      %v3698 = vrot.slane %v3616, 1
      %v3699 = vsel %vm530, %v3697, %v3698
      %v3700 = vrot.slane %v3617, 1
      %v3701 = vsel %vm530, %v3698, %v3700
      %v3702 = vrot.slane %v3618, 1
      %v3703 = vrot.slane %v3619, 1
      %v3704 = vsel %vm530, %v3702, %v3703
      %v3705 = vrot.slane %v3620, 1
      %v3706 = vsel %vm530, %v3703, %v3705
      %v3707 = vrot.slane %v3621, 1
      %v3708 = vrot.slane %v3622, 1
      %v3709 = vsel %vm530, %v3707, %v3708
      %v3710 = vrot.slane %v3623, 1
      %v3711 = vsel %vm530, %v3708, %v3710
      %3712 = vrot.lane.b32.xlu0 %v3674, 32
      %v3713 = vpop.permute.xlu0 %3712
      %3714 = vrot.lane.b32.xlu0 %v3676, 32
      %v3715 = vpop.permute.xlu0 %3714
      %3716 = vrot.lane.b32.xlu0 %v3679, 32
      %v3717 = vpop.permute.xlu0 %3716
      %3718 = vrot.lane.b32.xlu0 %v3681, 32
      %v3719 = vpop.permute.xlu0 %3718
      %3720 = vrot.lane.b32.xlu0 %v3684, 32
      %v3721 = vpop.permute.xlu0 %3720
      %3722 = vrot.lane.b32.xlu0 %v3686, 32
      %v3723 = vpop.permute.xlu0 %3722
      %3724 = vrot.lane.b32.xlu0 %v3689, 32
      %v3725 = vpop.permute.xlu0 %3724
      %3726 = vrot.lane.b32.xlu0 %v3691, 32
      %v3727 = vpop.permute.xlu0 %3726
      %3728 = vrot.lane.b32.xlu0 %v3694, 32
      %v3729 = vpop.permute.xlu0 %3728
      %3730 = vrot.lane.b32.xlu0 %v3696, 32
      %v3731 = vpop.permute.xlu0 %3730
      %3732 = vrot.lane.b32.xlu0 %v3699, 32
      %v3733 = vpop.permute.xlu0 %3732
      %3734 = vrot.lane.b32.xlu0 %v3701, 32
      %v3735 = vpop.permute.xlu0 %3734
      %3736 = vrot.lane.b32.xlu0 %v3704, 32
      %v3737 = vpop.permute.xlu0 %3736
      %3738 = vrot.lane.b32.xlu0 %v3706, 32
      %v3739 = vpop.permute.xlu0 %3738
      %3740 = vrot.lane.b32.xlu0 %v3709, 32
      %v3741 = vpop.permute.xlu0 %3740
      %3742 = vrot.lane.b32.xlu0 %v3711, 32
      %v3743 = vpop.permute.xlu0 %3742
      %v3760 = vrot.slane %v3600, 2
      %v3761 = vrot.slane %v3601, 2
      %v3762 = vsel %vm619, %v3760, %v3761
      %v3763 = vrot.slane %v3602, 2
      %v3764 = vsel %vm619, %v3761, %v3763
      %v3765 = vrot.slane %v3603, 2
      %v3766 = vrot.slane %v3604, 2
      %v3767 = vsel %vm619, %v3765, %v3766
      %v3768 = vrot.slane %v3605, 2
      %v3769 = vsel %vm619, %v3766, %v3768
      %v3770 = vrot.slane %v3606, 2
      %v3771 = vrot.slane %v3607, 2
      %v3772 = vsel %vm619, %v3770, %v3771
      %v3773 = vrot.slane %v3608, 2
      %v3774 = vsel %vm619, %v3771, %v3773
      %v3775 = vrot.slane %v3609, 2
      %v3776 = vrot.slane %v3610, 2
      %v3777 = vsel %vm619, %v3775, %v3776
      %v3778 = vrot.slane %v3611, 2
      %v3779 = vsel %vm619, %v3776, %v3778
      %v3780 = vrot.slane %v3612, 2
      %v3781 = vrot.slane %v3613, 2
      %v3782 = vsel %vm619, %v3780, %v3781
      %v3783 = vrot.slane %v3614, 2
      %v3784 = vsel %vm619, %v3781, %v3783
      %v3785 = vrot.slane %v3615, 2
      %v3786 = vrot.slane %v3616, 2
      %v3787 = vsel %vm619, %v3785, %v3786
      %v3788 = vrot.slane %v3617, 2
      %v3789 = vsel %vm619, %v3786, %v3788
      %v3790 = vrot.slane %v3618, 2
      %v3791 = vrot.slane %v3619, 2
      %v3792 = vsel %vm619, %v3790, %v3791
      %v3793 = vrot.slane %v3620, 2
      %v3794 = vsel %vm619, %v3791, %v3793
      %v3795 = vrot.slane %v3621, 2
      %v3796 = vrot.slane %v3622, 2
      %v3797 = vsel %vm619, %v3795, %v3796
      %v3798 = vrot.slane %v3623, 2
      %v3799 = vsel %vm619, %v3796, %v3798
      %3800 = vrot.lane.b32.xlu0 %v3762, 64
      %v3801 = vpop.permute.xlu0 %3800
      %3802 = vrot.lane.b32.xlu0 %v3764, 64
      %v3803 = vpop.permute.xlu0 %3802
      %3804 = vrot.lane.b32.xlu0 %v3767, 64
      %v3805 = vpop.permute.xlu0 %3804
      %3806 = vrot.lane.b32.xlu0 %v3769, 64
      %v3807 = vpop.permute.xlu0 %3806
      %3808 = vrot.lane.b32.xlu0 %v3772, 64
      %v3809 = vpop.permute.xlu0 %3808
      %3810 = vrot.lane.b32.xlu0 %v3774, 64
      %v3811 = vpop.permute.xlu0 %3810
      %3812 = vrot.lane.b32.xlu0 %v3777, 64
      %v3813 = vpop.permute.xlu0 %3812
      %3814 = vrot.lane.b32.xlu0 %v3779, 64
      %v3815 = vpop.permute.xlu0 %3814
      %3816 = vrot.lane.b32.xlu0 %v3782, 64
      %v3817 = vpop.permute.xlu0 %3816
      %3818 = vrot.lane.b32.xlu0 %v3784, 64
      %v3819 = vpop.permute.xlu0 %3818
      %3820 = vrot.lane.b32.xlu0 %v3787, 64
      %v3821 = vpop.permute.xlu0 %3820
      %3822 = vrot.lane.b32.xlu0 %v3789, 64
      %v3823 = vpop.permute.xlu0 %3822
      %3824 = vrot.lane.b32.xlu0 %v3792, 64
      %v3825 = vpop.permute.xlu0 %3824
      %3826 = vrot.lane.b32.xlu0 %v3794, 64
      %v3827 = vpop.permute.xlu0 %3826
      %3828 = vrot.lane.b32.xlu0 %v3797, 64
      %v3829 = vpop.permute.xlu0 %3828
      %3830 = vrot.lane.b32.xlu0 %v3799, 64
      %v3831 = vpop.permute.xlu0 %3830
      %3864 = vrot.lane.b32.xlu0 %v3624, 96
      %v3865 = vpop.permute.xlu0 %3864
      %3866 = vrot.lane.b32.xlu0 %v3625, 96
      %v3867 = vpop.permute.xlu0 %3866
      %3868 = vrot.lane.b32.xlu0 %v3627, 96
      %v3869 = vpop.permute.xlu0 %3868
      %3870 = vrot.lane.b32.xlu0 %v3628, 96
      %v3871 = vpop.permute.xlu0 %3870
      %3872 = vrot.lane.b32.xlu0 %v3630, 96
      %v3873 = vpop.permute.xlu0 %3872
      %3874 = vrot.lane.b32.xlu0 %v3631, 96
      %v3875 = vpop.permute.xlu0 %3874
      %3876 = vrot.lane.b32.xlu0 %v3633, 96
      %v3877 = vpop.permute.xlu0 %3876
      %3878 = vrot.lane.b32.xlu0 %v3634, 96
      %v3879 = vpop.permute.xlu0 %3878
      %3880 = vrot.lane.b32.xlu0 %v3636, 96
      %v3881 = vpop.permute.xlu0 %3880
      %3882 = vrot.lane.b32.xlu0 %v3637, 96
      %v3883 = vpop.permute.xlu0 %3882
      %3884 = vrot.lane.b32.xlu0 %v3639, 96
      %v3885 = vpop.permute.xlu0 %3884
      %3886 = vrot.lane.b32.xlu0 %v3640, 96
      %v3887 = vpop.permute.xlu0 %3886
      %3888 = vrot.lane.b32.xlu0 %v3642, 96
      %v3889 = vpop.permute.xlu0 %3888
      %3890 = vrot.lane.b32.xlu0 %v3643, 96
      %v3891 = vpop.permute.xlu0 %3890
      %3892 = vrot.lane.b32.xlu0 %v3645, 96
      %v3893 = vpop.permute.xlu0 %3892
      %3894 = vrot.lane.b32.xlu0 %v3646, 96
      %v3895 = vpop.permute.xlu0 %3894
      %v3920 = vrot.slane %v3624, 1
      %v3921 = vrot.slane %v3625, 1
      %v3922 = vsel %vm530, %v3920, %v3921
      %v3923 = vrot.slane %v3626, 1
      %v3924 = vsel %vm530, %v3921, %v3923
      %v3925 = vrot.slane %v3627, 1
      %v3926 = vrot.slane %v3628, 1
      %v3927 = vsel %vm530, %v3925, %v3926
      %v3928 = vrot.slane %v3629, 1
      %v3929 = vsel %vm530, %v3926, %v3928
      %v3930 = vrot.slane %v3630, 1
      %v3931 = vrot.slane %v3631, 1
      %v3932 = vsel %vm530, %v3930, %v3931
      %v3933 = vrot.slane %v3632, 1
      %v3934 = vsel %vm530, %v3931, %v3933
      %v3935 = vrot.slane %v3633, 1
      %v3936 = vrot.slane %v3634, 1
      %v3937 = vsel %vm530, %v3935, %v3936
      %v3938 = vrot.slane %v3635, 1
      %v3939 = vsel %vm530, %v3936, %v3938
      %v3940 = vrot.slane %v3636, 1
      %v3941 = vrot.slane %v3637, 1
      %v3942 = vsel %vm530, %v3940, %v3941
      %v3943 = vrot.slane %v3638, 1
      %v3944 = vsel %vm530, %v3941, %v3943
      %v3945 = vrot.slane %v3639, 1
      %v3946 = vrot.slane %v3640, 1
      %v3947 = vsel %vm530, %v3945, %v3946
      %v3948 = vrot.slane %v3641, 1
      %v3949 = vsel %vm530, %v3946, %v3948
      %v3950 = vrot.slane %v3642, 1
      %v3951 = vrot.slane %v3643, 1
      %v3952 = vsel %vm530, %v3950, %v3951
      %v3953 = vrot.slane %v3644, 1
      %v3954 = vsel %vm530, %v3951, %v3953
      %v3955 = vrot.slane %v3645, 1
      %v3956 = vrot.slane %v3646, 1
      %v3957 = vsel %vm530, %v3955, %v3956
      %v3958 = vrot.slane %v3647, 1
      %v3959 = vsel %vm530, %v3956, %v3958
      %v3976 = vrot.slane %v3624, 2
      %v3977 = vrot.slane %v3625, 2
      %v3978 = vsel %vm619, %v3976, %v3977
      %v3979 = vrot.slane %v3626, 2
      %v3980 = vsel %vm619, %v3977, %v3979
      %v3981 = vrot.slane %v3627, 2
      %v3982 = vrot.slane %v3628, 2
      %v3983 = vsel %vm619, %v3981, %v3982
      %v3984 = vrot.slane %v3629, 2
      %v3985 = vsel %vm619, %v3982, %v3984
      %v3986 = vrot.slane %v3630, 2
      %v3987 = vrot.slane %v3631, 2
      %v3988 = vsel %vm619, %v3986, %v3987
      %v3989 = vrot.slane %v3632, 2
      %v3990 = vsel %vm619, %v3987, %v3989
      %v3991 = vrot.slane %v3633, 2
      %v3992 = vrot.slane %v3634, 2
      %v3993 = vsel %vm619, %v3991, %v3992
      %v3994 = vrot.slane %v3635, 2
      %v3995 = vsel %vm619, %v3992, %v3994
      %v3996 = vrot.slane %v3636, 2
      %v3997 = vrot.slane %v3637, 2
      %v3998 = vsel %vm619, %v3996, %v3997
      %v3999 = vrot.slane %v3638, 2
      %v4000 = vsel %vm619, %v3997, %v3999
      %v4001 = vrot.slane %v3639, 2
      %v4002 = vrot.slane %v3640, 2
      %v4003 = vsel %vm619, %v4001, %v4002
      %v4004 = vrot.slane %v3641, 2
      %v4005 = vsel %vm619, %v4002, %v4004
      %v4006 = vrot.slane %v3642, 2
      %v4007 = vrot.slane %v3643, 2
      %v4008 = vsel %vm619, %v4006, %v4007
      %v4009 = vrot.slane %v3644, 2
      %v4010 = vsel %vm619, %v4007, %v4009
      %v4011 = vrot.slane %v3645, 2
      %v4012 = vrot.slane %v3646, 2
      %v4013 = vsel %vm619, %v4011, %v4012
      %v4014 = vrot.slane %v3647, 2
      %v4015 = vsel %vm619, %v4012, %v4014
      %4016 = vrot.lane.b32.xlu0 %v3978, 32
      %v4017 = vpop.permute.xlu0 %4016
      %4018 = vrot.lane.b32.xlu0 %v3980, 32
      %v4019 = vpop.permute.xlu0 %4018
      %4020 = vrot.lane.b32.xlu0 %v3983, 32
      %v4021 = vpop.permute.xlu0 %4020
      %4022 = vrot.lane.b32.xlu0 %v3985, 32
      %v4023 = vpop.permute.xlu0 %4022
      %4024 = vrot.lane.b32.xlu0 %v3988, 32
      %v4025 = vpop.permute.xlu0 %4024
      %4026 = vrot.lane.b32.xlu0 %v3990, 32
      %v4027 = vpop.permute.xlu0 %4026
      %4028 = vrot.lane.b32.xlu0 %v3993, 32
      %v4029 = vpop.permute.xlu0 %4028
      %4030 = vrot.lane.b32.xlu0 %v3995, 32
      %v4031 = vpop.permute.xlu0 %4030
      %4032 = vrot.lane.b32.xlu0 %v3998, 32
      %v4033 = vpop.permute.xlu0 %4032
      %4034 = vrot.lane.b32.xlu0 %v4000, 32
      %v4035 = vpop.permute.xlu0 %4034
      %4036 = vrot.lane.b32.xlu0 %v4003, 32
      %v4037 = vpop.permute.xlu0 %4036
      %4038 = vrot.lane.b32.xlu0 %v4005, 32
      %v4039 = vpop.permute.xlu0 %4038
      %4040 = vrot.lane.b32.xlu0 %v4008, 32
      %v4041 = vpop.permute.xlu0 %4040
      %4042 = vrot.lane.b32.xlu0 %v4010, 32
      %v4043 = vpop.permute.xlu0 %4042
      %4044 = vrot.lane.b32.xlu0 %v4013, 32
      %v4045 = vpop.permute.xlu0 %4044
      %4046 = vrot.lane.b32.xlu0 %v4015, 32
      %v4047 = vpop.permute.xlu0 %4046
      %v4064 = vsel %vm309, %v3600, %v3713
      %v4065 = vsel %vm309, %v3601, %v3715
      %v4066 = vsel %vm309, %v3603, %v3717
      %v4067 = vsel %vm309, %v3604, %v3719
      %v4068 = vsel %vm309, %v3606, %v3721
      %v4069 = vsel %vm309, %v3607, %v3723
      %v4070 = vsel %vm309, %v3609, %v3725
      %v4071 = vsel %vm309, %v3610, %v3727
      %v4072 = vsel %vm309, %v3612, %v3729
      %v4073 = vsel %vm309, %v3613, %v3731
      %v4074 = vsel %vm309, %v3615, %v3733
      %v4075 = vsel %vm309, %v3616, %v3735
      %v4076 = vsel %vm309, %v3618, %v3737
      %v4077 = vsel %vm309, %v3619, %v3739
      %v4078 = vsel %vm309, %v3621, %v3741
      %v4079 = vsel %vm309, %v3622, %v3743
      %v4080 = vsel %vm940, %v4064, %v3801
      %v4081 = vsel %vm940, %v4065, %v3803
      %v4082 = vsel %vm940, %v4066, %v3805
      %v4083 = vsel %vm940, %v4067, %v3807
      %v4084 = vsel %vm940, %v4068, %v3809
      %v4085 = vsel %vm940, %v4069, %v3811
      %v4086 = vsel %vm940, %v4070, %v3813
      %v4087 = vsel %vm940, %v4071, %v3815
      %v4088 = vsel %vm940, %v4072, %v3817
      %v4089 = vsel %vm940, %v4073, %v3819
      %v4090 = vsel %vm940, %v4074, %v3821
      %v4091 = vsel %vm940, %v4075, %v3823
      %v4092 = vsel %vm940, %v4076, %v3825
      %v4093 = vsel %vm940, %v4077, %v3827
      %v4094 = vsel %vm940, %v4078, %v3829
      %v4095 = vsel %vm940, %v4079, %v3831
      %v4096 = vsel %vm957, %v4080, %v3865
      %v4097 = vsel %vm957, %v4081, %v3867
      %v4098 = vsel %vm957, %v4082, %v3869
      %v4099 = vsel %vm957, %v4083, %v3871
      %v4100 = vsel %vm957, %v4084, %v3873
      %v4101 = vsel %vm957, %v4085, %v3875
      %v4102 = vsel %vm957, %v4086, %v3877
      %v4103 = vsel %vm957, %v4087, %v3879
      %v4104 = vsel %vm957, %v4088, %v3881
      %v4105 = vsel %vm957, %v4089, %v3883
      %v4106 = vsel %vm957, %v4090, %v3885
      %v4107 = vsel %vm957, %v4091, %v3887
      %v4108 = vsel %vm957, %v4092, %v3889
      %v4109 = vsel %vm957, %v4093, %v3891
      %v4110 = vsel %vm957, %v4094, %v3893
      %v4111 = vsel %vm957, %v4095, %v3895
      %v4112 = vsel %vm309, %v3922, %v4017
      %v4113 = vsel %vm309, %v3924, %v4019
      %v4114 = vsel %vm309, %v3927, %v4021
      %v4115 = vsel %vm309, %v3929, %v4023
      %v4116 = vsel %vm309, %v3932, %v4025
      %v4117 = vsel %vm309, %v3934, %v4027
      %v4118 = vsel %vm309, %v3937, %v4029
      %v4119 = vsel %vm309, %v3939, %v4031
      %v4120 = vsel %vm309, %v3942, %v4033
      %v4121 = vsel %vm309, %v3944, %v4035
      %v4122 = vsel %vm309, %v3947, %v4037
      %v4123 = vsel %vm309, %v3949, %v4039
      %v4124 = vsel %vm309, %v3952, %v4041
      %v4125 = vsel %vm309, %v3954, %v4043
      %v4126 = vsel %vm309, %v3957, %v4045
      %v4127 = vsel %vm309, %v3959, %v4047
      %v4128 = vpack.c.bf16 %v4097, %v4096
      %v4129 = vpack.c.bf16 %v4113, %v4112
      %v4130 = vpack.c.bf16 %v4099, %v4098
      %v4131 = vpack.c.bf16 %v4115, %v4114
      %v4132 = vpack.c.bf16 %v4101, %v4100
      %v4133 = vpack.c.bf16 %v4117, %v4116
      %v4134 = vpack.c.bf16 %v4103, %v4102
      %v4135 = vpack.c.bf16 %v4119, %v4118
      %v4136 = vpack.c.bf16 %v4105, %v4104
      %v4137 = vpack.c.bf16 %v4121, %v4120
      %v4138 = vpack.c.bf16 %v4107, %v4106
      %v4139 = vpack.c.bf16 %v4123, %v4122
      %v4140 = vpack.c.bf16 %v4109, %v4108
      %v4141 = vpack.c.bf16 %v4125, %v4124
      %v4142 = vpack.c.bf16 %v4111, %v4110
      %v4143 = vpack.c.bf16 %v4127, %v4126
      %s4144 = scalar_lea.vmem %s1, 288
      %v4145 = vld [vmem:[%s4144] sm:$0xf]
      %v4146 = vld [vmem:[%s4144 + $0x4] sm:$0xf]
      %v4147 = vld [vmem:[%s4144 + $0x8] sm:$0xf]
      %v4148 = vld [vmem:[%s4144 + $0xc] sm:$0xf]
      %v4149 = vld [vmem:[%s4144 + $0x10] sm:$0xf]
      %v4150 = vld [vmem:[%s4144 + $0x14] sm:$0xf]
      %v4151 = vld [vmem:[%s4144 + $0x18] sm:$0xf]
      %v4152 = vld [vmem:[%s4144 + $0x1c] sm:$0xf]
      %v4153 = vld [vmem:[%s4144 + $0x20] sm:$0xf]
      %v4154 = vld [vmem:[%s4144 + $0x24] sm:$0xf]
      %v4155 = vld [vmem:[%s4144 + $0x28] sm:$0xf]
      %v4156 = vld [vmem:[%s4144 + $0x2c] sm:$0xf]
      %v4157 = vld [vmem:[%s4144 + $0x30] sm:$0xf]
      %v4158 = vld [vmem:[%s4144 + $0x34] sm:$0xf]
      %v4159 = vld [vmem:[%s4144 + $0x38] sm:$0xf]
      %v4160 = vld [vmem:[%s4144 + $0x3c] sm:$0xf]
      %v4161 = vld [vmem:[%s4144 + $0x40] sm:$0xf]
      %v4162 = vld [vmem:[%s4144 + $0x44] sm:$0xf]
      %v4163 = vld [vmem:[%s4144 + $0x48] sm:$0xf]
      %v4164 = vld [vmem:[%s4144 + $0x4c] sm:$0xf]
      %v4165 = vld [vmem:[%s4144 + $0x50] sm:$0xf]
      %v4166 = vld [vmem:[%s4144 + $0x54] sm:$0xf]
      %v4167 = vld [vmem:[%s4144 + $0x58] sm:$0xf]
      %v4168 = vld [vmem:[%s4144 + $0x5c] sm:$0xf]
      %s4169 = scalar_lea.vmem %s2, 12
      %v4170 = vld [vmem:[%s4169] sm:$0xf]
      %v4171 = vlaneseq
      %v4172 = vshrl.u32 %v4171, 7
      %v4173 = vsub.s32 0, %v4172
      %v4174 = vrot.slane %v4170, %v4173
      %v4199 = vunpack.c.l.b16 %v4145
      %v4200 = vunpack.c.l.b16 %v4146
      %v4201 = vunpack.c.l.b16 %v4147
      %v4202 = vunpack.c.l.b16 %v4148
      %v4203 = vunpack.c.l.b16 %v4149
      %v4204 = vunpack.c.l.b16 %v4150
      %v4205 = vunpack.c.l.b16 %v4151
      %v4206 = vunpack.c.l.b16 %v4152
      %v4207 = vunpack.c.l.b16 %v4153
      %v4208 = vunpack.c.l.b16 %v4154
      %v4209 = vunpack.c.l.b16 %v4155
      %v4210 = vunpack.c.l.b16 %v4156
      %v4211 = vunpack.c.l.b16 %v4157
      %v4212 = vunpack.c.l.b16 %v4158
      %v4213 = vunpack.c.l.b16 %v4159
      %v4214 = vunpack.c.l.b16 %v4160
      %v4215 = vunpack.c.l.b16 %v4161
      %v4216 = vunpack.c.l.b16 %v4162
      %v4217 = vunpack.c.l.b16 %v4163
      %v4218 = vunpack.c.l.b16 %v4164
      %v4219 = vunpack.c.l.b16 %v4165
      %v4220 = vunpack.c.l.b16 %v4166
      %v4221 = vunpack.c.l.b16 %v4167
      %v4222 = vunpack.c.l.b16 %v4168
      %v4223 = vpack.c.b16 %v4200, %v4199
      %v4224 = vpack.c.b16 %v4202, %v4201
      %v4225 = vpack.c.b16 %v4204, %v4203
      %v4226 = vpack.c.b16 %v4206, %v4205
      %v4227 = vpack.c.b16 %v4208, %v4207
      %v4228 = vpack.c.b16 %v4210, %v4209
      %v4229 = vpack.c.b16 %v4212, %v4211
      %v4230 = vpack.c.b16 %v4214, %v4213
      %v4231 = vpack.c.b16 %v4216, %v4215
      %v4232 = vpack.c.b16 %v4218, %v4217
      %v4233 = vpack.c.b16 %v4220, %v4219
      %v4234 = vpack.c.b16 %v4222, %v4221
      %v4248 = vsel %vm940, %v4129, 0
      %v4251 = vsel %vm940, %v4131, 0
      %v4254 = vsel %vm940, %v4133, 0
      %v4257 = vsel %vm940, %v4135, 0
      %v4260 = vsel %vm940, %v4137, 0
      %v4263 = vsel %vm940, %v4139, 0
      %v4266 = vsel %vm940, %v4141, 0
      %v4269 = vsel %vm940, %v4143, 0
      %4271 = vmatprep.subr.bf16.mxu0 0
      %4272 = vmatpush1.bf16.msra.mxu0 %v4230
      %4273 = vmatprep.subr.bf16.mxu0 0
      %4274 = vmatpush1.bf16.msra.mxu0 %v4229
      %4275 = vmatprep.subr.bf16.mxu0 0
      %4276 = vmatpush1.bf16.msra.mxu0 %v4228
      %4277 = vmatprep.subr.bf16.mxu0 0
      %4278 = vmatpush1.bf16.msra.mxu0 %v4227
      %4279 = vmatprep.subr.bf16.mxu0 0
      %4280 = vmatpush1.bf16.msra.mxu0 %v4226
      %4281 = vmatprep.subr.bf16.mxu0 0
      %4282 = vmatpush1.bf16.msra.mxu0 %v4225
      %4283 = vmatprep.subr.bf16.mxu0 0
      %4284 = vmatpush1.bf16.msra.mxu0 %v4224
      %4285 = vmatprep.subr.bf16.mxu0 0
      %4286 = vmatpush1.bf16.msra.mxu0 %v4223
      %4287 = vmatprep.subr.bf16.mxu0 0
      %4288 = vmatpush2.bf16.msra.mxu0 0
      %4289 = vmatprep.subr.bf16.mxu0 0
      %4290 = vmatpush2.bf16.msra.mxu0 0
      %4291 = vmatprep.subr.bf16.mxu0 0
      %4292 = vmatpush2.bf16.msra.mxu0 0
      %4293 = vmatprep.subr.bf16.mxu0 0
      %4294 = vmatpush2.bf16.msra.mxu0 0
      %4295 = vmatprep.subr.bf16.mxu0 0
      %4296 = vmatpush2.bf16.msra.mxu0 %v4234
      %4297 = vmatprep.subr.bf16.mxu0 0
      %4298 = vmatpush2.bf16.msra.mxu0 %v4233
      %4299 = vmatprep.subr.bf16.mxu0 0
      %4300 = vmatpush2.bf16.msra.mxu0 %v4232
      %4301 = vmatprep.subr.bf16.mxu0 0
      %4302 = vmatpush2.bf16.msra.mxu0 %v4231
      %4303 = vmatprep.mubr.bf16.mxu0 %v4248
      %4304 = vmatmul.mubr.bf16.gmra.mxu0 %v4128
      %v4305 = vpop.f32.mrf.mxu0
      %v4306 = vadd.f32 %v4174, %v4305
      %v4307 = vpop.f32.mrf.mxu0
      %v4308 = vpop.f32.mrf.mxu0
      %v4309 = vadd.f32 %v4174, %v4308
      %v4310 = vpop.f32.mrf.mxu0
      %4311 = vmatprep.mubr.bf16.mxu0 %v4251
      %4312 = vmatmul.mubr.bf16.gmra.mxu0 %v4130
      %v4313 = vpop.f32.mrf.mxu0
      %v4314 = vadd.f32 %v4174, %v4313
      %v4315 = vpop.f32.mrf.mxu0
      %v4316 = vpop.f32.mrf.mxu0
      %v4317 = vadd.f32 %v4174, %v4316
      %v4318 = vpop.f32.mrf.mxu0
      %4319 = vmatprep.mubr.bf16.mxu0 %v4254
      %4320 = vmatmul.mubr.bf16.gmra.mxu0 %v4132
      %v4321 = vpop.f32.mrf.mxu0
      %v4322 = vadd.f32 %v4174, %v4321
      %v4323 = vpop.f32.mrf.mxu0
      %v4324 = vpop.f32.mrf.mxu0
      %v4325 = vadd.f32 %v4174, %v4324
      %v4326 = vpop.f32.mrf.mxu0
      %4327 = vmatprep.mubr.bf16.mxu0 %v4257
      %4328 = vmatmul.mubr.bf16.gmra.mxu0 %v4134
      %v4329 = vpop.f32.mrf.mxu0
      %v4330 = vadd.f32 %v4174, %v4329
      %v4331 = vpop.f32.mrf.mxu0
      %v4332 = vpop.f32.mrf.mxu0
      %v4333 = vadd.f32 %v4174, %v4332
      %v4334 = vpop.f32.mrf.mxu0
      %4335 = vmatprep.mubr.bf16.mxu0 %v4260
      %4336 = vmatmul.mubr.bf16.gmra.mxu0 %v4136
      %v4337 = vpop.f32.mrf.mxu0
      %v4338 = vadd.f32 %v4174, %v4337
      %v4339 = vpop.f32.mrf.mxu0
      %v4340 = vpop.f32.mrf.mxu0
      %v4341 = vadd.f32 %v4174, %v4340
      %v4342 = vpop.f32.mrf.mxu0
      %4343 = vmatprep.mubr.bf16.mxu0 %v4263
      %4344 = vmatmul.mubr.bf16.gmra.mxu0 %v4138
      %v4345 = vpop.f32.mrf.mxu0
      %v4346 = vadd.f32 %v4174, %v4345
      %v4347 = vpop.f32.mrf.mxu0
      %v4348 = vpop.f32.mrf.mxu0
      %v4349 = vadd.f32 %v4174, %v4348
      %v4350 = vpop.f32.mrf.mxu0
      %4351 = vmatprep.mubr.bf16.mxu0 %v4266
      %4352 = vmatmul.mubr.bf16.gmra.mxu0 %v4140
      %v4353 = vpop.f32.mrf.mxu0
      %v4354 = vadd.f32 %v4174, %v4353
      %v4355 = vpop.f32.mrf.mxu0
      %v4356 = vpop.f32.mrf.mxu0
      %v4357 = vadd.f32 %v4174, %v4356
      %v4358 = vpop.f32.mrf.mxu0
      %4359 = vmatprep.mubr.bf16.mxu0 %v4269
      %4360 = vmatmul.mubr.bf16.gmra.mxu0 %v4142
      %v4361 = vpop.f32.mrf.mxu0
      %v4362 = vadd.f32 %v4174, %v4361
      %v4363 = vpop.f32.mrf.mxu0
      %v4364 = vpop.f32.mrf.mxu0
      %v4365 = vadd.f32 %v4174, %v4364
      %v4366 = vpop.f32.mrf.mxu0
      %4367 = vdwg.mxu0
      %v4368 = vsel %vm1228, %v4306, 0.0
      %v4369 = vsel %vm1228, %v4309, 0.0
      %v4370 = vadd.f32 %v4368, %v4369
      %v4371 = vsel %vm1228, %v4314, 0.0
      %v4372 = vadd.f32 %v4370, %v4371
      %v4373 = vsel %vm1228, %v4317, 0.0
      %v4374 = vadd.f32 %v4372, %v4373
      %v4375 = vsel %vm1228, %v4322, 0.0
      %v4376 = vadd.f32 %v4374, %v4375
      %v4377 = vsel %vm1228, %v4325, 0.0
      %v4378 = vadd.f32 %v4376, %v4377
      %v4379 = vsel %vm1228, %v4330, 0.0
      %v4380 = vadd.f32 %v4378, %v4379
      %v4381 = vsel %vm1228, %v4333, 0.0
      %v4382 = vadd.f32 %v4380, %v4381
      %v4383 = vsel %vm1228, %v4338, 0.0
      %v4384 = vadd.f32 %v4382, %v4383
      %v4385 = vsel %vm1228, %v4341, 0.0
      %v4386 = vadd.f32 %v4384, %v4385
      %v4387 = vsel %vm1228, %v4346, 0.0
      %v4388 = vadd.f32 %v4386, %v4387
      %v4389 = vsel %vm1228, %v4349, 0.0
      %v4390 = vadd.f32 %v4388, %v4389
      %v4391 = vsel %vm1228, %v4354, 0.0
      %v4392 = vadd.f32 %v4390, %v4391
      %v4393 = vsel %vm1228, %v4357, 0.0
      %v4394 = vadd.f32 %v4392, %v4393
      %v4395 = vsel %vm1228, %v4362, 0.0
      %v4396 = vadd.f32 %v4394, %v4395
      %v4397 = vsel %vm1228, %v4365, 0.0
      %v4398 = vadd.f32 %v4396, %v4397
      %v4399 = vrot.slane %v4398, 4
      %v4400 = vadd.f32 %v4398, %v4399
      %v4401 = vrot.slane %v4400, 2
      %v4402 = vadd.f32 %v4400, %v4401
      %v4403 = vrot.slane %v4402, 1
      %v4404 = vadd.f32 %v4402, %v4403
      %v4405 = vmul.f32 %v4404, %v1266
      %v4406 = vsub.f32 %v4306, %v4405
      %v4407 = vsub.f32 %v4309, %v4405
      %v4408 = vsub.f32 %v4314, %v4405
      %v4409 = vsub.f32 %v4317, %v4405
      %v4410 = vsub.f32 %v4322, %v4405
      %v4411 = vsub.f32 %v4325, %v4405
      %v4412 = vsub.f32 %v4330, %v4405
      %v4413 = vsub.f32 %v4333, %v4405
      %v4414 = vsub.f32 %v4338, %v4405
      %v4415 = vsub.f32 %v4341, %v4405
      %v4416 = vsub.f32 %v4346, %v4405
      %v4417 = vsub.f32 %v4349, %v4405
      %v4418 = vsub.f32 %v4354, %v4405
      %v4419 = vsub.f32 %v4357, %v4405
      %v4420 = vsub.f32 %v4362, %v4405
      %v4421 = vsub.f32 %v4365, %v4405
      %v4422 = vmul.f32 %v4406, %v4406
      %v4423 = vmul.f32 %v4407, %v4407
      %v4424 = vmul.f32 %v4408, %v4408
      %v4425 = vmul.f32 %v4409, %v4409
      %v4426 = vmul.f32 %v4410, %v4410
      %v4427 = vmul.f32 %v4411, %v4411
      %v4428 = vmul.f32 %v4412, %v4412
      %v4429 = vmul.f32 %v4413, %v4413
      %v4430 = vmul.f32 %v4414, %v4414
      %v4431 = vmul.f32 %v4415, %v4415
      %v4432 = vmul.f32 %v4416, %v4416
      %v4433 = vmul.f32 %v4417, %v4417
      %v4434 = vmul.f32 %v4418, %v4418
      %v4435 = vmul.f32 %v4419, %v4419
      %v4436 = vmul.f32 %v4420, %v4420
      %v4437 = vmul.f32 %v4421, %v4421
      %v4438 = vsel %vm1228, %v4422, 0.0
      %v4439 = vsel %vm1228, %v4423, 0.0
      %v4440 = vadd.f32 %v4438, %v4439
      %v4441 = vsel %vm1228, %v4424, 0.0
      %v4442 = vadd.f32 %v4440, %v4441
      %v4443 = vsel %vm1228, %v4425, 0.0
      %v4444 = vadd.f32 %v4442, %v4443
      %v4445 = vsel %vm1228, %v4426, 0.0
      %v4446 = vadd.f32 %v4444, %v4445
      %v4447 = vsel %vm1228, %v4427, 0.0
      %v4448 = vadd.f32 %v4446, %v4447
      %v4449 = vsel %vm1228, %v4428, 0.0
      %v4450 = vadd.f32 %v4448, %v4449
      %v4451 = vsel %vm1228, %v4429, 0.0
      %v4452 = vadd.f32 %v4450, %v4451
      %v4453 = vsel %vm1228, %v4430, 0.0
      %v4454 = vadd.f32 %v4452, %v4453
      %v4455 = vsel %vm1228, %v4431, 0.0
      %v4456 = vadd.f32 %v4454, %v4455
      %v4457 = vsel %vm1228, %v4432, 0.0
      %v4458 = vadd.f32 %v4456, %v4457
      %v4459 = vsel %vm1228, %v4433, 0.0
      %v4460 = vadd.f32 %v4458, %v4459
      %v4461 = vsel %vm1228, %v4434, 0.0
      %v4462 = vadd.f32 %v4460, %v4461
      %v4463 = vsel %vm1228, %v4435, 0.0
      %v4464 = vadd.f32 %v4462, %v4463
      %v4465 = vsel %vm1228, %v4436, 0.0
      %v4466 = vadd.f32 %v4464, %v4465
      %v4467 = vsel %vm1228, %v4437, 0.0
      %v4468 = vadd.f32 %v4466, %v4467
      %v4469 = vrot.slane %v4468, 4
      %v4470 = vadd.f32 %v4468, %v4469
      %v4471 = vrot.slane %v4470, 2
      %v4472 = vadd.f32 %v4470, %v4471
      %v4473 = vrot.slane %v4472, 1
      %v4474 = vadd.f32 %v4472, %v4473
      %v4475 = vmul.f32 %v4474, %v1266
      %v4476 = vadd.f32 %v4475, 1e-05
      %v4477 = vrsqrt.pop %v4476
      %v4478 = vmul.f32 %v4406, %v4477
      %v4479 = vmul.f32 %v4407, %v4477
      %v4480 = vmul.f32 %v4408, %v4477
      %v4481 = vmul.f32 %v4409, %v4477
      %v4482 = vmul.f32 %v4410, %v4477
      %v4483 = vmul.f32 %v4411, %v4477
      %v4484 = vmul.f32 %v4412, %v4477
      %v4485 = vmul.f32 %v4413, %v4477
      %v4486 = vmul.f32 %v4414, %v4477
      %v4487 = vmul.f32 %v4415, %v4477
      %v4488 = vmul.f32 %v4416, %v4477
      %v4489 = vmul.f32 %v4417, %v4477
      %v4490 = vmul.f32 %v4418, %v4477
      %v4491 = vmul.f32 %v4419, %v4477
      %v4492 = vmul.f32 %v4420, %v4477
      %v4493 = vmul.f32 %v4421, %v4477
      %v4494 = vlaneseq
      %v4495 = vshrl.u32 %v4494, 7
      %v4496 = vsub.s32 1, %v4495
      %v4497 = vrot.slane %v4170, %v4496
      %v4498 = vmul.f32 %v4478, %v4497
      %v4499 = vmul.f32 %v4479, %v4497
      %v4500 = vmul.f32 %v4480, %v4497
      %v4501 = vmul.f32 %v4481, %v4497
      %v4502 = vmul.f32 %v4482, %v4497
      %v4503 = vmul.f32 %v4483, %v4497
      %v4504 = vmul.f32 %v4484, %v4497
      %v4505 = vmul.f32 %v4485, %v4497
      %v4506 = vmul.f32 %v4486, %v4497
      %v4507 = vmul.f32 %v4487, %v4497
      %v4508 = vmul.f32 %v4488, %v4497
      %v4509 = vmul.f32 %v4489, %v4497
      %v4510 = vmul.f32 %v4490, %v4497
      %v4511 = vmul.f32 %v4491, %v4497
      %v4512 = vmul.f32 %v4492, %v4497
      %v4513 = vmul.f32 %v4493, %v4497
      %v4514 = vlaneseq
      %v4515 = vshrl.u32 %v4514, 7
      %v4516 = vsub.s32 2, %v4515
      %v4517 = vrot.slane %v4170, %v4516
      %v4518 = vadd.f32 %v4498, %v4517
      %v4519 = vadd.f32 %v4499, %v4517
      %v4520 = vadd.f32 %v4500, %v4517
      %v4521 = vadd.f32 %v4501, %v4517
      %v4522 = vadd.f32 %v4502, %v4517
      %v4523 = vadd.f32 %v4503, %v4517
      %v4524 = vadd.f32 %v4504, %v4517
      %v4525 = vadd.f32 %v4505, %v4517
      %v4526 = vadd.f32 %v4506, %v4517
      %v4527 = vadd.f32 %v4507, %v4517
      %v4528 = vadd.f32 %v4508, %v4517
      %v4529 = vadd.f32 %v4509, %v4517
      %v4530 = vadd.f32 %v4510, %v4517
      %v4531 = vadd.f32 %v4511, %v4517
      %v4532 = vadd.f32 %v4512, %v4517
      %v4533 = vadd.f32 %v4513, %v4517
      %vm4534 = vcmp.ge.f32.partialorder %v4518, 0.0
      %vm4535 = vcmp.ge.f32.partialorder %v4519, 0.0
      %vm4536 = vcmp.ge.f32.partialorder %v4520, 0.0
      %vm4537 = vcmp.ge.f32.partialorder %v4521, 0.0
      %vm4538 = vcmp.ge.f32.partialorder %v4522, 0.0
      %vm4539 = vcmp.ge.f32.partialorder %v4523, 0.0
      %vm4540 = vcmp.ge.f32.partialorder %v4524, 0.0
      %vm4541 = vcmp.ge.f32.partialorder %v4525, 0.0
      %vm4542 = vcmp.ge.f32.partialorder %v4526, 0.0
      %vm4543 = vcmp.ge.f32.partialorder %v4527, 0.0
      %vm4544 = vcmp.ge.f32.partialorder %v4528, 0.0
      %vm4545 = vcmp.ge.f32.partialorder %v4529, 0.0
      %vm4546 = vcmp.ge.f32.partialorder %v4530, 0.0
      %vm4547 = vcmp.ge.f32.partialorder %v4531, 0.0
      %vm4548 = vcmp.ge.f32.partialorder %v4532, 0.0
      %vm4549 = vcmp.ge.f32.partialorder %v4533, 0.0
      %v4550 = vlaneseq
      %v4551 = vshrl.u32 %v4550, 7
      %v4552 = vsub.s32 3, %v4551
      %v4553 = vrot.slane %v4170, %v4552
      %v4554 = vmul.f32 %v4553, %v4518
      %v4555 = vmul.f32 %v4553, %v4519
      %v4556 = vmul.f32 %v4553, %v4520
      %v4557 = vmul.f32 %v4553, %v4521
      %v4558 = vmul.f32 %v4553, %v4522
      %v4559 = vmul.f32 %v4553, %v4523
      %v4560 = vmul.f32 %v4553, %v4524
      %v4561 = vmul.f32 %v4553, %v4525
      %v4562 = vmul.f32 %v4553, %v4526
      %v4563 = vmul.f32 %v4553, %v4527
      %v4564 = vmul.f32 %v4553, %v4528
      %v4565 = vmul.f32 %v4553, %v4529
      %v4566 = vmul.f32 %v4553, %v4530
      %v4567 = vmul.f32 %v4553, %v4531
      %v4568 = vmul.f32 %v4553, %v4532
      %v4569 = vmul.f32 %v4553, %v4533
      %v4570 = vsel %vm4534, %v4518, %v4554
      %v4571 = vsel %vm4535, %v4519, %v4555
      %v4572 = vsel %vm4536, %v4520, %v4556
      %v4573 = vsel %vm4537, %v4521, %v4557
      %v4574 = vsel %vm4538, %v4522, %v4558
      %v4575 = vsel %vm4539, %v4523, %v4559
      %v4576 = vsel %vm4540, %v4524, %v4560
      %v4577 = vsel %vm4541, %v4525, %v4561
      %v4578 = vsel %vm4542, %v4526, %v4562
      %v4579 = vsel %vm4543, %v4527, %v4563
      %v4580 = vsel %vm4544, %v4528, %v4564
      %v4581 = vsel %vm4545, %v4529, %v4565
      %v4582 = vsel %vm4546, %v4530, %v4566
      %v4583 = vsel %vm4547, %v4531, %v4567
      %v4584 = vsel %vm4548, %v4532, %v4568
      %v4585 = vsel %vm4549, %v4533, %v4569
      %vm4602 = vcmask 1040384
      %v4603 = vrot.slane %v4570, 7
      %v4604 = vrot.slane %v4571, 7
      %v4605 = vsel %vm4602, %v4603, %v4604
      %v4606 = vrot.slane %v4572, 7
      %v4607 = vrot.slane %v4573, 7
      %v4608 = vsel %vm4602, %v4606, %v4607
      %v4609 = vrot.slane %v4574, 7
      %v4610 = vrot.slane %v4575, 7
      %v4611 = vsel %vm4602, %v4609, %v4610
      %v4612 = vrot.slane %v4576, 7
      %v4613 = vrot.slane %v4577, 7
      %v4614 = vsel %vm4602, %v4612, %v4613
      %v4615 = vrot.slane %v4578, 7
      %v4616 = vrot.slane %v4579, 7
      %v4617 = vsel %vm4602, %v4615, %v4616
      %v4618 = vrot.slane %v4580, 7
      %v4619 = vrot.slane %v4581, 7
      %v4620 = vsel %vm4602, %v4618, %v4619
      %v4621 = vrot.slane %v4582, 7
      %v4622 = vrot.slane %v4583, 7
      %v4623 = vsel %vm4602, %v4621, %v4622
      %v4624 = vrot.slane %v4584, 7
      %v4625 = vrot.slane %v4585, 7
      %v4626 = vsel %vm4602, %v4624, %v4625
      %v4651 = vsel %vm4602, 0.0, %v4603
      %v4652 = vsel %vm4602, 0.0, %v4606
      %v4653 = vsel %vm4602, 0.0, %v4609
      %v4654 = vsel %vm4602, 0.0, %v4612
      %v4655 = vsel %vm4602, 0.0, %v4615
      %v4656 = vsel %vm4602, 0.0, %v4618
      %v4657 = vsel %vm4602, 0.0, %v4621
      %v4658 = vsel %vm4602, 0.0, %v4624
      %v4659 = vsel %vm4602, %v4604, 0.0
      %v4660 = vsel %vm4602, %v4607, 0.0
      %v4661 = vsel %vm4602, %v4610, 0.0
      %v4662 = vsel %vm4602, %v4613, 0.0
      %v4663 = vsel %vm4602, %v4616, 0.0
      %v4664 = vsel %vm4602, %v4619, 0.0
      %v4665 = vsel %vm4602, %v4622, 0.0
      %v4666 = vsel %vm4602, %v4625, 0.0
      %v4683 = vrot.slane %v4651, 1
      %v4684 = vrot.slane %v4605, 1
      %v4685 = vsel %vm530, %v4683, %v4684
      %v4686 = vrot.slane %v4659, 1
      %v4687 = vsel %vm530, %v4684, %v4686
      %v4688 = vrot.slane %v4652, 1
      %v4689 = vrot.slane %v4608, 1
      %v4690 = vsel %vm530, %v4688, %v4689
      %v4691 = vrot.slane %v4660, 1
      %v4692 = vsel %vm530, %v4689, %v4691
      %v4693 = vrot.slane %v4653, 1
      %v4694 = vrot.slane %v4611, 1
      %v4695 = vsel %vm530, %v4693, %v4694
      %v4696 = vrot.slane %v4661, 1
      %v4697 = vsel %vm530, %v4694, %v4696
      %v4698 = vrot.slane %v4654, 1
      %v4699 = vrot.slane %v4614, 1
      %v4700 = vsel %vm530, %v4698, %v4699
      %v4701 = vrot.slane %v4662, 1
      %v4702 = vsel %vm530, %v4699, %v4701
      %v4703 = vrot.slane %v4655, 1
      %v4704 = vrot.slane %v4617, 1
      %v4705 = vsel %vm530, %v4703, %v4704
      %v4706 = vrot.slane %v4663, 1
      %v4707 = vsel %vm530, %v4704, %v4706
      %v4708 = vrot.slane %v4656, 1
      %v4709 = vrot.slane %v4620, 1
      %v4710 = vsel %vm530, %v4708, %v4709
      %v4711 = vrot.slane %v4664, 1
      %v4712 = vsel %vm530, %v4709, %v4711
      %v4713 = vrot.slane %v4657, 1
      %v4714 = vrot.slane %v4623, 1
      %v4715 = vsel %vm530, %v4713, %v4714
      %v4716 = vrot.slane %v4665, 1
      %v4717 = vsel %vm530, %v4714, %v4716
      %v4718 = vrot.slane %v4658, 1
      %v4719 = vrot.slane %v4626, 1
      %v4720 = vsel %vm530, %v4718, %v4719
      %v4721 = vrot.slane %v4666, 1
      %v4722 = vsel %vm530, %v4719, %v4721
      %4723 = vrot.lane.b32.xlu0 %v4685, 8
      %v4724 = vpop.permute.xlu0 %4723
      %4725 = vrot.lane.b32.xlu0 %v4687, 8
      %v4726 = vpop.permute.xlu0 %4725
      %4727 = vrot.lane.b32.xlu0 %v4690, 8
      %v4728 = vpop.permute.xlu0 %4727
      %4729 = vrot.lane.b32.xlu0 %v4692, 8
      %v4730 = vpop.permute.xlu0 %4729
      %4731 = vrot.lane.b32.xlu0 %v4695, 8
      %v4732 = vpop.permute.xlu0 %4731
      %4733 = vrot.lane.b32.xlu0 %v4697, 8
      %v4734 = vpop.permute.xlu0 %4733
      %4735 = vrot.lane.b32.xlu0 %v4700, 8
      %v4736 = vpop.permute.xlu0 %4735
      %4737 = vrot.lane.b32.xlu0 %v4702, 8
      %v4738 = vpop.permute.xlu0 %4737
      %4739 = vrot.lane.b32.xlu0 %v4705, 8
      %v4740 = vpop.permute.xlu0 %4739
      %4741 = vrot.lane.b32.xlu0 %v4707, 8
      %v4742 = vpop.permute.xlu0 %4741
      %4743 = vrot.lane.b32.xlu0 %v4710, 8
      %v4744 = vpop.permute.xlu0 %4743
      %4745 = vrot.lane.b32.xlu0 %v4712, 8
      %v4746 = vpop.permute.xlu0 %4745
      %4747 = vrot.lane.b32.xlu0 %v4715, 8
      %v4748 = vpop.permute.xlu0 %4747
      %4749 = vrot.lane.b32.xlu0 %v4717, 8
      %v4750 = vpop.permute.xlu0 %4749
      %4751 = vrot.lane.b32.xlu0 %v4720, 8
      %v4752 = vpop.permute.xlu0 %4751
      %4753 = vrot.lane.b32.xlu0 %v4722, 8
      %v4754 = vpop.permute.xlu0 %4753
      %v4771 = vrot.slane %v4651, 2
      %v4772 = vrot.slane %v4605, 2
      %v4773 = vsel %vm619, %v4771, %v4772
      %v4774 = vrot.slane %v4659, 2
      %v4775 = vsel %vm619, %v4772, %v4774
      %v4776 = vrot.slane %v4652, 2
      %v4777 = vrot.slane %v4608, 2
      %v4778 = vsel %vm619, %v4776, %v4777
      %v4779 = vrot.slane %v4660, 2
      %v4780 = vsel %vm619, %v4777, %v4779
      %v4781 = vrot.slane %v4653, 2
      %v4782 = vrot.slane %v4611, 2
      %v4783 = vsel %vm619, %v4781, %v4782
      %v4784 = vrot.slane %v4661, 2
      %v4785 = vsel %vm619, %v4782, %v4784
      %v4786 = vrot.slane %v4654, 2
      %v4787 = vrot.slane %v4614, 2
      %v4788 = vsel %vm619, %v4786, %v4787
      %v4789 = vrot.slane %v4662, 2
      %v4790 = vsel %vm619, %v4787, %v4789
      %v4791 = vrot.slane %v4655, 2
      %v4792 = vrot.slane %v4617, 2
      %v4793 = vsel %vm619, %v4791, %v4792
      %v4794 = vrot.slane %v4663, 2
      %v4795 = vsel %vm619, %v4792, %v4794
      %v4796 = vrot.slane %v4656, 2
      %v4797 = vrot.slane %v4620, 2
      %v4798 = vsel %vm619, %v4796, %v4797
      %v4799 = vrot.slane %v4664, 2
      %v4800 = vsel %vm619, %v4797, %v4799
      %v4801 = vrot.slane %v4657, 2
      %v4802 = vrot.slane %v4623, 2
      %v4803 = vsel %vm619, %v4801, %v4802
      %v4804 = vrot.slane %v4665, 2
      %v4805 = vsel %vm619, %v4802, %v4804
      %v4806 = vrot.slane %v4658, 2
      %v4807 = vrot.slane %v4626, 2
      %v4808 = vsel %vm619, %v4806, %v4807
      %v4809 = vrot.slane %v4666, 2
      %v4810 = vsel %vm619, %v4807, %v4809
      %4811 = vrot.lane.b32.xlu0 %v4773, 16
      %v4812 = vpop.permute.xlu0 %4811
      %4813 = vrot.lane.b32.xlu0 %v4775, 16
      %v4814 = vpop.permute.xlu0 %4813
      %4815 = vrot.lane.b32.xlu0 %v4778, 16
      %v4816 = vpop.permute.xlu0 %4815
      %4817 = vrot.lane.b32.xlu0 %v4780, 16
      %v4818 = vpop.permute.xlu0 %4817
      %4819 = vrot.lane.b32.xlu0 %v4783, 16
      %v4820 = vpop.permute.xlu0 %4819
      %4821 = vrot.lane.b32.xlu0 %v4785, 16
      %v4822 = vpop.permute.xlu0 %4821
      %4823 = vrot.lane.b32.xlu0 %v4788, 16
      %v4824 = vpop.permute.xlu0 %4823
      %4825 = vrot.lane.b32.xlu0 %v4790, 16
      %v4826 = vpop.permute.xlu0 %4825
      %4827 = vrot.lane.b32.xlu0 %v4793, 16
      %v4828 = vpop.permute.xlu0 %4827
      %4829 = vrot.lane.b32.xlu0 %v4795, 16
      %v4830 = vpop.permute.xlu0 %4829
      %4831 = vrot.lane.b32.xlu0 %v4798, 16
      %v4832 = vpop.permute.xlu0 %4831
      %4833 = vrot.lane.b32.xlu0 %v4800, 16
      %v4834 = vpop.permute.xlu0 %4833
      %4835 = vrot.lane.b32.xlu0 %v4803, 16
      %v4836 = vpop.permute.xlu0 %4835
      %4837 = vrot.lane.b32.xlu0 %v4805, 16
      %v4838 = vpop.permute.xlu0 %4837
      %4839 = vrot.lane.b32.xlu0 %v4808, 16
      %v4840 = vpop.permute.xlu0 %4839
      %4841 = vrot.lane.b32.xlu0 %v4810, 16
      %v4842 = vpop.permute.xlu0 %4841
      %v4859 = vsel %vm1228, %v4651, %v4724
      %v4860 = vsel %vm1228, %v4605, %v4726
      %v4861 = vsel %vm1228, %v4652, %v4728
      %v4862 = vsel %vm1228, %v4608, %v4730
      %v4863 = vsel %vm1228, %v4653, %v4732
      %v4864 = vsel %vm1228, %v4611, %v4734
      %v4865 = vsel %vm1228, %v4654, %v4736
      %v4866 = vsel %vm1228, %v4614, %v4738
      %v4867 = vsel %vm1228, %v4655, %v4740
      %v4868 = vsel %vm1228, %v4617, %v4742
      %v4869 = vsel %vm1228, %v4656, %v4744
      %v4870 = vsel %vm1228, %v4620, %v4746
      %v4871 = vsel %vm1228, %v4657, %v4748
      %v4872 = vsel %vm1228, %v4623, %v4750
      %v4873 = vsel %vm1228, %v4658, %v4752
      %v4874 = vsel %vm1228, %v4626, %v4754
      %vm4875 = vcmask 130048
      %v4876 = vsel %vm4875, %v4859, %v4812
      %v4877 = vsel %vm4875, %v4860, %v4814
      %v4878 = vsel %vm4875, %v4861, %v4816
      %v4879 = vsel %vm4875, %v4862, %v4818
      %v4880 = vsel %vm4875, %v4863, %v4820
      %v4881 = vsel %vm4875, %v4864, %v4822
      %v4882 = vsel %vm4875, %v4865, %v4824
      %v4883 = vsel %vm4875, %v4866, %v4826
      %v4884 = vsel %vm4875, %v4867, %v4828
      %v4885 = vsel %vm4875, %v4868, %v4830
      %v4886 = vsel %vm4875, %v4869, %v4832
      %v4887 = vsel %vm4875, %v4870, %v4834
      %v4888 = vsel %vm4875, %v4871, %v4836
      %v4889 = vsel %vm4875, %v4872, %v4838
      %v4890 = vsel %vm4875, %v4873, %v4840
      %v4891 = vsel %vm4875, %v4874, %v4842
      %v4892 = vpack.c.bf16 %v4877, %v4876
      %v4893 = vpack.c.bf16 %v4879, %v4878
      %v4894 = vpack.c.bf16 %v4881, %v4880
      %v4895 = vpack.c.bf16 %v4883, %v4882
      %v4896 = vpack.c.bf16 %v4885, %v4884
      %v4897 = vpack.c.bf16 %v4887, %v4886
      %v4898 = vpack.c.bf16 %v4889, %v4888
      %v4899 = vpack.c.bf16 %v4891, %v4890
      %v4900 = vld [vmem:[%s3] sm:$0xf]
      %v4901 = vld [vmem:[%s3 + $0x4] sm:$0xf]
      %v4902 = vld [vmem:[%s3 + $0x8] sm:$0xf]
      %v4903 = vld [vmem:[%s4] sm:$0x1]
      %v4905 = vlaneseq
      %v4906 = vshrl.u32 %v4905, 7
      %v4907 = vsub.s32 0, %v4906
      %v4908 = vrot.slane %v4903, %v4907
      %v4913 = vunpack.c.l.b16 %v4900
      %v4914 = vunpack.c.l.b16 %v4901
      %v4915 = vunpack.c.l.b16 %v4902
      %v4916 = vpack.c.b16 %v4914, %v4913
      %v4917 = vpack.c.b16 %v4915, %v4915
      %vm4919 = vcmask 195584
      %v4921 = vsel %vm4919, %v4892, 0
      %v4924 = vsel %vm4919, %v4893, 0
      %v4927 = vsel %vm4919, %v4894, 0
      %v4930 = vsel %vm4919, %v4895, 0
      %v4933 = vsel %vm4919, %v4896, 0
      %v4936 = vsel %vm4919, %v4897, 0
      %v4939 = vsel %vm4919, %v4898, 0
      %v4942 = vsel %vm4919, %v4899, 0
      %vm4944 = vcmask 1043456
      %v4946 = vsel %vm4944, %v4917, 0
      %4948 = vmatprep.subr.bf16.mxu0 0
      %4949 = vmatpush1.bf16.msra.mxu0 0
      %4950 = vmatprep.subr.bf16.mxu0 0
      %4951 = vmatpush1.bf16.msra.mxu0 0
      %4952 = vmatprep.subr.bf16.mxu0 0
      %4953 = vmatpush1.bf16.msra.mxu0 0
      %4954 = vmatprep.subr.bf16.mxu0 0
      %4955 = vmatpush1.bf16.msra.mxu0 0
      %4956 = vmatprep.subr.bf16.mxu0 0
      %4957 = vmatpush1.bf16.msra.mxu0 0
      %4958 = vmatprep.subr.bf16.mxu0 0
      %4959 = vmatpush1.bf16.msra.mxu0 0
      %4960 = vmatprep.subr.bf16.mxu0 0
      %4961 = vmatpush1.bf16.msra.mxu0 %v4946
      %4962 = vmatprep.subr.bf16.mxu0 0
      %4963 = vmatpush1.bf16.msra.mxu0 %v4916
      %4964 = vmatprep.subr.bf16.mxu0 0
      %4965 = vmatpush2.bf16.msra.mxu0 0
      %4966 = vmatprep.subr.bf16.mxu0 0
      %4967 = vmatpush2.bf16.msra.mxu0 0
      %4968 = vmatprep.subr.bf16.mxu0 0
      %4969 = vmatpush2.bf16.msra.mxu0 0
      %4970 = vmatprep.subr.bf16.mxu0 0
      %4971 = vmatpush2.bf16.msra.mxu0 0
      %4972 = vmatprep.subr.bf16.mxu0 0
      %4973 = vmatpush2.bf16.msra.mxu0 0
      %4974 = vmatprep.subr.bf16.mxu0 0
      %4975 = vmatpush2.bf16.msra.mxu0 0
      %4976 = vmatprep.subr.bf16.mxu0 0
      %4977 = vmatpush2.bf16.msra.mxu0 0
      %4978 = vmatprep.subr.bf16.mxu0 0
      %4979 = vmatpush2.bf16.msra.mxu0 0
      %4980 = vmatprep.mubr.bf16.mxu0 0
      %4981 = vmatmul.mubr.bf16.gmra.mxu0 %v4921
      %v4982 = vpop.f32.mrf.mxu0
      %v4983 = vadd.f32 %v4908, %v4982
      %v4984 = vpop.f32.mrf.mxu0
      %v4985 = vpop.f32.mrf.mxu0
      %v4986 = vadd.f32 %v4908, %v4985
      %v4987 = vpop.f32.mrf.mxu0
      %4988 = vmatprep.mubr.bf16.mxu0 0
      %4989 = vmatmul.mubr.bf16.gmra.mxu0 %v4924
      %v4990 = vpop.f32.mrf.mxu0
      %v4991 = vadd.f32 %v4908, %v4990
      %v4992 = vpop.f32.mrf.mxu0
      %v4993 = vpop.f32.mrf.mxu0
      %v4994 = vadd.f32 %v4908, %v4993
      %v4995 = vpop.f32.mrf.mxu0
      %4996 = vmatprep.mubr.bf16.mxu0 0
      %4997 = vmatmul.mubr.bf16.gmra.mxu0 %v4927
      %v4998 = vpop.f32.mrf.mxu0
      %v4999 = vadd.f32 %v4908, %v4998
      %v5000 = vpop.f32.mrf.mxu0
      %v5001 = vpop.f32.mrf.mxu0
      %v5002 = vadd.f32 %v4908, %v5001
      %v5003 = vpop.f32.mrf.mxu0
      %5004 = vmatprep.mubr.bf16.mxu0 0
      %5005 = vmatmul.mubr.bf16.gmra.mxu0 %v4930
      %v5006 = vpop.f32.mrf.mxu0
      %v5007 = vadd.f32 %v4908, %v5006
      %v5008 = vpop.f32.mrf.mxu0
      %v5009 = vpop.f32.mrf.mxu0
      %v5010 = vadd.f32 %v4908, %v5009
      %v5011 = vpop.f32.mrf.mxu0
      %5012 = vmatprep.mubr.bf16.mxu0 0
      %5013 = vmatmul.mubr.bf16.gmra.mxu0 %v4933
      %v5014 = vpop.f32.mrf.mxu0
      %v5015 = vadd.f32 %v4908, %v5014
      %v5016 = vpop.f32.mrf.mxu0
      %v5017 = vpop.f32.mrf.mxu0
      %v5018 = vadd.f32 %v4908, %v5017
      %v5019 = vpop.f32.mrf.mxu0
      %5020 = vmatprep.mubr.bf16.mxu0 0
      %5021 = vmatmul.mubr.bf16.gmra.mxu0 %v4936
      %v5022 = vpop.f32.mrf.mxu0
      %v5023 = vadd.f32 %v4908, %v5022
      %v5024 = vpop.f32.mrf.mxu0
      %v5025 = vpop.f32.mrf.mxu0
      %v5026 = vadd.f32 %v4908, %v5025
      %v5027 = vpop.f32.mrf.mxu0
      %5028 = vmatprep.mubr.bf16.mxu0 0
      %5029 = vmatmul.mubr.bf16.gmra.mxu0 %v4939
      %v5030 = vpop.f32.mrf.mxu0
      %v5031 = vadd.f32 %v4908, %v5030
      %v5032 = vpop.f32.mrf.mxu0
      %v5033 = vpop.f32.mrf.mxu0
      %v5034 = vadd.f32 %v4908, %v5033
      %v5035 = vpop.f32.mrf.mxu0
      %5036 = vmatprep.mubr.bf16.mxu0 0
      %5037 = vmatmul.mubr.bf16.gmra.mxu0 %v4942
      %v5038 = vpop.f32.mrf.mxu0
      %v5039 = vadd.f32 %v4908, %v5038
      %v5040 = vpop.f32.mrf.mxu0
      %v5041 = vpop.f32.mrf.mxu0
      %v5042 = vadd.f32 %v4908, %v5041
      %v5043 = vpop.f32.mrf.mxu0
      %5044 = vdwg.mxu0
      %v5045 = vsel %vm4875, %v4983, 0.0
      %v5046 = vsel %vm4875, %v4986, 0.0
      %v5047 = vadd.f32 %v5045, %v5046
      %v5048 = vsel %vm4875, %v4991, 0.0
      %v5049 = vadd.f32 %v5047, %v5048
      %v5050 = vsel %vm4875, %v4994, 0.0
      %v5051 = vadd.f32 %v5049, %v5050
      %v5052 = vsel %vm4875, %v4999, 0.0
      %v5053 = vadd.f32 %v5051, %v5052
      %v5054 = vsel %vm4875, %v5002, 0.0
      %v5055 = vadd.f32 %v5053, %v5054
      %v5056 = vsel %vm4875, %v5007, 0.0
      %v5057 = vadd.f32 %v5055, %v5056
      %v5058 = vsel %vm4875, %v5010, 0.0
      %v5059 = vadd.f32 %v5057, %v5058
      %v5060 = vsel %vm4875, %v5015, 0.0
      %v5061 = vadd.f32 %v5059, %v5060
      %v5062 = vsel %vm4875, %v5018, 0.0
      %v5063 = vadd.f32 %v5061, %v5062
      %v5064 = vsel %vm4875, %v5023, 0.0
      %v5065 = vadd.f32 %v5063, %v5064
      %v5066 = vsel %vm4875, %v5026, 0.0
      %v5067 = vadd.f32 %v5065, %v5066
      %v5068 = vsel %vm4875, %v5031, 0.0
      %v5069 = vadd.f32 %v5067, %v5068
      %v5070 = vsel %vm4875, %v5034, 0.0
      %v5071 = vadd.f32 %v5069, %v5070
      %v5072 = vsel %vm4875, %v5039, 0.0
      %v5073 = vadd.f32 %v5071, %v5072
      %v5074 = vsel %vm4875, %v5042, 0.0
      %v5075 = vadd.f32 %v5073, %v5074
      %v5076 = vrot.slane %v5075, 4
      %v5077 = vadd.f32 %v5075, %v5076
      %v5078 = vrot.slane %v5077, 2
      %v5079 = vadd.f32 %v5077, %v5078
      %v5080 = vrot.slane %v5079, 1
      %v5081 = vadd.f32 %v5079, %v5080
      %v5082 = vmul.f32 %v5081, %v1266
      %5084 = vrot.lane.b32.xlu0 %v5082, 120
      %v5085 = vpop.permute.xlu0 %5084
      %v5087 = vadd.f32 %v5082, %v5085
      %v5088 = vmul.f32 %v5087, 0.5
      %5090 = vrot.lane.b32.xlu0 %v5088, 8
      %v5091 = vpop.permute.xlu0 %5090
      %v5093 = vsel %vm1228, %v5088, %v5091
      %v5094 = vlaneseq
      %v5095 = vshrl.u32 %v5094, 7
      %v5096 = vsub.s32 0, %v5095
      %v5097 = vrot.slane %v5093, %v5096
      %v5098 = vsub.f32 %v4983, %v5097
      %v5099 = vsub.f32 %v4986, %v5097
      %v5100 = vsub.f32 %v4991, %v5097
      %v5101 = vsub.f32 %v4994, %v5097
      %v5102 = vsub.f32 %v4999, %v5097
      %v5103 = vsub.f32 %v5002, %v5097
      %v5104 = vsub.f32 %v5007, %v5097
      %v5105 = vsub.f32 %v5010, %v5097
      %v5106 = vsub.f32 %v5015, %v5097
      %v5107 = vsub.f32 %v5018, %v5097
      %v5108 = vsub.f32 %v5023, %v5097
      %v5109 = vsub.f32 %v5026, %v5097
      %v5110 = vsub.f32 %v5031, %v5097
      %v5111 = vsub.f32 %v5034, %v5097
      %v5112 = vsub.f32 %v5039, %v5097
      %v5113 = vsub.f32 %v5042, %v5097
      %v5114 = vmul.f32 %v5098, %v5098
      %v5115 = vmul.f32 %v5099, %v5099
      %v5116 = vmul.f32 %v5100, %v5100
      %v5117 = vmul.f32 %v5101, %v5101
      %v5118 = vmul.f32 %v5102, %v5102
      %v5119 = vmul.f32 %v5103, %v5103
      %v5120 = vmul.f32 %v5104, %v5104
      %v5121 = vmul.f32 %v5105, %v5105
      %v5122 = vmul.f32 %v5106, %v5106
      %v5123 = vmul.f32 %v5107, %v5107
      %v5124 = vmul.f32 %v5108, %v5108
      %v5125 = vmul.f32 %v5109, %v5109
      %v5126 = vmul.f32 %v5110, %v5110
      %v5127 = vmul.f32 %v5111, %v5111
      %v5128 = vmul.f32 %v5112, %v5112
      %v5129 = vmul.f32 %v5113, %v5113
      %v5130 = vsel %vm4875, %v5114, 0.0
      %v5131 = vsel %vm4875, %v5115, 0.0
      %v5132 = vadd.f32 %v5130, %v5131
      %v5133 = vsel %vm4875, %v5116, 0.0
      %v5134 = vadd.f32 %v5132, %v5133
      %v5135 = vsel %vm4875, %v5117, 0.0
      %v5136 = vadd.f32 %v5134, %v5135
      %v5137 = vsel %vm4875, %v5118, 0.0
      %v5138 = vadd.f32 %v5136, %v5137
      %v5139 = vsel %vm4875, %v5119, 0.0
      %v5140 = vadd.f32 %v5138, %v5139
      %v5141 = vsel %vm4875, %v5120, 0.0
      %v5142 = vadd.f32 %v5140, %v5141
      %v5143 = vsel %vm4875, %v5121, 0.0
      %v5144 = vadd.f32 %v5142, %v5143
      %v5145 = vsel %vm4875, %v5122, 0.0
      %v5146 = vadd.f32 %v5144, %v5145
      %v5147 = vsel %vm4875, %v5123, 0.0
      %v5148 = vadd.f32 %v5146, %v5147
      %v5149 = vsel %vm4875, %v5124, 0.0
      %v5150 = vadd.f32 %v5148, %v5149
      %v5151 = vsel %vm4875, %v5125, 0.0
      %v5152 = vadd.f32 %v5150, %v5151
      %v5153 = vsel %vm4875, %v5126, 0.0
      %v5154 = vadd.f32 %v5152, %v5153
      %v5155 = vsel %vm4875, %v5127, 0.0
      %v5156 = vadd.f32 %v5154, %v5155
      %v5157 = vsel %vm4875, %v5128, 0.0
      %v5158 = vadd.f32 %v5156, %v5157
      %v5159 = vsel %vm4875, %v5129, 0.0
      %v5160 = vadd.f32 %v5158, %v5159
      %v5161 = vrot.slane %v5160, 4
      %v5162 = vadd.f32 %v5160, %v5161
      %v5163 = vrot.slane %v5162, 2
      %v5164 = vadd.f32 %v5162, %v5163
      %v5165 = vrot.slane %v5164, 1
      %v5166 = vadd.f32 %v5164, %v5165
      %v5167 = vmul.f32 %v5166, %v1266
      %5169 = vrot.lane.b32.xlu0 %v5167, 120
      %v5170 = vpop.permute.xlu0 %5169
      %v5172 = vadd.f32 %v5167, %v5170
      %v5173 = vmul.f32 %v5172, 0.5
      %5175 = vrot.lane.b32.xlu0 %v5173, 8
      %v5176 = vpop.permute.xlu0 %5175
      %v5178 = vsel %vm1228, %v5173, %v5176
      %v5179 = vadd.f32 %v5178, 1e-05
      %v5180 = vrsqrt.pop %v5179
      %v5181 = vlaneseq
      %v5182 = vshrl.u32 %v5181, 7
      %v5183 = vsub.s32 0, %v5182
      %v5184 = vrot.slane %v5180, %v5183
      %v5185 = vmul.f32 %v5098, %v5184
      %v5186 = vmul.f32 %v5099, %v5184
      %v5187 = vmul.f32 %v5100, %v5184
      %v5188 = vmul.f32 %v5101, %v5184
      %v5189 = vmul.f32 %v5102, %v5184
      %v5190 = vmul.f32 %v5103, %v5184
      %v5191 = vmul.f32 %v5104, %v5184
      %v5192 = vmul.f32 %v5105, %v5184
      %v5193 = vmul.f32 %v5106, %v5184
      %v5194 = vmul.f32 %v5107, %v5184
      %v5195 = vmul.f32 %v5108, %v5184
      %v5196 = vmul.f32 %v5109, %v5184
      %v5197 = vmul.f32 %v5110, %v5184
      %v5198 = vmul.f32 %v5111, %v5184
      %v5199 = vmul.f32 %v5112, %v5184
      %v5200 = vmul.f32 %v5113, %v5184
      %v5201 = vld [vmem:[%s5] sm:$0x1]
      %v5202 = vlaneseq
      %v5203 = vshrl.u32 %v5202, 7
      %v5204 = vsub.s32 0, %v5203
      %v5205 = vrot.slane %v5201, %v5204
      %v5206 = vmul.f32 %v5185, %v5205
      %v5207 = vmul.f32 %v5186, %v5205
      %v5208 = vmul.f32 %v5187, %v5205
      %v5209 = vmul.f32 %v5188, %v5205
      %v5210 = vmul.f32 %v5189, %v5205
      %v5211 = vmul.f32 %v5190, %v5205
      %v5212 = vmul.f32 %v5191, %v5205
      %v5213 = vmul.f32 %v5192, %v5205
      %v5214 = vmul.f32 %v5193, %v5205
      %v5215 = vmul.f32 %v5194, %v5205
      %v5216 = vmul.f32 %v5195, %v5205
      %v5217 = vmul.f32 %v5196, %v5205
      %v5218 = vmul.f32 %v5197, %v5205
      %v5219 = vmul.f32 %v5198, %v5205
      %v5220 = vmul.f32 %v5199, %v5205
      %v5221 = vmul.f32 %v5200, %v5205
      %v5222 = vld [vmem:[%s5 + $0x1] sm:$0x1]
      %v5223 = vlaneseq
      %v5224 = vshrl.u32 %v5223, 7
      %v5225 = vsub.s32 0, %v5224
      %v5226 = vrot.slane %v5222, %v5225
      %v5227 = vadd.f32 %v5206, %v5226
      %v5228 = vadd.f32 %v5207, %v5226
      %v5229 = vadd.f32 %v5208, %v5226
      %v5230 = vadd.f32 %v5209, %v5226
      %v5231 = vadd.f32 %v5210, %v5226
      %v5232 = vadd.f32 %v5211, %v5226
      %v5233 = vadd.f32 %v5212, %v5226
      %v5234 = vadd.f32 %v5213, %v5226
      %v5235 = vadd.f32 %v5214, %v5226
      %v5236 = vadd.f32 %v5215, %v5226
      %v5237 = vadd.f32 %v5216, %v5226
      %v5238 = vadd.f32 %v5217, %v5226
      %v5239 = vadd.f32 %v5218, %v5226
      %v5240 = vadd.f32 %v5219, %v5226
      %v5241 = vadd.f32 %v5220, %v5226
      %v5242 = vadd.f32 %v5221, %v5226
      %vm5243 = vcmp.ge.f32.partialorder %v5227, 0.0
      %vm5244 = vcmp.ge.f32.partialorder %v5228, 0.0
      %vm5245 = vcmp.ge.f32.partialorder %v5229, 0.0
      %vm5246 = vcmp.ge.f32.partialorder %v5230, 0.0
      %vm5247 = vcmp.ge.f32.partialorder %v5231, 0.0
      %vm5248 = vcmp.ge.f32.partialorder %v5232, 0.0
      %vm5249 = vcmp.ge.f32.partialorder %v5233, 0.0
      %vm5250 = vcmp.ge.f32.partialorder %v5234, 0.0
      %vm5251 = vcmp.ge.f32.partialorder %v5235, 0.0
      %vm5252 = vcmp.ge.f32.partialorder %v5236, 0.0
      %vm5253 = vcmp.ge.f32.partialorder %v5237, 0.0
      %vm5254 = vcmp.ge.f32.partialorder %v5238, 0.0
      %vm5255 = vcmp.ge.f32.partialorder %v5239, 0.0
      %vm5256 = vcmp.ge.f32.partialorder %v5240, 0.0
      %vm5257 = vcmp.ge.f32.partialorder %v5241, 0.0
      %vm5258 = vcmp.ge.f32.partialorder %v5242, 0.0
      %v5259 = vld [vmem:[%s5 + $0x2] sm:$0x1]
      %v5260 = vlaneseq
      %v5261 = vshrl.u32 %v5260, 7
      %v5262 = vsub.s32 0, %v5261
      %v5263 = vrot.slane %v5259, %v5262
      %v5264 = vmul.f32 %v5263, %v5227
      %v5265 = vmul.f32 %v5263, %v5228
      %v5266 = vmul.f32 %v5263, %v5229
      %v5267 = vmul.f32 %v5263, %v5230
      %v5268 = vmul.f32 %v5263, %v5231
      %v5269 = vmul.f32 %v5263, %v5232
      %v5270 = vmul.f32 %v5263, %v5233
      %v5271 = vmul.f32 %v5263, %v5234
      %v5272 = vmul.f32 %v5263, %v5235
      %v5273 = vmul.f32 %v5263, %v5236
      %v5274 = vmul.f32 %v5263, %v5237
      %v5275 = vmul.f32 %v5263, %v5238
      %v5276 = vmul.f32 %v5263, %v5239
      %v5277 = vmul.f32 %v5263, %v5240
      %v5278 = vmul.f32 %v5263, %v5241
      %v5279 = vmul.f32 %v5263, %v5242
      %v5280 = vsel %vm5243, %v5227, %v5264
      %v5281 = vsel %vm5244, %v5228, %v5265
      %v5282 = vsel %vm5245, %v5229, %v5266
      %v5283 = vsel %vm5246, %v5230, %v5267
      %v5284 = vsel %vm5247, %v5231, %v5268
      %v5285 = vsel %vm5248, %v5232, %v5269
      %v5286 = vsel %vm5249, %v5233, %v5270
      %v5287 = vsel %vm5250, %v5234, %v5271
      %v5288 = vsel %vm5251, %v5235, %v5272
      %v5289 = vsel %vm5252, %v5236, %v5273
      %v5290 = vsel %vm5253, %v5237, %v5274
      %v5291 = vsel %vm5254, %v5238, %v5275
      %v5292 = vsel %vm5255, %v5239, %v5276
      %v5293 = vsel %vm5256, %v5240, %v5277
      %v5294 = vsel %vm5257, %v5241, %v5278
      %v5295 = vsel %vm5258, %v5242, %v5279
      %v5296 = vpack.c.bf16 %v5281, %v5280
      %v5297 = vpack.c.bf16 %v5283, %v5282
      %v5298 = vpack.c.bf16 %v5285, %v5284
      %v5299 = vpack.c.bf16 %v5287, %v5286
      %v5300 = vpack.c.bf16 %v5289, %v5288
      %v5301 = vpack.c.bf16 %v5291, %v5290
      %v5302 = vpack.c.bf16 %v5293, %v5292
      %v5303 = vpack.c.bf16 %v5295, %v5294
      %v5304 = vld [vmem:[%s6] sm:$0xf]
      %v5305 = vld [vmem:[%s6 + $0x4] sm:$0xf]
      %v5308 = vunpack.c.l.b16 %v5304
      %v5309 = vunpack.c.l.b16 %v5305
      %v5310 = vpack.c.b16 %v5309, %v5308
      %v5313 = vsel %vm4875, %v5296, 0
      %v5316 = vsel %vm4875, %v5297, 0
      %v5319 = vsel %vm4875, %v5298, 0
      %v5322 = vsel %vm4875, %v5299, 0
      %v5325 = vsel %vm4875, %v5300, 0
      %v5328 = vsel %vm4875, %v5301, 0
      %v5331 = vsel %vm4875, %v5302, 0
      %v5334 = vsel %vm4875, %v5303, 0
      %5336 = vmatprep.subr.bf16.mxu0 0
      %5337 = vmatpush1.bf16.msra.mxu0 0
      %5338 = vmatprep.subr.bf16.mxu0 0
      %5339 = vmatpush1.bf16.msra.mxu0 0
      %5340 = vmatprep.subr.bf16.mxu0 0
      %5341 = vmatpush1.bf16.msra.mxu0 0
      %5342 = vmatprep.subr.bf16.mxu0 0
      %5343 = vmatpush1.bf16.msra.mxu0 0
      %5344 = vmatprep.subr.bf16.mxu0 0
      %5345 = vmatpush1.bf16.msra.mxu0 0
      %5346 = vmatprep.subr.bf16.mxu0 0
      %5347 = vmatpush1.bf16.msra.mxu0 0
      %5348 = vmatprep.subr.bf16.mxu0 0
      %5349 = vmatpush1.bf16.msra.mxu0 0
      %5350 = vmatprep.subr.bf16.mxu0 0
      %5351 = vmatpush1.bf16.msra.mxu0 %v5310
      %5352 = vmatprep.subr.bf16.mxu0 0
      %5353 = vmatpush2.bf16.msra.mxu0 0
      %5354 = vmatprep.subr.bf16.mxu0 0
      %5355 = vmatpush2.bf16.msra.mxu0 0
      %5356 = vmatprep.subr.bf16.mxu0 0
      %5357 = vmatpush2.bf16.msra.mxu0 0
      %5358 = vmatprep.subr.bf16.mxu0 0
      %5359 = vmatpush2.bf16.msra.mxu0 0
      %5360 = vmatprep.subr.bf16.mxu0 0
      %5361 = vmatpush2.bf16.msra.mxu0 0
      %5362 = vmatprep.subr.bf16.mxu0 0
      %5363 = vmatpush2.bf16.msra.mxu0 0
      %5364 = vmatprep.subr.bf16.mxu0 0
      %5365 = vmatpush2.bf16.msra.mxu0 0
      %5366 = vmatprep.subr.bf16.mxu0 0
      %5367 = vmatpush2.bf16.msra.mxu0 0
      %5368 = vmatprep.mubr.bf16.mxu0 0
      %5369 = vmatmul.mubr.bf16.gmra.mxu0 %v5313
      %v5370 = vpop.f32.mrf.mxu0
      %v5371 = vadd.f32 0.0, %v5370
      %v5372 = vpop.f32.mrf.mxu0
      %v5373 = vpop.f32.mrf.mxu0
      %v5374 = vadd.f32 0.0, %v5373
      %v5375 = vpop.f32.mrf.mxu0
      %5376 = vmatprep.mubr.bf16.mxu0 0
      %5377 = vmatmul.mubr.bf16.gmra.mxu0 %v5316
      %v5378 = vpop.f32.mrf.mxu0
      %v5379 = vadd.f32 0.0, %v5378
      %v5380 = vpop.f32.mrf.mxu0
      %v5381 = vpop.f32.mrf.mxu0
      %v5382 = vadd.f32 0.0, %v5381
      %v5383 = vpop.f32.mrf.mxu0
      %5384 = vmatprep.mubr.bf16.mxu0 0
      %5385 = vmatmul.mubr.bf16.gmra.mxu0 %v5319
      %v5386 = vpop.f32.mrf.mxu0
      %v5387 = vadd.f32 0.0, %v5386
      %v5388 = vpop.f32.mrf.mxu0
      %v5389 = vpop.f32.mrf.mxu0
      %v5390 = vadd.f32 0.0, %v5389
      %v5391 = vpop.f32.mrf.mxu0
      %5392 = vmatprep.mubr.bf16.mxu0 0
      %5393 = vmatmul.mubr.bf16.gmra.mxu0 %v5322
      %v5394 = vpop.f32.mrf.mxu0
      %v5395 = vadd.f32 0.0, %v5394
      %v5396 = vpop.f32.mrf.mxu0
      %v5397 = vpop.f32.mrf.mxu0
      %v5398 = vadd.f32 0.0, %v5397
      %v5399 = vpop.f32.mrf.mxu0
      %5400 = vmatprep.mubr.bf16.mxu0 0
      %5401 = vmatmul.mubr.bf16.gmra.mxu0 %v5325
      %v5402 = vpop.f32.mrf.mxu0
      %v5403 = vadd.f32 0.0, %v5402
      %v5404 = vpop.f32.mrf.mxu0
      %v5405 = vpop.f32.mrf.mxu0
      %v5406 = vadd.f32 0.0, %v5405
      %v5407 = vpop.f32.mrf.mxu0
      %5408 = vmatprep.mubr.bf16.mxu0 0
      %5409 = vmatmul.mubr.bf16.gmra.mxu0 %v5328
      %v5410 = vpop.f32.mrf.mxu0
      %v5411 = vadd.f32 0.0, %v5410
      %v5412 = vpop.f32.mrf.mxu0
      %v5413 = vpop.f32.mrf.mxu0
      %v5414 = vadd.f32 0.0, %v5413
      %v5415 = vpop.f32.mrf.mxu0
      %5416 = vmatprep.mubr.bf16.mxu0 0
      %5417 = vmatmul.mubr.bf16.gmra.mxu0 %v5331
      %v5418 = vpop.f32.mrf.mxu0
      %v5419 = vadd.f32 0.0, %v5418
      %v5420 = vpop.f32.mrf.mxu0
      %v5421 = vpop.f32.mrf.mxu0
      %v5422 = vadd.f32 0.0, %v5421
      %v5423 = vpop.f32.mrf.mxu0
      %5424 = vmatprep.mubr.bf16.mxu0 0
      %5425 = vmatmul.mubr.bf16.gmra.mxu0 %v5334
      %v5426 = vpop.f32.mrf.mxu0
      %v5427 = vadd.f32 0.0, %v5426
      %v5428 = vpop.f32.mrf.mxu0
      %v5429 = vpop.f32.mrf.mxu0
      %v5430 = vadd.f32 0.0, %v5429
      %v5431 = vpop.f32.mrf.mxu0
      %5432 = vdwg.mxu0
      %s5433 = scalar_lea.vmem %s6, 8
      %v5434 = vld [vmem:[%s5433] sm:$0xf]
      %v5435 = vld [vmem:[%s5433 + $0x4] sm:$0xf]
      %v5438 = vunpack.c.l.b16 %v5434
      %v5439 = vunpack.c.l.b16 %v5435
      %v5440 = vpack.c.b16 %v5439, %v5438
      %5442 = vmatprep.subr.bf16.mxu0 0
      %5443 = vmatpush1.bf16.msra.mxu0 0
      %5444 = vmatprep.subr.bf16.mxu0 0
      %5445 = vmatpush1.bf16.msra.mxu0 0
      %5446 = vmatprep.subr.bf16.mxu0 0
      %5447 = vmatpush1.bf16.msra.mxu0 0
      %5448 = vmatprep.subr.bf16.mxu0 0
      %5449 = vmatpush1.bf16.msra.mxu0 0
      %5450 = vmatprep.subr.bf16.mxu0 0
      %5451 = vmatpush1.bf16.msra.mxu0 0
      %5452 = vmatprep.subr.bf16.mxu0 0
      %5453 = vmatpush1.bf16.msra.mxu0 0
      %5454 = vmatprep.subr.bf16.mxu0 0
      %5455 = vmatpush1.bf16.msra.mxu0 0
      %5456 = vmatprep.subr.bf16.mxu0 0
      %5457 = vmatpush1.bf16.msra.mxu0 %v5440
      %5458 = vmatprep.subr.bf16.mxu0 0
      %5459 = vmatpush2.bf16.msra.mxu0 0
      %5460 = vmatprep.subr.bf16.mxu0 0
      %5461 = vmatpush2.bf16.msra.mxu0 0
      %5462 = vmatprep.subr.bf16.mxu0 0
      %5463 = vmatpush2.bf16.msra.mxu0 0
      %5464 = vmatprep.subr.bf16.mxu0 0
      %5465 = vmatpush2.bf16.msra.mxu0 0
      %5466 = vmatprep.subr.bf16.mxu0 0
      %5467 = vmatpush2.bf16.msra.mxu0 0
      %5468 = vmatprep.subr.bf16.mxu0 0
      %5469 = vmatpush2.bf16.msra.mxu0 0
      %5470 = vmatprep.subr.bf16.mxu0 0
      %5471 = vmatpush2.bf16.msra.mxu0 0
      %5472 = vmatprep.subr.bf16.mxu0 0
      %5473 = vmatpush2.bf16.msra.mxu0 0
      %5474 = vmatprep.mubr.bf16.mxu0 0
      %5475 = vmatmul.mubr.bf16.gmra.mxu0 %v5313
      %v5476 = vpop.f32.mrf.mxu0
      %v5477 = vadd.f32 0.0, %v5476
      %v5478 = vpop.f32.mrf.mxu0
      %v5479 = vpop.f32.mrf.mxu0
      %v5480 = vadd.f32 0.0, %v5479
      %v5481 = vpop.f32.mrf.mxu0
      %5482 = vmatprep.mubr.bf16.mxu0 0
      %5483 = vmatmul.mubr.bf16.gmra.mxu0 %v5316
      %v5484 = vpop.f32.mrf.mxu0
      %v5485 = vadd.f32 0.0, %v5484
      %v5486 = vpop.f32.mrf.mxu0
      %v5487 = vpop.f32.mrf.mxu0
      %v5488 = vadd.f32 0.0, %v5487
      %v5489 = vpop.f32.mrf.mxu0
      %5490 = vmatprep.mubr.bf16.mxu0 0
      %5491 = vmatmul.mubr.bf16.gmra.mxu0 %v5319
      %v5492 = vpop.f32.mrf.mxu0
      %v5493 = vadd.f32 0.0, %v5492
      %v5494 = vpop.f32.mrf.mxu0
      %v5495 = vpop.f32.mrf.mxu0
      %v5496 = vadd.f32 0.0, %v5495
      %v5497 = vpop.f32.mrf.mxu0
      %5498 = vmatprep.mubr.bf16.mxu0 0
      %5499 = vmatmul.mubr.bf16.gmra.mxu0 %v5322
      %v5500 = vpop.f32.mrf.mxu0
      %v5501 = vadd.f32 0.0, %v5500
      %v5502 = vpop.f32.mrf.mxu0
      %v5503 = vpop.f32.mrf.mxu0
      %v5504 = vadd.f32 0.0, %v5503
      %v5505 = vpop.f32.mrf.mxu0
      %5506 = vmatprep.mubr.bf16.mxu0 0
      %5507 = vmatmul.mubr.bf16.gmra.mxu0 %v5325
      %v5508 = vpop.f32.mrf.mxu0
      %v5509 = vadd.f32 0.0, %v5508
      %v5510 = vpop.f32.mrf.mxu0
      %v5511 = vpop.f32.mrf.mxu0
      %v5512 = vadd.f32 0.0, %v5511
      %v5513 = vpop.f32.mrf.mxu0
      %5514 = vmatprep.mubr.bf16.mxu0 0
      %5515 = vmatmul.mubr.bf16.gmra.mxu0 %v5328
      %v5516 = vpop.f32.mrf.mxu0
      %v5517 = vadd.f32 0.0, %v5516
      %v5518 = vpop.f32.mrf.mxu0
      %v5519 = vpop.f32.mrf.mxu0
      %v5520 = vadd.f32 0.0, %v5519
      %v5521 = vpop.f32.mrf.mxu0
      %5522 = vmatprep.mubr.bf16.mxu0 0
      %5523 = vmatmul.mubr.bf16.gmra.mxu0 %v5331
      %v5524 = vpop.f32.mrf.mxu0
      %v5525 = vadd.f32 0.0, %v5524
      %v5526 = vpop.f32.mrf.mxu0
      %v5527 = vpop.f32.mrf.mxu0
      %v5528 = vadd.f32 0.0, %v5527
      %v5529 = vpop.f32.mrf.mxu0
      %5530 = vmatprep.mubr.bf16.mxu0 0
      %5531 = vmatmul.mubr.bf16.gmra.mxu0 %v5334
      %v5532 = vpop.f32.mrf.mxu0
      %v5533 = vadd.f32 0.0, %v5532
      %v5534 = vpop.f32.mrf.mxu0
      %v5535 = vpop.f32.mrf.mxu0
      %v5536 = vadd.f32 0.0, %v5535
      %v5537 = vpop.f32.mrf.mxu0
      %5538 = vdwg.mxu0
      %s5539 = scalar_lea.vmem %s6, 16
      %v5540 = vld [vmem:[%s5539] sm:$0xf]
      %v5541 = vld [vmem:[%s5539 + $0x4] sm:$0xf]
      %v5544 = vunpack.c.l.b16 %v5540
      %v5545 = vunpack.c.l.b16 %v5541
      %v5546 = vpack.c.b16 %v5545, %v5544
      %5548 = vmatprep.subr.bf16.mxu0 0
      %5549 = vmatpush1.bf16.msra.mxu0 0
      %5550 = vmatprep.subr.bf16.mxu0 0
      %5551 = vmatpush1.bf16.msra.mxu0 0
      %5552 = vmatprep.subr.bf16.mxu0 0
      %5553 = vmatpush1.bf16.msra.mxu0 0
      %5554 = vmatprep.subr.bf16.mxu0 0
      %5555 = vmatpush1.bf16.msra.mxu0 0
      %5556 = vmatprep.subr.bf16.mxu0 0
      %5557 = vmatpush1.bf16.msra.mxu0 0
      %5558 = vmatprep.subr.bf16.mxu0 0
      %5559 = vmatpush1.bf16.msra.mxu0 0
      %5560 = vmatprep.subr.bf16.mxu0 0
      %5561 = vmatpush1.bf16.msra.mxu0 0
      %5562 = vmatprep.subr.bf16.mxu0 0
      %5563 = vmatpush1.bf16.msra.mxu0 %v5546
      %5564 = vmatprep.subr.bf16.mxu0 0
      %5565 = vmatpush2.bf16.msra.mxu0 0
      %5566 = vmatprep.subr.bf16.mxu0 0
      %5567 = vmatpush2.bf16.msra.mxu0 0
      %5568 = vmatprep.subr.bf16.mxu0 0
      %5569 = vmatpush2.bf16.msra.mxu0 0
      %5570 = vmatprep.subr.bf16.mxu0 0
      %5571 = vmatpush2.bf16.msra.mxu0 0
      %5572 = vmatprep.subr.bf16.mxu0 0
      %5573 = vmatpush2.bf16.msra.mxu0 0
      %5574 = vmatprep.subr.bf16.mxu0 0
      %5575 = vmatpush2.bf16.msra.mxu0 0
      %5576 = vmatprep.subr.bf16.mxu0 0
      %5577 = vmatpush2.bf16.msra.mxu0 0
      %5578 = vmatprep.subr.bf16.mxu0 0
      %5579 = vmatpush2.bf16.msra.mxu0 0
      %5580 = vmatprep.mubr.bf16.mxu0 0
      %5581 = vmatmul.mubr.bf16.gmra.mxu0 %v5313
      %v5582 = vpop.f32.mrf.mxu0
      %v5583 = vadd.f32 0.0, %v5582
      %v5584 = vpop.f32.mrf.mxu0
      %v5585 = vpop.f32.mrf.mxu0
      %v5586 = vadd.f32 0.0, %v5585
      %v5587 = vpop.f32.mrf.mxu0
      %5588 = vmatprep.mubr.bf16.mxu0 0
      %5589 = vmatmul.mubr.bf16.gmra.mxu0 %v5316
      %v5590 = vpop.f32.mrf.mxu0
      %v5591 = vadd.f32 0.0, %v5590
      %v5592 = vpop.f32.mrf.mxu0
      %v5593 = vpop.f32.mrf.mxu0
      %v5594 = vadd.f32 0.0, %v5593
      %v5595 = vpop.f32.mrf.mxu0
      %5596 = vmatprep.mubr.bf16.mxu0 0
      %5597 = vmatmul.mubr.bf16.gmra.mxu0 %v5319
      %v5598 = vpop.f32.mrf.mxu0
      %v5599 = vadd.f32 0.0, %v5598
      %v5600 = vpop.f32.mrf.mxu0
      %v5601 = vpop.f32.mrf.mxu0
      %v5602 = vadd.f32 0.0, %v5601
      %v5603 = vpop.f32.mrf.mxu0
      %5604 = vmatprep.mubr.bf16.mxu0 0
      %5605 = vmatmul.mubr.bf16.gmra.mxu0 %v5322
      %v5606 = vpop.f32.mrf.mxu0
      %v5607 = vadd.f32 0.0, %v5606
      %v5608 = vpop.f32.mrf.mxu0
      %v5609 = vpop.f32.mrf.mxu0
      %v5610 = vadd.f32 0.0, %v5609
      %v5611 = vpop.f32.mrf.mxu0
      %5612 = vmatprep.mubr.bf16.mxu0 0
      %5613 = vmatmul.mubr.bf16.gmra.mxu0 %v5325
      %v5614 = vpop.f32.mrf.mxu0
      %v5615 = vadd.f32 0.0, %v5614
      %v5616 = vpop.f32.mrf.mxu0
      %v5617 = vpop.f32.mrf.mxu0
      %v5618 = vadd.f32 0.0, %v5617
      %v5619 = vpop.f32.mrf.mxu0
      %5620 = vmatprep.mubr.bf16.mxu0 0
      %5621 = vmatmul.mubr.bf16.gmra.mxu0 %v5328
      %v5622 = vpop.f32.mrf.mxu0
      %v5623 = vadd.f32 0.0, %v5622
      %v5624 = vpop.f32.mrf.mxu0
      %v5625 = vpop.f32.mrf.mxu0
      %v5626 = vadd.f32 0.0, %v5625
      %v5627 = vpop.f32.mrf.mxu0
      %5628 = vmatprep.mubr.bf16.mxu0 0
      %5629 = vmatmul.mubr.bf16.gmra.mxu0 %v5331
      %v5630 = vpop.f32.mrf.mxu0
      %v5631 = vadd.f32 0.0, %v5630
      %v5632 = vpop.f32.mrf.mxu0
      %v5633 = vpop.f32.mrf.mxu0
      %v5634 = vadd.f32 0.0, %v5633
      %v5635 = vpop.f32.mrf.mxu0
      %5636 = vmatprep.mubr.bf16.mxu0 0
      %5637 = vmatmul.mubr.bf16.gmra.mxu0 %v5334
      %v5638 = vpop.f32.mrf.mxu0
      %v5639 = vadd.f32 0.0, %v5638
      %v5640 = vpop.f32.mrf.mxu0
      %v5641 = vpop.f32.mrf.mxu0
      %v5642 = vadd.f32 0.0, %v5641
      %v5643 = vpop.f32.mrf.mxu0
      %5644 = vdwg.mxu0
      %v5661 = vrot.slane %v5583, 1
      %v5662 = vrot.slane %v5586, 1
      %v5663 = vsel %vm530, %v5661, %v5662
      %v5664 = vrot.slane %v5591, 1
      %v5665 = vrot.slane %v5594, 1
      %v5666 = vsel %vm530, %v5664, %v5665
      %v5667 = vrot.slane %v5599, 1
      %v5668 = vrot.slane %v5602, 1
      %v5669 = vsel %vm530, %v5667, %v5668
      %v5670 = vrot.slane %v5607, 1
      %v5671 = vrot.slane %v5610, 1
      %v5672 = vsel %vm530, %v5670, %v5671
      %v5673 = vrot.slane %v5615, 1
      %v5674 = vrot.slane %v5618, 1
      %v5675 = vsel %vm530, %v5673, %v5674
      %v5676 = vrot.slane %v5623, 1
      %v5677 = vrot.slane %v5626, 1
      %v5678 = vsel %vm530, %v5676, %v5677
      %v5679 = vrot.slane %v5631, 1
      %v5680 = vrot.slane %v5634, 1
      %v5681 = vsel %vm530, %v5679, %v5680
      %v5682 = vrot.slane %v5639, 1
      %v5683 = vrot.slane %v5642, 1
      %v5684 = vsel %vm530, %v5682, %v5683
      %v5701 = vsel %vm530, %v5662, 0.0
      %v5702 = vsel %vm530, %v5665, 0.0
      %v5703 = vsel %vm530, %v5668, 0.0
      %v5704 = vsel %vm530, %v5671, 0.0
      %v5705 = vsel %vm530, %v5674, 0.0
      %v5706 = vsel %vm530, %v5677, 0.0
      %v5707 = vsel %vm530, %v5680, 0.0
      %v5708 = vsel %vm530, %v5683, 0.0
      %v5709 = vld [vmem:[#allocation3] sm:$0x1]
      %v5711 = vlaneseq
      %v5712 = vshrl.u32 %v5711, 7
      %v5713 = vsub.s32 0, %v5712
      %v5714 = vrot.slane %v5709, %v5713
      %v5716 = vadd.f32 %v5371, %v5714
      %v5717 = vadd.f32 %v5374, %v5714
      %v5718 = vadd.f32 %v5379, %v5714
      %v5719 = vadd.f32 %v5382, %v5714
      %v5720 = vadd.f32 %v5387, %v5714
      %v5721 = vadd.f32 %v5390, %v5714
      %v5722 = vadd.f32 %v5395, %v5714
      %v5723 = vadd.f32 %v5398, %v5714
      %v5724 = vadd.f32 %v5403, %v5714
      %v5725 = vadd.f32 %v5406, %v5714
      %v5726 = vadd.f32 %v5411, %v5714
      %v5727 = vadd.f32 %v5414, %v5714
      %v5728 = vadd.f32 %v5419, %v5714
      %v5729 = vadd.f32 %v5422, %v5714
      %v5730 = vadd.f32 %v5427, %v5714
      %v5731 = vadd.f32 %v5430, %v5714
      %v5732 = vmax.f32 %v5716, 0.0
      %v5733 = vmax.f32 %v5717, 0.0
      %v5734 = vmax.f32 %v5718, 0.0
      %v5735 = vmax.f32 %v5719, 0.0
      %v5736 = vmax.f32 %v5720, 0.0
      %v5737 = vmax.f32 %v5721, 0.0
      %v5738 = vmax.f32 %v5722, 0.0
      %v5739 = vmax.f32 %v5723, 0.0
      %v5740 = vmax.f32 %v5724, 0.0
      %v5741 = vmax.f32 %v5725, 0.0
      %v5742 = vmax.f32 %v5726, 0.0
      %v5743 = vmax.f32 %v5727, 0.0
      %v5744 = vmax.f32 %v5728, 0.0
      %v5745 = vmax.f32 %v5729, 0.0
      %v5746 = vmax.f32 %v5730, 0.0
      %v5747 = vmax.f32 %v5731, 0.0
      %v5748 = vadd.f32 %v5477, %v5663
      %v5749 = vadd.f32 %v5480, %v5701
      %v5750 = vadd.f32 %v5485, %v5666
      %v5751 = vadd.f32 %v5488, %v5702
      %v5752 = vadd.f32 %v5493, %v5669
      %v5753 = vadd.f32 %v5496, %v5703
      %v5754 = vadd.f32 %v5501, %v5672
      %v5755 = vadd.f32 %v5504, %v5704
      %v5756 = vadd.f32 %v5509, %v5675
      %v5757 = vadd.f32 %v5512, %v5705
      %v5758 = vadd.f32 %v5517, %v5678
      %v5759 = vadd.f32 %v5520, %v5706
      %v5760 = vadd.f32 %v5525, %v5681
      %v5761 = vadd.f32 %v5528, %v5707
      %v5762 = vadd.f32 %v5533, %v5684
      %v5763 = vadd.f32 %v5536, %v5708
      %v5764 = vadd.f32 %v5748, %v5714
      %v5765 = vadd.f32 %v5749, %v5714
      %v5766 = vadd.f32 %v5750, %v5714
      %v5767 = vadd.f32 %v5751, %v5714
      %v5768 = vadd.f32 %v5752, %v5714
      %v5769 = vadd.f32 %v5753, %v5714
      %v5770 = vadd.f32 %v5754, %v5714
      %v5771 = vadd.f32 %v5755, %v5714
      %v5772 = vadd.f32 %v5756, %v5714
      %v5773 = vadd.f32 %v5757, %v5714
      %v5774 = vadd.f32 %v5758, %v5714
      %v5775 = vadd.f32 %v5759, %v5714
      %v5776 = vadd.f32 %v5760, %v5714
      %v5777 = vadd.f32 %v5761, %v5714
      %v5778 = vadd.f32 %v5762, %v5714
      %v5779 = vadd.f32 %v5763, %v5714
      %v5780 = vmax.f32 %v5764, 0.0
      %v5781 = vmax.f32 %v5765, 0.0
      %v5782 = vmax.f32 %v5766, 0.0
      %v5783 = vmax.f32 %v5767, 0.0
      %v5784 = vmax.f32 %v5768, 0.0
      %v5785 = vmax.f32 %v5769, 0.0
      %v5786 = vmax.f32 %v5770, 0.0
      %v5787 = vmax.f32 %v5771, 0.0
      %v5788 = vmax.f32 %v5772, 0.0
      %v5789 = vmax.f32 %v5773, 0.0
      %v5790 = vmax.f32 %v5774, 0.0
      %v5791 = vmax.f32 %v5775, 0.0
      %v5792 = vmax.f32 %v5776, 0.0
      %v5793 = vmax.f32 %v5777, 0.0
      %v5794 = vmax.f32 %v5778, 0.0
      %v5795 = vmax.f32 %v5779, 0.0
      %5812 = vrot.lane.b32.xlu0 %v5780, 1
      %v5813 = vpop.permute.xlu0 %5812
      %5814 = vrot.lane.b32.xlu0 %v5781, 1
      %v5815 = vpop.permute.xlu0 %5814
      %5816 = vrot.lane.b32.xlu0 %v5782, 1
      %v5817 = vpop.permute.xlu0 %5816
      %5818 = vrot.lane.b32.xlu0 %v5783, 1
      %v5819 = vpop.permute.xlu0 %5818
      %5820 = vrot.lane.b32.xlu0 %v5784, 1
      %v5821 = vpop.permute.xlu0 %5820
      %5822 = vrot.lane.b32.xlu0 %v5785, 1
      %v5823 = vpop.permute.xlu0 %5822
      %5824 = vrot.lane.b32.xlu0 %v5786, 1
      %v5825 = vpop.permute.xlu0 %5824
      %5826 = vrot.lane.b32.xlu0 %v5787, 1
      %v5827 = vpop.permute.xlu0 %5826
      %5828 = vrot.lane.b32.xlu0 %v5788, 1
      %v5829 = vpop.permute.xlu0 %5828
      %5830 = vrot.lane.b32.xlu0 %v5789, 1
      %v5831 = vpop.permute.xlu0 %5830
      %5832 = vrot.lane.b32.xlu0 %v5790, 1
      %v5833 = vpop.permute.xlu0 %5832
      %5834 = vrot.lane.b32.xlu0 %v5791, 1
      %v5835 = vpop.permute.xlu0 %5834
      %5836 = vrot.lane.b32.xlu0 %v5792, 1
      %v5837 = vpop.permute.xlu0 %5836
      %5838 = vrot.lane.b32.xlu0 %v5793, 1
      %v5839 = vpop.permute.xlu0 %5838
      %5840 = vrot.lane.b32.xlu0 %v5794, 1
      %v5841 = vpop.permute.xlu0 %5840
      %5842 = vrot.lane.b32.xlu0 %v5795, 1
      %v5843 = vpop.permute.xlu0 %5842
      %vm5860 = vcmask 7168
      %v5861 = vsel %vm5860, %v5732, %v5813
      %v5862 = vsel %vm5860, %v5733, %v5815
      %v5863 = vsel %vm5860, %v5734, %v5817
      %v5864 = vsel %vm5860, %v5735, %v5819
      %v5865 = vsel %vm5860, %v5736, %v5821
      %v5866 = vsel %vm5860, %v5737, %v5823
      %v5867 = vsel %vm5860, %v5738, %v5825
      %v5868 = vsel %vm5860, %v5739, %v5827
      %v5869 = vsel %vm5860, %v5740, %v5829
      %v5870 = vsel %vm5860, %v5741, %v5831
      %v5871 = vsel %vm5860, %v5742, %v5833
      %v5872 = vsel %vm5860, %v5743, %v5835
      %v5873 = vsel %vm5860, %v5744, %v5837
      %v5874 = vsel %vm5860, %v5745, %v5839
      %v5875 = vsel %vm5860, %v5746, %v5841
      %v5876 = vsel %vm5860, %v5747, %v5843
      %vm5877 = vcmask 15360
      %5878 = vst.msk [vmem:[%s307] sm:$0xff] %vm5877, %v5861
      %5879 = vst.msk [vmem:[%s307 + $0x8] sm:$0xff] %vm5877, %v5862
      %5880 = vst.msk [vmem:[%s307 + $0x10] sm:$0xff] %vm5877, %v5863
      %5881 = vst.msk [vmem:[%s307 + $0x18] sm:$0xff] %vm5877, %v5864
      %5882 = vst.msk [vmem:[%s307 + $0x20] sm:$0xff] %vm5877, %v5865
      %5883 = vst.msk [vmem:[%s307 + $0x28] sm:$0xff] %vm5877, %v5866
      %5884 = vst.msk [vmem:[%s307 + $0x30] sm:$0xff] %vm5877, %v5867
      %5885 = vst.msk [vmem:[%s307 + $0x38] sm:$0xff] %vm5877, %v5868
      %5886 = vst.msk [vmem:[%s307 + $0x40] sm:$0xff] %vm5877, %v5869
      %5887 = vst.msk [vmem:[%s307 + $0x48] sm:$0xff] %vm5877, %v5870
      %5888 = vst.msk [vmem:[%s307 + $0x50] sm:$0xff] %vm5877, %v5871
      %5889 = vst.msk [vmem:[%s307 + $0x58] sm:$0xff] %vm5877, %v5872
      %5890 = vst.msk [vmem:[%s307 + $0x60] sm:$0xff] %vm5877, %v5873
      %5891 = vst.msk [vmem:[%s307 + $0x68] sm:$0xff] %vm5877, %v5874
      %5892 = vst.msk [vmem:[%s307 + $0x70] sm:$0xff] %vm5877, %v5875
      %5893 = vst.msk [vmem:[%s307 + $0x78] sm:$0xff] %vm5877, %v5876
      %p5894 = scmp.lt.s32.totalorder %s21, 1
      %s5895 = scalar_select %p5894, %s21, 1
      %s5896 = smul.addr %s5895, 16
      %s5897 = smul.addr %s5896, 8
      %s5898 = scalar_lea.vmem %s8, %s5897
      // Predicated region
      $region53: #{mapping_decoder_forward.1} parent=51 // pred_check
        %p5899 = pneg %p212
      $region54: #{mapping_decoder_forward.1} parent=51 // pred_check_branch
        %5901 = sbr.rel (%p5899) target = $region56
      $region55: #{mapping_decoder_forward.1} parent=51 // pred_region
        _
      $region56: #{mapping_decoder_forward.1} parent=51 // pred_fallthru
        _
    $region52: #{mapping_decoder_forward.1} parent=5 // pred_fallthru
      _
    %p5902 = scmp.le.s32.totalorder 2, %s16
    // Predicated region
    $region57: #{mapping_decoder_forward.1} parent=5 // pred_check
      %p5903 = pneg %p5902
    $region58: #{mapping_decoder_forward.1} parent=5 // pred_check_branch
      %5905 = sbr.rel (%p5903) target = $region60
    $region59: #{mapping_decoder_forward.1} parent=5 // pred_region
      %s5906 = ssub.s32 %s16, 2
      // Predicated region
      $region61: #{mapping_decoder_forward.1} parent=59 // pred_check
        %p5907 = pneg %p218
      $region62: #{mapping_decoder_forward.1} parent=59 // pred_check_branch
        %5909 = sbr.rel (%p5907) target = $region64
      $region63: #{mapping_decoder_forward.1} parent=59 // pred_region
        %p5910 = scmp.lt.s32.totalorder %s22, 1
        %s5911 = scalar_select %p5910, %s22, 1
        %s5912 = smul.addr %s5911, 16
        %s5913 = smul.addr %s5912, 8
        %s5914 = scalar_lea.vmem %s8, %s5913
      $region64: #{mapping_decoder_forward.1} parent=59 // pred_fallthru
        _
    $region60: #{mapping_decoder_forward.1} parent=5 // pred_fallthru
      _
  $region6: #{mapping_decoder_forward.1} parent=0 // loop_footer
    %s20 = sadd.s32 1, %s16
  $region7: #{mapping_decoder_forward.1} parent=0 // loop_footer_branch
    %15 = sbr.rel target = $region3
  $region8: #{mapping_decoder_forward.1} parent=0 // loop_exit
    _

</llo_original>
